<compile_context>
chip_gen: v7x
topology: tpu7x:2x2x1
jax: 0.10.0
libtpu: 0.0.40
codegen_flags: <defaults>
</compile_context>

<pallas_src>
import functools

import jax
import jax.numpy as jnp
from jax.experimental import pallas as pl
from jax.experimental.pallas import tpu as pltpu

LANE = 128
MXU_DTYPE = jnp.bfloat16        # MXU operand dtype (f32 accumulation)
ACT_DTYPE = jnp.bfloat16        # inter-kernel activation dtype (halves HBM bytes)


def _vmem_budgets():
    """Generation-aware VMEM limits (128 MiB on v5e/v6e, 64 MiB on v7x)."""
    cap = 64 * 1024 * 1024
    try:
        info = pltpu.get_tpu_info()
        cap = int(getattr(info, "vmem_capacity_bytes", cap) or cap)
    except Exception:
        pass
    limit = min(cap * 3 // 4, 100 * 1024 * 1024)   # 96 MiB on 128 MiB parts, 48 MiB on v7x
    budget = min(cap // 2, 56 * 1024 * 1024)       # per-tile working-set target
    return int(limit), int(budget)


VMEM_LIMIT_BYTES, VMEM_TILE_BUDGET = _vmem_budgets()


def _round_up(x, m):
    return (x + m - 1) // m * m


def _pad_channels(x, cp):
    c = x.shape[-1]
    if c == cp:
        return x
    return jnp.pad(x, [(0, 0)] * (x.ndim - 1) + [(0, cp - c)])


def _pick_row_tile(h, w, per_row_bytes, fixed_bytes, budget=None):
    """Largest divisor of h whose working set fits the VMEM tile budget,
    preferring tiles whose MXU M dim (th*w) is 8-aligned and >= 256."""
    if budget is None:
        budget = VMEM_TILE_BUDGET
    divisors = [d for d in range(1, h + 1) if h % d == 0]
    fitting = [d for d in divisors if fixed_bytes + d * per_row_bytes <= budget]
    if not fitting:
        return divisors[0]
    aligned = [d for d in fitting if (d * w) % 8 == 0 and d * w >= 256]
    # TODO(synk): support non-divisor TH via a masked last tile for H values
    # with poor divisors (TH can otherwise collapse to a tiny MXU M).
    return max(aligned) if aligned else max(fitting)


# --------------------------------------------------------------------------
# 3x3 / stride 1 / pad 1 convolution: three per-kh MXU dots (K = 3*Cin) over a
# bf16 row window.  Grid = (N, H/TH); halo rows arrive via two 1-row BlockSpecs.
# Optionally fuses BatchNorm pass-1 (per-channel sum/sumsq) into the epilogue.
# --------------------------------------------------------------------------
def _conv3x3_kernel(*refs, apply_relu, has_bias, has_residual, emit_stats):
    xb_ref, ha_ref, hb_ref, w_ref = refs[:4]
    idx = 4
    b_ref = None
    if has_bias:
        b_ref = refs[idx]; idx += 1
    r_ref = None
    if has_residual:
        r_ref = refs[idx]; idx += 1
    o_ref = refs[idx]; idx += 1
    st_ref = refs[idx] if emit_stats else None

    th, w, cout = o_ref.shape[1], o_ref.shape[2], o_ref.shape[3]
    cin = xb_ref.shape[3]

    # (th+2, W+2, Cin) bf16 window: body rows + the two halo rows below the tile.
    xwin = jnp.concatenate([xb_ref[0], ha_ref[0], hb_ref[0]], axis=0)

    # 3 MXU dots (one per kernel row), K = 3*Cin, f32 accumulation.
    acc = jnp.zeros((th * w, cout), jnp.float32)
    for kh in range(3):
        patch = jnp.concatenate(
            [xwin[kh:kh + th, kw:kw + w, :] for kw in range(3)],
            axis=-1).reshape(th * w, 3 * cin)
        acc = acc + jnp.dot(patch, w_ref[kh * 3 * cin:(kh + 1) * 3 * cin, :],
                            preferred_element_type=jnp.float32)
    if has_bias:
        acc = acc + b_ref[...].astype(jnp.float32)
    if apply_relu:
        acc = jnp.maximum(acc, 0.0)
    if has_residual:
        acc = acc + r_ref[0].astype(jnp.float32).reshape(th * w, cout)
    o_ref[0] = acc.reshape(th, w, cout).astype(o_ref.dtype)

    if emit_stats:
        # Fused BatchNorm pass 1 over this call's output (no extra HBM read).
        @pl.when(pl.program_id(1) == 0)
        def _():
            st_ref[...] = jnp.zeros_like(st_ref)
        s = jnp.sum(acc, axis=0, keepdims=True)
        sq = jnp.sum(acc * acc, axis=0, keepdims=True)
        st_ref[0] = st_ref[0] + jnp.concatenate([s, sq], axis=0)


def conv3x3(x, w2, b2=None, *, apply_relu=False, residual=None, emit_stats=False):
    """x: (N,H,W,Cin_p) bf16 NHWC; w2: (9*Cin_p, Cout_p) bf16 (im2col layout);
    b2: (1, Cout_p) f32 or None; residual: (N,H,W,Cout_p) bf16 or None.
    Returns bf16 (N,H,W,Cout_p); with emit_stats also (N,2,Cout_p) f32 sum/sumsq."""
    n, h, w, cin = x.shape
    cout = w2.shape[1]
    # TODO(synk): the 1-pixel halo is still materialized with jnp.pad in HBM
    # (bf16 now); an in-kernel halo (edge masking) would remove this round trip.
    xp = jnp.pad(x, ((0, 0), (1, 1), (1, 1), (0, 0)))

    per_row = ((w + 2) * cin * 2 * 2                 # body input block (dbl-buffered)
               + w * cout * 2 * 2                    # output block (bf16)
               + (w * cout * 2 * 2 if residual is not None else 0)
               + (w + 2) * cin * 2                   # in-kernel window copy (bf16)
               + w * 3 * cin * 2                     # per-kh im2col patch (bf16)
               + 2 * w * cout * 4)                   # f32 accumulator + epilogue temp
    fixed = (9 * cin * cout * 2 * 2                  # weights (bf16)
             + 2 * (w + 2) * cin * 2 * 2             # halo-row blocks
             + 2 * (w + 2) * cin * 2                 # window halo rows
             + cout * 4 * 2                          # bias
             + (2 * cout * 4 * 2 if emit_stats else 0))
    th = _pick_row_tile(h, w, per_row, fixed)
    nt = h // th

    body_spec = pl.BlockSpec((1, th, w + 2, cin), lambda i, t: (i, t, 0, 0))
    halo_a = pl.BlockSpec((1, 1, w + 2, cin), lambda i, t: (i, (t + 1) * th, 0, 0))
    halo_b = pl.BlockSpec((1, 1, w + 2, cin), lambda i, t: (i, (t + 1) * th + 1, 0, 0))
    w_spec = pl.BlockSpec((9 * cin, cout), lambda i, t: (0, 0))

    inputs = [xp, xp, xp, w2]
    in_specs = [body_spec, halo_a, halo_b, w_spec]
    if b2 is not None:
        inputs.append(b2)
        in_specs.append(pl.BlockSpec((1, cout), lambda i, t: (0, 0)))
    if residual is not None:
        inputs.append(residual)
        in_specs.append(pl.BlockSpec((1, th, w, cout), lambda i, t: (i, t, 0, 0)))

    out_specs = pl.BlockSpec((1, th, w, cout), lambda i, t: (i, t, 0, 0))
    out_shape = jax.ShapeDtypeStruct((n, h, w, cout), ACT_DTYPE)
    if emit_stats:
        out_specs = [out_specs, pl.BlockSpec((1, 2, cout), lambda i, t: (i, 0, 0))]
        out_shape = (out_shape, jax.ShapeDtypeStruct((n, 2, cout), jnp.float32))
        semantics = ("parallel", "arbitrary")        # stats accumulate over row tiles
    else:
        semantics = ("parallel", "parallel")         # megacore shards both axes

    kernel = functools.partial(_conv3x3_kernel, apply_relu=apply_relu,
                               has_bias=b2 is not None,
                               has_residual=residual is not None,
                               emit_stats=emit_stats)
    flops = 2 * n * h * w * 9 * cin * cout
    bytes_accessed = (n * (h + 2) * (w + 2) * cin * 2 + 9 * cin * cout * 2
                      + n * h * w * cout * 2
                      + (0 if b2 is None else cout * 4)
                      + (0 if residual is None else n * h * w * cout * 2))
    return pl.pallas_call(
        kernel,
        out_shape=out_shape,
        grid=(n, nt),
        in_specs=in_specs,
        out_specs=out_specs,
        compiler_params=pltpu.CompilerParams(
            dimension_semantics=semantics,
            vmem_limit_bytes=VMEM_LIMIT_BYTES),
        cost_estimate=pl.CostEstimate(flops=int(flops), transcendentals=0,
                                      bytes_accessed=int(bytes_accessed)),
    )(*inputs)


# --------------------------------------------------------------------------
# BatchNorm pass 1 for the external input x: tiled per-channel sum / sumsq.
# --------------------------------------------------------------------------
def _bn_stats_kernel(x_ref, o_ref):
    @pl.when(pl.program_id(1) == 0)
    def _():
        o_ref[...] = jnp.zeros_like(o_ref)
    x = x_ref[0].astype(jnp.float32)                 # (TH, W, C)
    th, w, c = x.shape
    x2 = x.reshape(th * w, c)
    s = jnp.sum(x2, axis=0, keepdims=True)
    sq = jnp.sum(x2 * x2, axis=0, keepdims=True)
    o_ref[0] = o_ref[0] + jnp.concatenate([s, sq], axis=0)


def _finalize_bn_stats(partial_sums, count, eps):
    """(N,2,C) per-batch partial sums -> (2,C) [mean; 1/sqrt(var+eps)]."""
    sums = jnp.sum(partial_sums.astype(jnp.float32), axis=0)
    mean = sums[0] / count
    var = sums[1] / count - mean * mean
    # TODO(synk): E[x^2]-E[x]^2 can cancel for very large counts; switch to
    # mean-shifted / Welford combination if that precision matters.
    invstd = jax.lax.rsqrt(jnp.maximum(var, 0.0) + eps)
    return jnp.stack([mean, invstd], axis=0)


def bn_mean_invstd(x, *, eps=1e-5):
    n, h, w, c = x.shape
    per_row = w * c * 2 * 2 + w * c * 4
    fixed = 2 * c * 4 * 2
    th = _pick_row_tile(h, w, per_row, fixed)
    nt = h // th
    partial = pl.pallas_call(
        _bn_stats_kernel,
        out_shape=jax.ShapeDtypeStruct((n, 2, c), jnp.float32),
        grid=(n, nt),
        in_specs=[pl.BlockSpec((1, th, w, c), lambda i, t: (i, t, 0, 0))],
        out_specs=pl.BlockSpec((1, 2, c), lambda i, t: (i, 0, 0)),
        compiler_params=pltpu.CompilerParams(
            dimension_semantics=("parallel", "arbitrary"),
            vmem_limit_bytes=VMEM_LIMIT_BYTES),
    )(x)
    return _finalize_bn_stats(partial, float(n * h * w), eps)


# --------------------------------------------------------------------------
# BatchNorm pass 2 fused with the SPADE gamma/beta head convs and modulation:
#   gamma,beta = conv3x3(shared_head) ; out = (x-mean)*invstd*(1+gamma)+beta [+ReLU]
# gamma / beta never hit HBM.  The shared tensor is the single fused
# mlp_shared output (3 heads); the BlockSpec channel index selects the head.
# --------------------------------------------------------------------------
def _spade_modulate_kernel(x_ref, s_body_ref, s_h0_ref, s_h1_ref,
                           wgb_ref, bgb_ref, stats_ref, o_ref,
                           *, apply_relu, cn):
    th, w = o_ref.shape[1], o_ref.shape[2]
    ch = s_body_ref.shape[3]

    swin = jnp.concatenate([s_body_ref[0], s_h0_ref[0], s_h1_ref[0]], axis=0)
    # Fused gamma|beta head: 2*Cn output columns, 3 per-kh dots with K = 3*Ch.
    gb = jnp.zeros((th * w, 2 * cn), jnp.float32)
    for kh in range(3):
        patch = jnp.concatenate(
            [swin[kh:kh + th, kw:kw + w, :] for kw in range(3)],
            axis=-1).reshape(th * w, 3 * ch)
        gb = gb + jnp.dot(patch, wgb_ref[kh * 3 * ch:(kh + 1) * 3 * ch, :],
                          preferred_element_type=jnp.float32)
    gb = gb + bgb_ref[...].astype(jnp.float32)
    gamma = gb[:, :cn].reshape(th, w, cn)
    beta = gb[:, cn:].reshape(th, w, cn)

    mean = stats_ref[0:1, :].reshape(1, 1, cn)
    invstd = stats_ref[1:2, :].reshape(1, 1, cn)
    x = x_ref[0].astype(jnp.float32)
    out = (x - mean) * invstd * (1.0 + gamma) + beta
    if apply_relu:
        out = jnp.maximum(out, 0.0)
    o_ref[0] = out.astype(o_ref.dtype)


def spade_modulate(x, shared_pad, head, wgb, bgb, stats, *, apply_relu):
    """x: (N,H,W,Cn_p) bf16; shared_pad: (N,H+2,W+2,3*Ch_p) bf16 fused shared
    activations (padded once); head selects the Ch_p-wide channel block;
    wgb: (9*Ch_p, 2*Cn_p) bf16; bgb: (1, 2*Cn_p) f32; stats: (2, Cn_p) f32."""
    n, h, w, cn = x.shape
    ch = wgb.shape[0] // 9

    per_row = (w * cn * 2 * 2                        # x block
               + (w + 2) * ch * 2 * 2                # shared body block
               + w * cn * 2 * 2                      # output block
               + (w + 2) * ch * 2                    # in-kernel window copy
               + w * 3 * ch * 2                      # per-kh im2col patch
               + w * 2 * cn * 4                      # f32 gamma/beta accumulator
               + 3 * w * cn * 4)                     # f32 gamma/beta/out temps
    fixed = (9 * ch * 2 * cn * 2 * 2                 # fused gamma/beta weights (bf16)
             + 2 * (w + 2) * ch * 2 * 2              # halo-row blocks
             + 2 * (w + 2) * ch * 2                  # window halo rows
             + 2 * cn * 4 * 2 + 2 * cn * 4 * 2)      # bias + stats
    th = _pick_row_tile(h, w, per_row, fixed)
    nt = h // th

    in_specs = [
        pl.BlockSpec((1, th, w, cn), lambda i, t: (i, t, 0, 0)),                    # x
        pl.BlockSpec((1, th, w + 2, ch), lambda i, t: (i, t, 0, head)),             # shared body
        pl.BlockSpec((1, 1, w + 2, ch), lambda i, t: (i, (t + 1) * th, 0, head)),   # halo row 0
        pl.BlockSpec((1, 1, w + 2, ch), lambda i, t: (i, (t + 1) * th + 1, 0, head)),  # halo row 1
        pl.BlockSpec((9 * ch, 2 * cn), lambda i, t: (0, 0)),                        # wgb
        pl.BlockSpec((1, 2 * cn), lambda i, t: (0, 0)),                             # bgb
        pl.BlockSpec((2, cn), lambda i, t: (0, 0)),                                 # mean/invstd
    ]
    flops = 2 * n * h * w * 9 * ch * (2 * cn)
    bytes_accessed = (n * h * w * cn * 2 * 2 + n * (h + 2) * (w + 2) * ch * 2
                      + 9 * ch * 2 * cn * 2 + 2 * cn * 4 * 2)
    kernel = functools.partial(_spade_modulate_kernel,
                               apply_relu=apply_relu, cn=cn)
    return pl.pallas_call(
        kernel,
        out_shape=jax.ShapeDtypeStruct((n, h, w, cn), ACT_DTYPE),
        grid=(n, nt),
        in_specs=in_specs,
        out_specs=pl.BlockSpec((1, th, w, cn), lambda i, t: (i, t, 0, 0)),
        compiler_params=pltpu.CompilerParams(
            dimension_semantics=("parallel", "parallel"),
            vmem_limit_bytes=VMEM_LIMIT_BYTES),
        cost_estimate=pl.CostEstimate(flops=int(flops), transcendentals=0,
                                      bytes_accessed=int(bytes_accessed)),
    )(x, shared_pad, shared_pad, shared_pad, wgb, bgb, stats)


# --------------------------------------------------------------------------
# Parameter setup (plain JAX glue).
# --------------------------------------------------------------------------
def _spectral_normalize(w_hwio, n_iters=50):
    # TODO(synk): PyTorch spectral_norm does one power-iteration step per
    # forward from a persistent u; here the weight is pre-normalized once with
    # a converged power-iteration sigma (same operator, tighter estimate).
    cout = w_hwio.shape[-1]
    wm = jnp.transpose(w_hwio, (3, 0, 1, 2)).reshape(cout, -1)
    v = jnp.ones((wm.shape[1],), jnp.float32) / jnp.sqrt(float(wm.shape[1]))
    for _ in range(n_iters):
        u = wm @ v
        u = u / (jnp.linalg.norm(u) + 1e-12)
        v = wm.T @ u
        v = v / (jnp.linalg.norm(v) + 1e-12)
    sigma = jnp.linalg.norm(wm @ v)
    return w_hwio / sigma


def _randw(key, shape, scale=0.1):
    return scale * jax.random.normal(key, shape, jnp.float32)


def _prep_conv_weight(w_hwio, cin_p, cout_p):
    """(3,3,Cin,Cout) -> zero-padded, im2col-reshaped (9*Cin_p, Cout_p) bf16."""
    kh, kw, cin, cout = w_hwio.shape
    w = jnp.pad(w_hwio, ((0, 0), (0, 0), (0, cin_p - cin), (0, cout_p - cout)))
    return w.reshape(kh * kw * cin_p, cout_p).astype(MXU_DTYPE)


def _prep_bias(b, cout_p):
    return jnp.pad(b, (0, cout_p - b.shape[0])).reshape(1, cout_p).astype(jnp.float32)


def init_spade_params(key, norm_ch, mask_ch, hidden_ch):
    k = jax.random.split(key, 6)
    cn_p = _round_up(norm_ch, LANE)
    cm_p = _round_up(mask_ch, LANE)
    ch_p = _round_up(hidden_ch, LANE)
    shared_w = _randw(k[0], (3, 3, mask_ch, hidden_ch))
    shared_b = _randw(k[1], (hidden_ch,))
    gamma_w = _randw(k[2], (3, 3, hidden_ch, norm_ch))
    gamma_b = _randw(k[3], (norm_ch,))
    beta_w = _randw(k[4], (3, 3, hidden_ch, norm_ch))
    beta_b = _randw(k[5], (norm_ch,))
    return dict(
        shared_w=_prep_conv_weight(shared_w, cm_p, ch_p),
        shared_b=_prep_bias(shared_b, ch_p),
        # gamma and beta heads fused into one conv with 2*Cn output columns.
        wgb=jnp.concatenate([_prep_conv_weight(gamma_w, ch_p, cn_p),
                             _prep_conv_weight(beta_w, ch_p, cn_p)], axis=1),
        bgb=jnp.concatenate([_prep_bias(gamma_b, cn_p),
                             _prep_bias(beta_b, cn_p)], axis=1),
    )


def init_params(key, in_ch, out_ch, mask_ch, hidden_ch):
    mid_ch = min(in_ch, out_ch)
    cin_p = _round_up(in_ch, LANE)
    cmid_p = _round_up(mid_ch, LANE)
    cout_p = _round_up(out_ch, LANE)
    k = jax.random.split(key, 8)
    sp0 = init_spade_params(k[5], in_ch, mask_ch, hidden_ch)
    sp1 = init_spade_params(k[6], mid_ch, mask_ch, hidden_ch)
    sps = init_spade_params(k[7], in_ch, mask_ch, hidden_ch)
    # The three mlp_shared convs read the same mask -> fuse into one conv with
    # Cout = 3*Ch_p (head order: spade_0, spade_1, spade_s).
    shared_w_all = jnp.concatenate(
        [sp0['shared_w'], sp1['shared_w'], sps['shared_w']], axis=1)
    shared_b_all = jnp.concatenate(
        [sp0['shared_b'], sp1['shared_b'], sps['shared_b']], axis=1)
    return dict(
        conv_0_w=_prep_conv_weight(
            _spectral_normalize(_randw(k[0], (3, 3, in_ch, mid_ch))), cin_p, cmid_p),
        conv_0_b=_prep_bias(_randw(k[1], (mid_ch,)), cmid_p),
        conv_1_w=_prep_conv_weight(
            _spectral_normalize(_randw(k[2], (3, 3, mid_ch, out_ch))), cmid_p, cout_p),
        conv_1_b=_prep_bias(_randw(k[3], (out_ch,)), cout_p),
        conv_s_w=_prep_conv_weight(
            _spectral_normalize(_randw(k[4], (3, 3, in_ch, out_ch))), cin_p, cout_p),
        shared_w_all=shared_w_all,
        shared_b_all=shared_b_all,
        spade_0=sp0, spade_1=sp1, spade_s=sps,
        out_ch=out_ch,
    )


# --------------------------------------------------------------------------
# Forward pass (composition of Pallas kernels; NCHW <-> NHWC at the boundary).
# --------------------------------------------------------------------------
SPADE_HEAD_0, SPADE_HEAD_1, SPADE_HEAD_S = 0, 1, 2


def spade_resblk_forward(x_nchw, mask_nchw, params, *, learn_shortcut,
                         use_original_resblk=True, eps=1e-5):
    x = jnp.transpose(x_nchw, (0, 2, 3, 1))
    mask = jnp.transpose(mask_nchw, (0, 2, 3, 1))
    # TODO(synk): F.interpolate(mask, size=x.shape[2:], mode='nearest') inside
    # SPADE is assumed to be the identity (mask matches x's spatial size).
    x_p = _pad_channels(x, _round_up(x.shape[-1], LANE)).astype(ACT_DTYPE)
    mask_p = _pad_channels(mask, _round_up(mask.shape[-1], LANE)).astype(ACT_DTYPE)

    # One fused mlp_shared conv (+ReLU) for all three SPADE branches: mask read
    # once, MXU N = 3*Ch_p.  Spatially padded once for all three consumers.
    # TODO(synk): with mask_ch << 128 the im2col K is mostly zero padding;
    # packing taps x real-channels into K would recover that MXU/DMA waste.
    shared_all = conv3x3(mask_p, params['shared_w_all'], params['shared_b_all'],
                         apply_relu=True)
    shared_pad = jnp.pad(shared_all, ((0, 0), (1, 1), (1, 1), (0, 0)))

    # spade_0 and spade_s normalize the same x -> compute batch stats once.
    stats_x = bn_mean_invstd(x_p, eps=eps)

    if learn_shortcut:
        s = spade_modulate(x_p, shared_pad, SPADE_HEAD_S,
                           params['spade_s']['wgb'], params['spade_s']['bgb'],
                           stats_x, apply_relu=not use_original_resblk)
        x_shortcut = conv3x3(s, params['conv_s_w'], None)             # bias=False
    else:
        x_shortcut = x_p

    h = spade_modulate(x_p, shared_pad, SPADE_HEAD_0,
                       params['spade_0']['wgb'], params['spade_0']['bgb'],
                       stats_x, apply_relu=True)
    # conv_0 with BatchNorm pass-1 fused into its epilogue (no extra read of h).
    h, h_sums = conv3x3(h, params['conv_0_w'], params['conv_0_b'], emit_stats=True)
    n_, hh, ww, _ = h.shape
    stats_h = _finalize_bn_stats(h_sums, float(n_ * hh * ww), eps)
    h = spade_modulate(h, shared_pad, SPADE_HEAD_1,
                       params['spade_1']['wgb'], params['spade_1']['bgb'],
                       stats_h, apply_relu=True)
    out = conv3x3(h, params['conv_1_w'], params['conv_1_b'],
                  residual=x_shortcut)                                 # x_res + x_shortcut
    out = out[..., :params['out_ch']].astype(jnp.float32)             # drop channel padding
    return jnp.transpose(out, (0, 3, 1, 2))


if __name__ == "__main__":
    N, in_ch, out_ch, mask_ch, hidden_ch = 2, 4, 8, 3, 32
    H = W = 16

    key = jax.random.PRNGKey(0)
    kx, km, kp = jax.random.split(key, 3)
    x = jax.random.normal(kx, (N, in_ch, H, W), jnp.float32)       # NCHW
    mask = jax.random.normal(km, (N, mask_ch, H, W), jnp.float32)  # NCHW
    params = init_params(kp, in_ch, out_ch, mask_ch, hidden_ch)

    out = spade_resblk_forward(x, mask, params,
                               learn_shortcut=(in_ch != out_ch),
                               use_original_resblk=True)
    jax.block_until_ready(out)
    assert out.shape == (N, out_ch, H, W)
    assert jnp.all(jnp.isfinite(out))
    print("KERNEL_OK")
</pallas_src>

<mosaic_0001>
module attributes {stable_mosaic.version = 11 : i64} {
  func.func @_conv3x3_kernel(%arg0: i32, %arg1: i32, %arg2: memref<1x16x18x128xbf16, #tpu.memory_space<vmem>>, %arg3: memref<1x1x18x128xbf16, #tpu.memory_space<vmem>>, %arg4: memref<1x1x18x128xbf16, #tpu.memory_space<vmem>>, %arg5: memref<1152x384xbf16, #tpu.memory_space<vmem>>, %arg6: memref<1x384xf32, #tpu.memory_space<vmem>>, %arg7: memref<1x16x16x384xbf16, #tpu.memory_space<vmem>>) attributes {dimension_semantics = [#tpu.dimension_semantics<parallel>, #tpu.dimension_semantics<parallel>], iteration_bounds = array<i64: 2, 1>, scalar_prefetch = 0 : i64, scratch_operands = 0 : i64, tpu.core_type = #tpu.core_type<tc>, window_params = [{transform_indices = @transform_0, window_bounds = array<i64: 1, 16, 18, 128>}, {transform_indices = @transform_1, window_bounds = array<i64: 1, 1, 18, 128>}, {transform_indices = @transform_2, window_bounds = array<i64: 1, 1, 18, 128>}, {pipeline_mode = #tpu.pipeline_mode<synchronous>, transform_indices = @transform_3, window_bounds = array<i64: 1152, 384>}, {pipeline_mode = #tpu.pipeline_mode<synchronous>, transform_indices = @transform_4, window_bounds = array<i64: 1, 384>}, {transform_indices = @transform_5, window_bounds = array<i64: 1, 16, 16, 384>}]} {
    %c0 = arith.constant 0 : index
    %c0_0 = arith.constant 0 : index
    %c0_1 = arith.constant 0 : index
    %c0_2 = arith.constant 0 : index
    %0 = vector.load %arg2[%c0, %c0_0, %c0_1, %c0_2] : memref<1x16x18x128xbf16, #tpu.memory_space<vmem>>, vector<1x16x18x128xbf16>
    %1 = vector.shape_cast %0 : vector<1x16x18x128xbf16> to vector<16x18x128xbf16>
    %c0_3 = arith.constant 0 : index
    %c0_4 = arith.constant 0 : index
    %c0_5 = arith.constant 0 : index
    %c0_6 = arith.constant 0 : index
    %2 = vector.load %arg3[%c0_3, %c0_4, %c0_5, %c0_6] : memref<1x1x18x128xbf16, #tpu.memory_space<vmem>>, vector<1x1x18x128xbf16>
    %3 = vector.shape_cast %2 : vector<1x1x18x128xbf16> to vector<1x18x128xbf16>
    %c0_7 = arith.constant 0 : index
    %c0_8 = arith.constant 0 : index
    %c0_9 = arith.constant 0 : index
    %c0_10 = arith.constant 0 : index
    %4 = vector.load %arg4[%c0_7, %c0_8, %c0_9, %c0_10] : memref<1x1x18x128xbf16, #tpu.memory_space<vmem>>, vector<1x1x18x128xbf16>
    %5 = vector.shape_cast %4 : vector<1x1x18x128xbf16> to vector<1x18x128xbf16>
    %6 = tpu.concatenate %1, %3, %5 in 0 : vector<16x18x128xbf16>, vector<1x18x128xbf16>, vector<1x18x128xbf16> -> vector<18x18x128xbf16>
    %cst = arith.constant 0.000000e+00 : f32
    %7 = vector.broadcast %cst : f32 to vector<256x384xf32>
    %8 = vector.extract_strided_slice %6 {offsets = [0, 0, 0], sizes = [16, 16, 128], strides = [1, 1, 1]} : vector<18x18x128xbf16> to vector<16x16x128xbf16>
    %9 = vector.extract_strided_slice %6 {offsets = [0, 1, 0], sizes = [16, 16, 128], strides = [1, 1, 1]} : vector<18x18x128xbf16> to vector<16x16x128xbf16>
    %10 = vector.extract_strided_slice %6 {offsets = [0, 2, 0], sizes = [16, 16, 128], strides = [1, 1, 1]} : vector<18x18x128xbf16> to vector<16x16x128xbf16>
    %11 = tpu.concatenate %8, %9, %10 in 2 : vector<16x16x128xbf16>, vector<16x16x128xbf16>, vector<16x16x128xbf16> -> vector<16x16x384xbf16>
    %12 = vector.shape_cast %11 : vector<16x16x384xbf16> to vector<256x384xbf16>
    %c0_11 = arith.constant 0 : index
    %c0_12 = arith.constant 0 : index
    %13 = vector.load %arg5[%c0_11, %c0_12] : memref<1152x384xbf16, #tpu.memory_space<vmem>>, vector<384x384xbf16>
    %cst_13 = arith.constant dense<0.000000e+00> : vector<256x384xf32>
    %14 = tpu.matmul %12, %13, %cst_13 {dimension_numbers = #tpu.dot_dimension_numbers<[1], [0], [0], [1], [0, 0, 1, 1], [], []>} : vector<256x384xbf16>, vector<384x384xbf16>, vector<256x384xf32> -> vector<256x384xf32>
    %15 = arith.addf %7, %14 : vector<256x384xf32>
    %16 = vector.extract_strided_slice %6 {offsets = [1, 0, 0], sizes = [16, 16, 128], strides = [1, 1, 1]} : vector<18x18x128xbf16> to vector<16x16x128xbf16>
    %17 = vector.extract_strided_slice %6 {offsets = [1, 1, 0], sizes = [16, 16, 128], strides = [1, 1, 1]} : vector<18x18x128xbf16> to vector<16x16x128xbf16>
    %18 = vector.extract_strided_slice %6 {offsets = [1, 2, 0], sizes = [16, 16, 128], strides = [1, 1, 1]} : vector<18x18x128xbf16> to vector<16x16x128xbf16>
    %19 = tpu.concatenate %16, %17, %18 in 2 : vector<16x16x128xbf16>, vector<16x16x128xbf16>, vector<16x16x128xbf16> -> vector<16x16x384xbf16>
    %20 = vector.shape_cast %19 : vector<16x16x384xbf16> to vector<256x384xbf16>
    %c384 = arith.constant 384 : index
    %c0_14 = arith.constant 0 : index
    %21 = vector.load %arg5[%c384, %c0_14] : memref<1152x384xbf16, #tpu.memory_space<vmem>>, vector<384x384xbf16>
    %cst_15 = arith.constant dense<0.000000e+00> : vector<256x384xf32>
    %22 = tpu.matmul %20, %21, %cst_15 {dimension_numbers = #tpu.dot_dimension_numbers<[1], [0], [0], [1], [0, 0, 1, 1], [], []>} : vector<256x384xbf16>, vector<384x384xbf16>, vector<256x384xf32> -> vector<256x384xf32>
    %23 = arith.addf %15, %22 : vector<256x384xf32>
    %24 = vector.extract_strided_slice %6 {offsets = [2, 0, 0], sizes = [16, 16, 128], strides = [1, 1, 1]} : vector<18x18x128xbf16> to vector<16x16x128xbf16>
    %25 = vector.extract_strided_slice %6 {offsets = [2, 1, 0], sizes = [16, 16, 128], strides = [1, 1, 1]} : vector<18x18x128xbf16> to vector<16x16x128xbf16>
    %26 = vector.extract_strided_slice %6 {offsets = [2, 2, 0], sizes = [16, 16, 128], strides = [1, 1, 1]} : vector<18x18x128xbf16> to vector<16x16x128xbf16>
    %27 = tpu.concatenate %24, %25, %26 in 2 : vector<16x16x128xbf16>, vector<16x16x128xbf16>, vector<16x16x128xbf16> -> vector<16x16x384xbf16>
    %28 = vector.shape_cast %27 : vector<16x16x384xbf16> to vector<256x384xbf16>
    %c768 = arith.constant 768 : index
    %c0_16 = arith.constant 0 : index
    %29 = vector.load %arg5[%c768, %c0_16] : memref<1152x384xbf16, #tpu.memory_space<vmem>>, vector<384x384xbf16>
    %cst_17 = arith.constant dense<0.000000e+00> : vector<256x384xf32>
    %30 = tpu.matmul %28, %29, %cst_17 {dimension_numbers = #tpu.dot_dimension_numbers<[1], [0], [0], [1], [0, 0, 1, 1], [], []>} : vector<256x384xbf16>, vector<384x384xbf16>, vector<256x384xf32> -> vector<256x384xf32>
    %31 = arith.addf %23, %30 : vector<256x384xf32>
    %c0_18 = arith.constant 0 : index
    %c0_19 = arith.constant 0 : index
    %32 = vector.load %arg6[%c0_18, %c0_19] : memref<1x384xf32, #tpu.memory_space<vmem>>, vector<1x384xf32>
    %33 = vector.broadcast %32 : vector<1x384xf32> to vector<256x384xf32>
    %34 = arith.addf %31, %33 : vector<256x384xf32>
    %cst_20 = arith.constant 0.000000e+00 : f32
    %35 = vector.broadcast %cst_20 : f32 to vector<256x384xf32>
    %36 = arith.maximumf %34, %35 : vector<256x384xf32>
    %37 = vector.shape_cast %36 : vector<256x384xf32> to vector<16x16x384xf32>
    %38 = arith.truncf %37 : vector<16x16x384xf32> to vector<16x16x384xbf16>
    %c0_21 = arith.constant 0 : index
    %c0_22 = arith.constant 0 : index
    %c0_23 = arith.constant 0 : index
    %c0_24 = arith.constant 0 : index
    %39 = vector.load %arg7[%c0_21, %c0_22, %c0_23, %c0_24] : memref<1x16x16x384xbf16, #tpu.memory_space<vmem>>, vector<1x16x16x384xbf16>
    %40 = vector.shape_cast %39 : vector<1x16x16x384xbf16> to vector<16x16x384xbf16>
    %41 = vector.shape_cast %38 : vector<16x16x384xbf16> to vector<1x16x16x384xbf16>
    tpu.vector_store %arg7[%c0_21, %c0_22, %c0_23, %c0_24], %41 {strides = array<i32>} : memref<1x16x16x384xbf16, #tpu.memory_space<vmem>>, vector<1x16x16x384xbf16>,
    return
  }
  func.func @transform_0(%arg0: i32, %arg1: i32) -> (i32, i32, i32, i32) {
    %c0_i32 = arith.constant 0 : i32
    %c0_i32_0 = arith.constant 0 : i32
    %c0_i32_1 = arith.constant 0 : i32
    return %arg0, %arg1, %c0_i32, %c0_i32_0 : i32, i32, i32, i32
  }
  func.func @transform_1(%arg0: i32, %arg1: i32) -> (i32, i32, i32, i32) {
    %c1_i32 = arith.constant 1 : i32
    %0 = arith.addi %arg1, %c1_i32 : i32
    %c16_i32 = arith.constant 16 : i32
    %1 = arith.muli %0, %c16_i32 : i32
    %c0_i32 = arith.constant 0 : i32
    %c0_i32_0 = arith.constant 0 : i32
    %c0_i32_1 = arith.constant 0 : i32
    return %arg0, %1, %c0_i32, %c0_i32_0 : i32, i32, i32, i32
  }
  func.func @transform_2(%arg0: i32, %arg1: i32) -> (i32, i32, i32, i32) {
    %c1_i32 = arith.constant 1 : i32
    %0 = arith.addi %arg1, %c1_i32 : i32
    %c16_i32 = arith.constant 16 : i32
    %1 = arith.muli %0, %c16_i32 : i32
    %c1_i32_0 = arith.constant 1 : i32
    %2 = arith.addi %1, %c1_i32_0 : i32
    %c0_i32 = arith.constant 0 : i32
    %c0_i32_1 = arith.constant 0 : i32
    %c0_i32_2 = arith.constant 0 : i32
    return %arg0, %2, %c0_i32, %c0_i32_1 : i32, i32, i32, i32
  }
  func.func @transform_3(%arg0: i32, %arg1: i32) -> (i32, i32) {
    %c0_i32 = arith.constant 0 : i32
    %c0_i32_0 = arith.constant 0 : i32
    %c0_i32_1 = arith.constant 0 : i32
    return %c0_i32, %c0_i32_0 : i32, i32
  }
  func.func @transform_4(%arg0: i32, %arg1: i32) -> (i32, i32) {
    %c0_i32 = arith.constant 0 : i32
    %c0_i32_0 = arith.constant 0 : i32
    %c0_i32_1 = arith.constant 0 : i32
    return %c0_i32, %c0_i32_0 : i32, i32
  }
  func.func @transform_5(%arg0: i32, %arg1: i32) -> (i32, i32, i32, i32) {
    %c0_i32 = arith.constant 0 : i32
    %c0_i32_0 = arith.constant 0 : i32
    %c0_i32_1 = arith.constant 0 : i32
    return %arg0, %arg1, %c0_i32, %c0_i32_0 : i32, i32, i32, i32
  }
}

</mosaic_0001>

<llo_original>
// kernel: tpu_custom_call.1
$region0: #{tpu_custom_call.1}
  #allocation0 [shape = 'u32[]', space=smem, size = 0x4, offset = 0x4, fixed_abs, tag = 'smem constant byte address 0x4 - core index']
  #allocation1 [shape = 'u32[144,128]{1,0:T(1,128)}', space=vmem, size = 0x12000, scoped, tag = 'internal scratch']
  %s0 = inlined_call_operand.vmem [shape: bf16[2,18,18,128], index: 0, kind: input, shape index: {}]
  %s1 = inlined_call_operand.vmem [shape: bf16[2,18,18,128], index: 1, kind: input, shape index: {}]
  %s2 = inlined_call_operand.vmem [shape: bf16[2,18,18,128], index: 2, kind: input, shape index: {}]
  %s3 = inlined_call_operand.vmem [shape: bf16[1152,384], index: 3, kind: input, shape index: {}]
  %s4 = inlined_call_operand.vmem [shape: f32[1,384], index: 4, kind: input, shape index: {}]
  %s5 = inlined_call_operand.hbm [shape: bf16[2,16,16,384], index: 5, kind: output, shape index: {}]
  %s6 = sld [smem:[#allocation0]]
  $region53: #{tpu_custom_call.1} parent=0
    _
  %s8 = ssub.s32 1, %s6
  %s9 = scalar_select 0, %s8, %s6
  $region1: #{tpu_custom_call.1} parent=0
    #allocation2 [shape = 'u8[393216]{0}', space=vmem, size = 0x60000, scoped, tag = 'output window, operand 0']
    #allocation3 [shape = 's32[2]{0}', space=sflag, size = 0x8, scoped, tag = 'scoped memory for tpu_custom_call.1']
    %10 = vsyncpa [#allocation3], 0
    %s11 = scalar_lea.sflag [#allocation3], 1
    %12 = vsyncpa %s11, 0
    loop: start=0, step=1, limit=4
    $region2: #{tpu_custom_call.1} parent=1 // loop_pre_header
      _
    $region3: #{tpu_custom_call.1} parent=1 // loop_header
      %s14 = sphi 0, %s18
      %p15 = scmp.ge.s32.totalorder %s14, 4
      %s21 = sphi 0, %s33
      %s22 = sphi 0, %s29
      %s23 = sphi 0, %s21
      %s24 = sphi 0, %s22
      %s25 = sphi 0, %s23
      %s26 = sphi 0, %s24
      %s38 = sphi 0, %s40
      %s41 = sphi 0, %s38
      %s42 = sphi 0, %s41
      %s58 = sphi 0, %s42
      %s70 = sphi 0, %s72
      %s73 = sphi 0, %s70
      %s74 = sphi 0, %s73
      %s90 = sphi 0, %s74
      %s104 = sphi 0, %s106
      %s107 = sphi 0, %s104
      %s108 = sphi 0, %s107
      %s124 = sphi 0, %s108
      %s128 = sphi 0, %s128
      %s130 = sphi 0, %s128
      %s131 = sphi 0, %s130
      %s145 = sphi 0, %s131
      %s149 = sphi 0, %s149
      %s151 = sphi 0, %s149
      %s152 = sphi 0, %s151
      %s166 = sphi 0, %s152
      %s174 = sphi 0, %s176
      %s177 = sphi 0, %s174
      %s178 = sphi 0, %s177
      %s194 = sphi 0, %s178
    $region4: #{tpu_custom_call.1} parent=1 // loop_header_branch
      %17 = sbr.rel (%p15) target = $region8
    $region5: #{tpu_custom_call.1} parent=1 // loop_body
      %s19 = ssub.s32 %s14, 1
      %s20 = ssub.s32 %s14, 2
      %s27 = sadd.s32 1, %s22
      %p28 = scmp.ge.s32.totalorder %s27, 1
      %s29 = scalar_select %p28, 0, %s27
      %s30 = sadd.s32 1, %s21
      %s31 = scalar_select %p28, %s30, %s21
      %p32 = scmp.ge.s32.totalorder %s31, 2
      %s33 = scalar_select %p32, 0, %s31
      %s34 = ssub.s32 %s21, %s33
      %s35 = ssub.s32 %s22, %s29
      %s36 = sor.u32 %s34, %s35
      %p37 = scmp.eq.s32.totalorder %s36, 0
      %s39 = sadd.s32 %s38, 1
      %s40 = scalar_select %p37, %s38, %s39
      %p43 = pneg %p37
      %p44 = scmp.eq.s32.totalorder %s14, 1
      %p45 = por %p43, %p44
      %p46 = scmp.ne.s32.totalorder %s38, %s41
      %p47 = scmp.eq.s32.totalorder %s14, 0
      %p48 = por %p46, %p47
      %p49 = scmp.ne.s32.totalorder %s38, %s41
      %p50 = scmp.eq.s32.totalorder %s19, 1
      %p51 = por %p49, %p50
      %p52 = scmp.ne.s32.totalorder %s41, %s42
      %p53 = scmp.eq.s32.totalorder %s19, 0
      %p54 = por %p52, %p53
      %p55 = scmp.ne.s32.totalorder %s41, %s42
      %p56 = scmp.eq.s32.totalorder %s20, 1
      %p57 = por %p55, %p56
      %p59 = scmp.ne.s32.totalorder %s42, %s58
      %p60 = scmp.eq.s32.totalorder %s20, 0
      %p61 = por %p59, %p60
      %s62 = sadd.s32 %s22, 1
      %s63 = smul.u32 %s62, 16
      %s64 = sadd.s32 %s29, 1
      %s65 = smul.u32 %s64, 16
      %s66 = ssub.s32 %s21, %s33
      %s67 = ssub.s32 %s63, %s65
      %s68 = sor.u32 %s66, %s67
      %p69 = scmp.eq.s32.totalorder %s68, 0
      %s71 = sadd.s32 %s70, 1
      %s72 = scalar_select %p69, %s70, %s71
      %p75 = pneg %p69
      %p76 = scmp.eq.s32.totalorder %s14, 1
      %p77 = por %p75, %p76
      %p78 = scmp.ne.s32.totalorder %s70, %s73
      %p79 = scmp.eq.s32.totalorder %s14, 0
      %p80 = por %p78, %p79
      %p81 = scmp.ne.s32.totalorder %s70, %s73
      %p82 = scmp.eq.s32.totalorder %s19, 1
      %p83 = por %p81, %p82
      %p84 = scmp.ne.s32.totalorder %s73, %s74
      %p85 = scmp.eq.s32.totalorder %s19, 0
      %p86 = por %p84, %p85
      %p87 = scmp.ne.s32.totalorder %s73, %s74
      %p88 = scmp.eq.s32.totalorder %s20, 1
      %p89 = por %p87, %p88
      %p91 = scmp.ne.s32.totalorder %s74, %s90
      %p92 = scmp.eq.s32.totalorder %s20, 0
      %p93 = por %p91, %p92
      %s94 = sadd.s32 %s22, 1
      %s95 = smul.u32 %s94, 16
      %s96 = sadd.s32 %s95, 1
      %s97 = sadd.s32 %s29, 1
      %s98 = smul.u32 %s97, 16
      %s99 = sadd.s32 %s98, 1
      %s100 = ssub.s32 %s21, %s33
      %s101 = ssub.s32 %s96, %s99
      %s102 = sor.u32 %s100, %s101
      %p103 = scmp.eq.s32.totalorder %s102, 0
      %s105 = sadd.s32 %s104, 1
      %s106 = scalar_select %p103, %s104, %s105
      %p109 = pneg %p103
      %p110 = scmp.eq.s32.totalorder %s14, 1
      %p111 = por %p109, %p110
      %p112 = scmp.ne.s32.totalorder %s104, %s107
      %p113 = scmp.eq.s32.totalorder %s14, 0
      %p114 = por %p112, %p113
      %p115 = scmp.ne.s32.totalorder %s104, %s107
      %p116 = scmp.eq.s32.totalorder %s19, 1
      %p117 = por %p115, %p116
      %p118 = scmp.ne.s32.totalorder %s107, %s108
      %p119 = scmp.eq.s32.totalorder %s19, 0
      %p120 = por %p118, %p119
      %p121 = scmp.ne.s32.totalorder %s107, %s108
      %p122 = scmp.eq.s32.totalorder %s20, 1
      %p123 = por %p121, %p122
      %p125 = scmp.ne.s32.totalorder %s108, %s124
      %p126 = scmp.eq.s32.totalorder %s20, 0
      %p127 = por %p125, %p126
      %s129 = sadd.s32 %s128, 1
      %p132 = scmp.eq.s32.totalorder %s14, 1
      %p133 = scmp.ne.s32.totalorder %s128, %s130
      %p134 = scmp.eq.s32.totalorder %s14, 0
      %p135 = por %p133, %p134
      %p136 = scmp.ne.s32.totalorder %s128, %s130
      %p137 = scmp.eq.s32.totalorder %s19, 1
      %p138 = por %p136, %p137
      %p139 = scmp.ne.s32.totalorder %s130, %s131
      %p140 = scmp.eq.s32.totalorder %s19, 0
      %p141 = por %p139, %p140
      %p142 = scmp.ne.s32.totalorder %s130, %s131
      %p143 = scmp.eq.s32.totalorder %s20, 1
      %p144 = por %p142, %p143
      %p146 = scmp.ne.s32.totalorder %s131, %s145
      %p147 = scmp.eq.s32.totalorder %s20, 0
      %p148 = por %p146, %p147
      %s150 = sadd.s32 %s149, 1
      %p153 = scmp.eq.s32.totalorder %s14, 1
      %p154 = scmp.ne.s32.totalorder %s149, %s151
      %p155 = scmp.eq.s32.totalorder %s14, 0
      %p156 = por %p154, %p155
      %p157 = scmp.ne.s32.totalorder %s149, %s151
      %p158 = scmp.eq.s32.totalorder %s19, 1
      %p159 = por %p157, %p158
      %p160 = scmp.ne.s32.totalorder %s151, %s152
      %p161 = scmp.eq.s32.totalorder %s19, 0
      %p162 = por %p160, %p161
      %p163 = scmp.ne.s32.totalorder %s151, %s152
      %p164 = scmp.eq.s32.totalorder %s20, 1
      %p165 = por %p163, %p164
      %p167 = scmp.ne.s32.totalorder %s152, %s166
      %p168 = scmp.eq.s32.totalorder %s20, 0
      %p169 = por %p167, %p168
      %s170 = ssub.s32 %s21, %s33
      %s171 = ssub.s32 %s22, %s29
      %s172 = sor.u32 %s170, %s171
      %p173 = scmp.eq.s32.totalorder %s172, 0
      %s175 = sadd.s32 %s174, 1
      %s176 = scalar_select %p173, %s174, %s175
      %p179 = pneg %p173
      %p180 = scmp.eq.s32.totalorder %s14, 1
      %p181 = por %p179, %p180
      %p182 = scmp.ne.s32.totalorder %s174, %s177
      %p183 = scmp.eq.s32.totalorder %s14, 0
      %p184 = por %p182, %p183
      %p185 = scmp.ne.s32.totalorder %s174, %s177
      %p186 = scmp.eq.s32.totalorder %s19, 1
      %p187 = por %p185, %p186
      %p188 = scmp.ne.s32.totalorder %s177, %s178
      %p189 = scmp.eq.s32.totalorder %s19, 0
      %p190 = por %p188, %p189
      %p191 = scmp.ne.s32.totalorder %s177, %s178
      %p192 = scmp.eq.s32.totalorder %s20, 1
      %p193 = por %p191, %p192
      %p195 = scmp.ne.s32.totalorder %s178, %s194
      %p196 = scmp.eq.s32.totalorder %s20, 0
      %p197 = por %p195, %p196
      %p198 = scmp.le.s32.totalorder 1, %s14
      %p199 = scmp.lt.s32.totalorder %s14, 3
      %p200 = pnand %p198, %p199
      %p201 = pneg %p200
      // Predicated region
      $region9: #{tpu_custom_call.1} parent=5 // pred_check
        _
      $region10: #{tpu_custom_call.1} parent=5 // pred_check_branch
        %203 = sbr.rel (%p200) target = $region12
      $region11: #{tpu_custom_call.1} parent=5 // pred_region
        %s204 = ssub.s32 %s14, 1
        // Predicated region
        $region13: #{tpu_custom_call.1} parent=11 // pred_check
          %p205 = pneg %p141
        $region14: #{tpu_custom_call.1} parent=11 // pred_check_branch
          %207 = sbr.rel (%p205) target = $region16
        $region15: #{tpu_custom_call.1} parent=11 // pred_region
          _
        $region16: #{tpu_custom_call.1} parent=11 // pred_fallthru
          _
        // Predicated region
        $region17: #{tpu_custom_call.1} parent=11 // pred_check
          %p208 = pneg %p162
        $region18: #{tpu_custom_call.1} parent=11 // pred_check_branch
          %210 = sbr.rel (%p208) target = $region20
        $region19: #{tpu_custom_call.1} parent=11 // pred_region
          _
        $region20: #{tpu_custom_call.1} parent=11 // pred_fallthru
          _
      $region12: #{tpu_custom_call.1} parent=5 // pred_fallthru
        _
      %p211 = scmp.lt.s32.totalorder %s14, 2
      // Predicated region
      $region21: #{tpu_custom_call.1} parent=5 // pred_check
        %p212 = pneg %p211
      $region22: #{tpu_custom_call.1} parent=5 // pred_check_branch
        %214 = sbr.rel (%p212) target = $region24
      $region23: #{tpu_custom_call.1} parent=5 // pred_region
        // Predicated region
        $region25: #{tpu_custom_call.1} parent=23 // pred_check
          %p215 = pneg %p48
        $region26: #{tpu_custom_call.1} parent=23 // pred_check_branch
          %217 = sbr.rel (%p215) target = $region28
        $region27: #{tpu_custom_call.1} parent=23 // pred_region
          %s218 = smul.u32 16, %s22
          %s219 = ssub.s32 18, %s218
          %p220 = scmp.lt.s32.totalorder %s219, 16
          %s221 = scalar_select %p220, %s219, 16
          %s222 = smul.u32 64, %s221
          %s223 = smul.u32 %s222, 3
          %p224 = scmp.lt.s32.totalorder %s21, 1
          %s225 = scalar_select %p224, %s21, 1
          %p226 = scmp.lt.s32.totalorder %s218, 17
          %s227 = scalar_select %p226, %s218, 17
          %s228 = smul.addr %s227, 3
          %s229 = smul.addr %s225, 54
          %s230 = sadd.s32 %s228, %s229
          %s231 = smul.addr %s230, 4
          %s232 = scalar_lea.vmem %s0, %s231
          %s233 = smul.u32 16, %s22
          %s234 = ssub.s32 18, %s233
          %p235 = scmp.lt.s32.totalorder %s234, 16
          %s236 = scalar_select %p235, %s234, 16
          %s237 = smul.u32 64, %s236
          %s238 = smul.u32 %s237, 3
        $region28: #{tpu_custom_call.1} parent=23 // pred_fallthru
          _
        // Predicated region
        $region29: #{tpu_custom_call.1} parent=23 // pred_check
          %p239 = pneg %p80
        $region30: #{tpu_custom_call.1} parent=23 // pred_check_branch
          %241 = sbr.rel (%p239) target = $region32
        $region31: #{tpu_custom_call.1} parent=23 // pred_region
          %s242 = sadd.s32 %s22, 1
          %s243 = smul.u32 %s242, 16
          %p244 = scmp.lt.s32.totalorder %s21, 1
          %s245 = scalar_select %p244, %s21, 1
          %p246 = scmp.lt.s32.totalorder %s243, 17
          %s247 = scalar_select %p246, %s243, 17
          %s248 = smul.addr %s247, 3
          %s249 = smul.addr %s245, 54
          %s250 = sadd.s32 %s248, %s249
          %s251 = smul.addr %s250, 4
          %s252 = scalar_lea.vmem %s1, %s251
          %s253 = sadd.s32 %s22, 1
          %s254 = smul.u32 %s253, 16
        $region32: #{tpu_custom_call.1} parent=23 // pred_fallthru
          _
        // Predicated region
        $region33: #{tpu_custom_call.1} parent=23 // pred_check
          %p255 = pneg %p114
        $region34: #{tpu_custom_call.1} parent=23 // pred_check_branch
          %257 = sbr.rel (%p255) target = $region36
        $region35: #{tpu_custom_call.1} parent=23 // pred_region
          %s258 = sadd.s32 %s22, 1
          %s259 = smul.u32 %s258, 16
          %s260 = sadd.s32 %s259, 1
          %p261 = scmp.lt.s32.totalorder %s21, 1
          %s262 = scalar_select %p261, %s21, 1
          %p263 = scmp.lt.s32.totalorder %s260, 17
          %s264 = scalar_select %p263, %s260, 17
          %s265 = smul.addr %s264, 3
          %s266 = smul.addr %s262, 54
          %s267 = sadd.s32 %s265, %s266
          %s268 = smul.addr %s267, 4
          %s269 = scalar_lea.vmem %s2, %s268
          %s270 = sadd.s32 %s22, 1
          %s271 = smul.u32 %s270, 16
          %s272 = sadd.s32 %s271, 1
        $region36: #{tpu_custom_call.1} parent=23 // pred_fallthru
          _
      $region24: #{tpu_custom_call.1} parent=5 // pred_fallthru
        _
      %p273 = scmp.le.s32.totalorder 1, %s14
      %p274 = scmp.lt.s32.totalorder %s14, 3
      %p275 = pnand %p273, %p274
      %p276 = pneg %p275
      // Predicated region
      $region37: #{tpu_custom_call.1} parent=5 // pred_check
        _
      $region38: #{tpu_custom_call.1} parent=5 // pred_check_branch
        %278 = sbr.rel (%p275) target = $region40
      $region39: #{tpu_custom_call.1} parent=5 // pred_region
        %s279 = ssub.s32 %s14, 1
        %s280 = smul.u32 16, %s24
        %s281 = ssub.s32 18, %s280
        %p282 = scmp.lt.s32.totalorder %s281, 16
        %s283 = scalar_select %p282, %s281, 16
        %s284 = smul.u32 64, %s283
        %s285 = smul.u32 %s284, 3
        %p286 = scmp.lt.s32.totalorder %s23, 1
        %s287 = scalar_select %p286, %s23, 1
        %p288 = scmp.lt.s32.totalorder %s280, 17
        %s289 = scalar_select %p288, %s280, 17
        %s290 = smul.addr %s289, 3
        %s291 = smul.addr %s287, 54
        %s292 = sadd.s32 %s290, %s291
        %s293 = smul.addr %s292, 4
        %s294 = scalar_lea.vmem %s0, %s293
        %p295 = pneg %p54
        %p296 = pneg %p51
        %s297 = sadd.s32 %s24, 1
        %s298 = smul.u32 %s297, 16
        %p299 = scmp.lt.s32.totalorder %s23, 1
        %s300 = scalar_select %p299, %s23, 1
        %p301 = scmp.lt.s32.totalorder %s298, 17
        %s302 = scalar_select %p301, %s298, 17
        %s303 = smul.addr %s302, 3
        %s304 = smul.addr %s300, 54
        %s305 = sadd.s32 %s303, %s304
        %s306 = smul.addr %s305, 4
        %s307 = scalar_lea.vmem %s1, %s306
        %p308 = pneg %p86
        %p309 = pneg %p83
        %s310 = sadd.s32 %s24, 1
        %s311 = smul.u32 %s310, 16
        %s312 = sadd.s32 %s311, 1
        %p313 = scmp.lt.s32.totalorder %s23, 1
        %s314 = scalar_select %p313, %s23, 1
        %p315 = scmp.lt.s32.totalorder %s312, 17
        %s316 = scalar_select %p315, %s312, 17
        %s317 = smul.addr %s316, 3
        %s318 = smul.addr %s314, 54
        %s319 = sadd.s32 %s317, %s318
        %s320 = smul.addr %s319, 4
        %s321 = scalar_lea.vmem %s2, %s320
        %p322 = pneg %p120
        %p323 = pneg %p117
        %p324 = pneg %p141
        %p325 = pneg %p138
        %p326 = pneg %p162
        %p327 = pneg %p159
        %p328 = pneg %p190
        %p329 = pneg %p187
        %s330 = sand.u32 %s177, 1
        %s331 = scalar_lea.sflag [#allocation3], %s330
        %s332 = sand.u32 %s177, 1
        %s333 = smul.addr %s332, 384
        %s334 = scalar_lea.vmem [#allocation2], %s333
        %s335 = smul.u32 16, %s24
        %s336 = ssub.s32 18, %s335
        %p337 = scmp.lt.s32.totalorder %s336, 16
        %s338 = scalar_select %p337, %s336, 16
        %s339 = smul.u32 64, %s338
        %s340 = smul.u32 %s339, 3
        %p341 = scmp.lt.s32.totalorder %s23, 1
        %s342 = scalar_select %p341, %s23, 1
        %p343 = scmp.lt.s32.totalorder %s335, 17
        %s344 = scalar_select %p343, %s335, 17
        %s345 = smul.addr %s344, 3
        %s346 = smul.addr %s342, 54
        %s347 = sadd.s32 %s345, %s346
        %s348 = smul.addr %s347, 4
        %s349 = scalar_lea.vmem %s0, %s348
        %s350 = smul.u32 16, %s24
        %s351 = ssub.s32 18, %s350
        %p352 = scmp.lt.s32.totalorder %s351, 16
        %s353 = scalar_select %p352, %s351, 16
        %s354 = smul.u32 64, %s353
        %s355 = smul.u32 %s354, 3
        %s356 = sadd.s32 %s24, 1
        %s357 = smul.u32 %s356, 16
        %p358 = scmp.lt.s32.totalorder %s23, 1
        %s359 = scalar_select %p358, %s23, 1
        %p360 = scmp.lt.s32.totalorder %s357, 17
        %s361 = scalar_select %p360, %s357, 17
        %s362 = smul.addr %s361, 3
        %s363 = smul.addr %s359, 54
        %s364 = sadd.s32 %s362, %s363
        %s365 = smul.addr %s364, 4
        %s366 = scalar_lea.vmem %s1, %s365
        %s367 = sadd.s32 %s24, 1
        %s368 = smul.u32 %s367, 16
        %s369 = sadd.s32 %s24, 1
        %s370 = smul.u32 %s369, 16
        %s371 = sadd.s32 %s370, 1
        %p372 = scmp.lt.s32.totalorder %s23, 1
        %s373 = scalar_select %p372, %s23, 1
        %p374 = scmp.lt.s32.totalorder %s371, 17
        %s375 = scalar_select %p374, %s371, 17
        %s376 = smul.addr %s375, 3
        %s377 = smul.addr %s373, 54
        %s378 = sadd.s32 %s376, %s377
        %s379 = smul.addr %s378, 4
        %s380 = scalar_lea.vmem %s2, %s379
        %s381 = sadd.s32 %s24, 1
        %s382 = smul.u32 %s381, 16
        %s383 = sadd.s32 %s382, 1
        %s384 = smul.u32 16, %s24
        %v386 = vld [vmem:[%s349] sm:$0xf]
        %v387 = vld [vmem:[%s349 + $0x4] sm:$0xf]
        %v388 = vld [vmem:[%s349 + $0x8] sm:$0x1]
        %v389 = vld [vmem:[%s349 + $0xc] sm:$0xf]
        %v390 = vld [vmem:[%s349 + $0x10] sm:$0xf]
        %v391 = vld [vmem:[%s349 + $0x14] sm:$0x1]
        %v392 = vld [vmem:[%s349 + $0x18] sm:$0xf]
        %v393 = vld [vmem:[%s349 + $0x1c] sm:$0xf]
        %v394 = vld [vmem:[%s349 + $0x20] sm:$0x1]
        %v395 = vld [vmem:[%s349 + $0x24] sm:$0xf]
        %v396 = vld [vmem:[%s349 + $0x28] sm:$0xf]
        %v397 = vld [vmem:[%s349 + $0x2c] sm:$0x1]
        %v398 = vld [vmem:[%s349 + $0x30] sm:$0xf]
        %v399 = vld [vmem:[%s349 + $0x34] sm:$0xf]
        %v400 = vld [vmem:[%s349 + $0x38] sm:$0x1]
        %v401 = vld [vmem:[%s349 + $0x3c] sm:$0xf]
        %v402 = vld [vmem:[%s349 + $0x40] sm:$0xf]
        %v403 = vld [vmem:[%s349 + $0x44] sm:$0x1]
        %v404 = vld [vmem:[%s349 + $0x48] sm:$0xf]
        %v405 = vld [vmem:[%s349 + $0x4c] sm:$0xf]
        %v406 = vld [vmem:[%s349 + $0x50] sm:$0x1]
        %v407 = vld [vmem:[%s349 + $0x54] sm:$0xf]
        %v408 = vld [vmem:[%s349 + $0x58] sm:$0xf]
        %v409 = vld [vmem:[%s349 + $0x5c] sm:$0x1]
        %v410 = vld [vmem:[%s349 + $0x60] sm:$0xf]
        %v411 = vld [vmem:[%s349 + $0x64] sm:$0xf]
        %v412 = vld [vmem:[%s349 + $0x68] sm:$0x1]
        %v413 = vld [vmem:[%s349 + $0x6c] sm:$0xf]
        %v414 = vld [vmem:[%s349 + $0x70] sm:$0xf]
        %v415 = vld [vmem:[%s349 + $0x74] sm:$0x1]
        %v416 = vld [vmem:[%s349 + $0x78] sm:$0xf]
        %v417 = vld [vmem:[%s349 + $0x7c] sm:$0xf]
        %v418 = vld [vmem:[%s349 + $0x80] sm:$0x1]
        %v419 = vld [vmem:[%s349 + $0x84] sm:$0xf]
        %v420 = vld [vmem:[%s349 + $0x88] sm:$0xf]
        %v421 = vld [vmem:[%s349 + $0x8c] sm:$0x1]
        %v422 = vld [vmem:[%s349 + $0x90] sm:$0xf]
        %v423 = vld [vmem:[%s349 + $0x94] sm:$0xf]
        %v424 = vld [vmem:[%s349 + $0x98] sm:$0x1]
        %v425 = vld [vmem:[%s349 + $0x9c] sm:$0xf]
        %v426 = vld [vmem:[%s349 + $0xa0] sm:$0xf]
        %v427 = vld [vmem:[%s349 + $0xa4] sm:$0x1]
        %v428 = vld [vmem:[%s349 + $0xa8] sm:$0xf]
        %v429 = vld [vmem:[%s349 + $0xac] sm:$0xf]
        %v430 = vld [vmem:[%s349 + $0xb0] sm:$0x1]
        %v431 = vld [vmem:[%s349 + $0xb4] sm:$0xf]
        %v432 = vld [vmem:[%s349 + $0xb8] sm:$0xf]
        %v433 = vld [vmem:[%s349 + $0xbc] sm:$0x1]
        %v434 = vld [vmem:[%s366] sm:$0xf]
        %v435 = vld [vmem:[%s366 + $0x4] sm:$0xf]
        %v436 = vld [vmem:[%s366 + $0x8] sm:$0x1]
        %v437 = vld [vmem:[%s380] sm:$0xf]
        %v438 = vld [vmem:[%s380 + $0x4] sm:$0xf]
        %v439 = vld [vmem:[%s380 + $0x8] sm:$0x1]
        %v472 = vunpack.c.l.b16 %v386
        %v473 = vunpack.c.l.b16 %v387
        %v474 = vunpack.c.l.b16 %v389
        %v475 = vunpack.c.l.b16 %v390
        %v476 = vunpack.c.l.b16 %v392
        %v477 = vunpack.c.l.b16 %v393
        %v478 = vunpack.c.l.b16 %v395
        %v479 = vunpack.c.l.b16 %v396
        %v480 = vunpack.c.l.b16 %v398
        %v481 = vunpack.c.l.b16 %v399
        %v482 = vunpack.c.l.b16 %v401
        %v483 = vunpack.c.l.b16 %v402
        %v484 = vunpack.c.l.b16 %v404
        %v485 = vunpack.c.l.b16 %v405
        %v486 = vunpack.c.l.b16 %v407
        %v487 = vunpack.c.l.b16 %v408
        %v488 = vunpack.c.l.b16 %v410
        %v489 = vunpack.c.l.b16 %v411
        %v490 = vunpack.c.l.b16 %v413
        %v491 = vunpack.c.l.b16 %v414
        %v492 = vunpack.c.l.b16 %v416
        %v493 = vunpack.c.l.b16 %v417
        %v494 = vunpack.c.l.b16 %v419
        %v495 = vunpack.c.l.b16 %v420
        %v496 = vunpack.c.l.b16 %v422
        %v497 = vunpack.c.l.b16 %v423
        %v498 = vunpack.c.l.b16 %v425
        %v499 = vunpack.c.l.b16 %v426
        %v500 = vunpack.c.l.b16 %v428
        %v501 = vunpack.c.l.b16 %v429
        %v502 = vunpack.c.l.b16 %v431
        %v503 = vunpack.c.l.b16 %v432
        %v504 = vpack.c.b16 %v473, %v472
        %v505 = vpack.c.b16 %v475, %v474
        %v506 = vpack.c.b16 %v477, %v476
        %v507 = vpack.c.b16 %v479, %v478
        %v508 = vpack.c.b16 %v481, %v480
        %v509 = vpack.c.b16 %v483, %v482
        %v510 = vpack.c.b16 %v485, %v484
        %v511 = vpack.c.b16 %v487, %v486
        %v512 = vpack.c.b16 %v489, %v488
        %v513 = vpack.c.b16 %v491, %v490
        %v514 = vpack.c.b16 %v493, %v492
        %v515 = vpack.c.b16 %v495, %v494
        %v516 = vpack.c.b16 %v497, %v496
        %v517 = vpack.c.b16 %v499, %v498
        %v518 = vpack.c.b16 %v501, %v500
        %v519 = vpack.c.b16 %v503, %v502
        %v552 = vunpack.c.l.b16 %v388
        %v553 = vunpack.c.l.b16 %v391
        %v554 = vunpack.c.l.b16 %v394
        %v555 = vunpack.c.l.b16 %v397
        %v556 = vunpack.c.l.b16 %v400
        %v557 = vunpack.c.l.b16 %v403
        %v558 = vunpack.c.l.b16 %v406
        %v559 = vunpack.c.l.b16 %v409
        %v560 = vunpack.c.l.b16 %v412
        %v561 = vunpack.c.l.b16 %v415
        %v562 = vunpack.c.l.b16 %v418
        %v563 = vunpack.c.l.b16 %v421
        %v564 = vunpack.c.l.b16 %v424
        %v565 = vunpack.c.l.b16 %v427
        %v566 = vunpack.c.l.b16 %v430
        %v567 = vunpack.c.l.b16 %v433
        %v568 = vpack.c.b16 %v552, %v552
        %v569 = vpack.c.b16 %v553, %v553
        %v570 = vpack.c.b16 %v554, %v554
        %v571 = vpack.c.b16 %v555, %v555
        %v572 = vpack.c.b16 %v556, %v556
        %v573 = vpack.c.b16 %v557, %v557
        %v574 = vpack.c.b16 %v558, %v558
        %v575 = vpack.c.b16 %v559, %v559
        %v576 = vpack.c.b16 %v560, %v560
        %v577 = vpack.c.b16 %v561, %v561
        %v578 = vpack.c.b16 %v562, %v562
        %v579 = vpack.c.b16 %v563, %v563
        %v580 = vpack.c.b16 %v564, %v564
        %v581 = vpack.c.b16 %v565, %v565
        %v582 = vpack.c.b16 %v566, %v566
        %v583 = vpack.c.b16 %v567, %v567
        %vm584 = vsmask.f32 7424
        %v586 = vshrl.u32 %v504, 16
        %v588 = vshll.u32 %v504, 16
        %v590 = vrot.slane %v588, 1
        %v591 = vor.u32 %v586, %v590
        %v593 = vshll.u32 %v568, 16
        %v595 = vrot.slane %v593, 1
        %v596 = vsel %vm584, %v591, %v595
        %v598 = vshrl.u32 %v505, 16
        %v600 = vshll.u32 %v505, 16
        %v602 = vrot.slane %v600, 1
        %v603 = vor.u32 %v598, %v602
        %v605 = vshll.u32 %v569, 16
        %v607 = vrot.slane %v605, 1
        %v608 = vsel %vm584, %v603, %v607
        %v610 = vshrl.u32 %v506, 16
        %v612 = vshll.u32 %v506, 16
        %v614 = vrot.slane %v612, 1
        %v615 = vor.u32 %v610, %v614
        %v617 = vshll.u32 %v570, 16
        %v619 = vrot.slane %v617, 1
        %v620 = vsel %vm584, %v615, %v619
        %v622 = vshrl.u32 %v507, 16
        %v624 = vshll.u32 %v507, 16
        %v626 = vrot.slane %v624, 1
        %v627 = vor.u32 %v622, %v626
        %v629 = vshll.u32 %v571, 16
        %v631 = vrot.slane %v629, 1
        %v632 = vsel %vm584, %v627, %v631
        %v634 = vshrl.u32 %v508, 16
        %v636 = vshll.u32 %v508, 16
        %v638 = vrot.slane %v636, 1
        %v639 = vor.u32 %v634, %v638
        %v641 = vshll.u32 %v572, 16
        %v643 = vrot.slane %v641, 1
        %v644 = vsel %vm584, %v639, %v643
        %v646 = vshrl.u32 %v509, 16
        %v648 = vshll.u32 %v509, 16
        %v650 = vrot.slane %v648, 1
        %v651 = vor.u32 %v646, %v650
        %v653 = vshll.u32 %v573, 16
        %v655 = vrot.slane %v653, 1
        %v656 = vsel %vm584, %v651, %v655
        %v658 = vshrl.u32 %v510, 16
        %v660 = vshll.u32 %v510, 16
        %v662 = vrot.slane %v660, 1
        %v663 = vor.u32 %v658, %v662
        %v665 = vshll.u32 %v574, 16
        %v667 = vrot.slane %v665, 1
        %v668 = vsel %vm584, %v663, %v667
        %v670 = vshrl.u32 %v511, 16
        %v672 = vshll.u32 %v511, 16
        %v674 = vrot.slane %v672, 1
        %v675 = vor.u32 %v670, %v674
        %v677 = vshll.u32 %v575, 16
        %v679 = vrot.slane %v677, 1
        %v680 = vsel %vm584, %v675, %v679
        %v682 = vshrl.u32 %v512, 16
        %v684 = vshll.u32 %v512, 16
        %v686 = vrot.slane %v684, 1
        %v687 = vor.u32 %v682, %v686
        %v689 = vshll.u32 %v576, 16
        %v691 = vrot.slane %v689, 1
        %v692 = vsel %vm584, %v687, %v691
        %v694 = vshrl.u32 %v513, 16
        %v696 = vshll.u32 %v513, 16
        %v698 = vrot.slane %v696, 1
        %v699 = vor.u32 %v694, %v698
        %v701 = vshll.u32 %v577, 16
        %v703 = vrot.slane %v701, 1
        %v704 = vsel %vm584, %v699, %v703
        %v706 = vshrl.u32 %v514, 16
        %v708 = vshll.u32 %v514, 16
        %v710 = vrot.slane %v708, 1
        %v711 = vor.u32 %v706, %v710
        %v713 = vshll.u32 %v578, 16
        %v715 = vrot.slane %v713, 1
        %v716 = vsel %vm584, %v711, %v715
        %v718 = vshrl.u32 %v515, 16
        %v720 = vshll.u32 %v515, 16
        %v722 = vrot.slane %v720, 1
        %v723 = vor.u32 %v718, %v722
        %v725 = vshll.u32 %v579, 16
        %v727 = vrot.slane %v725, 1
        %v728 = vsel %vm584, %v723, %v727
        %v730 = vshrl.u32 %v516, 16
        %v732 = vshll.u32 %v516, 16
        %v734 = vrot.slane %v732, 1
        %v735 = vor.u32 %v730, %v734
        %v737 = vshll.u32 %v580, 16
        %v739 = vrot.slane %v737, 1
        %v740 = vsel %vm584, %v735, %v739
        %v742 = vshrl.u32 %v517, 16
        %v744 = vshll.u32 %v517, 16
        %v746 = vrot.slane %v744, 1
        %v747 = vor.u32 %v742, %v746
        %v749 = vshll.u32 %v581, 16
        %v751 = vrot.slane %v749, 1
        %v752 = vsel %vm584, %v747, %v751
        %v754 = vshrl.u32 %v518, 16
        %v756 = vshll.u32 %v518, 16
        %v758 = vrot.slane %v756, 1
        %v759 = vor.u32 %v754, %v758
        %v761 = vshll.u32 %v582, 16
        %v763 = vrot.slane %v761, 1
        %v764 = vsel %vm584, %v759, %v763
        %v766 = vshrl.u32 %v519, 16
        %v768 = vshll.u32 %v519, 16
        %v770 = vrot.slane %v768, 1
        %v771 = vor.u32 %v766, %v770
        %v773 = vshll.u32 %v583, 16
        %v775 = vrot.slane %v773, 1
        %v776 = vsel %vm584, %v771, %v775
        %vm793 = vcmask 1046528
        %v794 = vrot.slane %v504, 1
        %v795 = vrot.slane %v568, 1
        %v796 = vsel %vm793, %v794, %v795
        %v797 = vrot.slane %v505, 1
        %v798 = vrot.slane %v569, 1
        %v799 = vsel %vm793, %v797, %v798
        %v800 = vrot.slane %v506, 1
        %v801 = vrot.slane %v570, 1
        %v802 = vsel %vm793, %v800, %v801
        %v803 = vrot.slane %v507, 1
        %v804 = vrot.slane %v571, 1
        %v805 = vsel %vm793, %v803, %v804
        %v806 = vrot.slane %v508, 1
        %v807 = vrot.slane %v572, 1
        %v808 = vsel %vm793, %v806, %v807
        %v809 = vrot.slane %v509, 1
        %v810 = vrot.slane %v573, 1
        %v811 = vsel %vm793, %v809, %v810
        %v812 = vrot.slane %v510, 1
        %v813 = vrot.slane %v574, 1
        %v814 = vsel %vm793, %v812, %v813
        %v815 = vrot.slane %v511, 1
        %v816 = vrot.slane %v575, 1
        %v817 = vsel %vm793, %v815, %v816
        %v818 = vrot.slane %v512, 1
        %v819 = vrot.slane %v576, 1
        %v820 = vsel %vm793, %v818, %v819
        %v821 = vrot.slane %v513, 1
        %v822 = vrot.slane %v577, 1
        %v823 = vsel %vm793, %v821, %v822
        %v824 = vrot.slane %v514, 1
        %v825 = vrot.slane %v578, 1
        %v826 = vsel %vm793, %v824, %v825
        %v827 = vrot.slane %v515, 1
        %v828 = vrot.slane %v579, 1
        %v829 = vsel %vm793, %v827, %v828
        %v830 = vrot.slane %v516, 1
        %v831 = vrot.slane %v580, 1
        %v832 = vsel %vm793, %v830, %v831
        %v833 = vrot.slane %v517, 1
        %v834 = vrot.slane %v581, 1
        %v835 = vsel %vm793, %v833, %v834
        %v836 = vrot.slane %v518, 1
        %v837 = vrot.slane %v582, 1
        %v838 = vsel %vm793, %v836, %v837
        %v839 = vrot.slane %v519, 1
        %v840 = vrot.slane %v583, 1
        %v841 = vsel %vm793, %v839, %v840
        %v858 = vld [vmem:[%s3] sm:$0xff]
        %v859 = vld [vmem:[%s3 + $0x8] sm:$0xf]
        %v860 = vld [vmem:[%s3 + $0xc] sm:$0xff]
        %v861 = vld [vmem:[%s3 + $0x14] sm:$0xf]
        %v862 = vld [vmem:[%s3 + $0x18] sm:$0xff]
        %v863 = vld [vmem:[%s3 + $0x20] sm:$0xf]
        %v864 = vld [vmem:[%s3 + $0x24] sm:$0xff]
        %v865 = vld [vmem:[%s3 + $0x2c] sm:$0xf]
        %v866 = vld [vmem:[%s3 + $0x30] sm:$0xff]
        %v867 = vld [vmem:[%s3 + $0x38] sm:$0xf]
        %v868 = vld [vmem:[%s3 + $0x3c] sm:$0xff]
        %v869 = vld [vmem:[%s3 + $0x44] sm:$0xf]
        %v870 = vld [vmem:[%s3 + $0x48] sm:$0xff]
        %v871 = vld [vmem:[%s3 + $0x50] sm:$0xf]
        %v872 = vld [vmem:[%s3 + $0x54] sm:$0xff]
        %v873 = vld [vmem:[%s3 + $0x5c] sm:$0xf]
        %v874 = vld [vmem:[%s3 + $0x60] sm:$0xff]
        %v875 = vld [vmem:[%s3 + $0x68] sm:$0xf]
        %v876 = vld [vmem:[%s3 + $0x6c] sm:$0xff]
        %v877 = vld [vmem:[%s3 + $0x74] sm:$0xf]
        %v878 = vld [vmem:[%s3 + $0x78] sm:$0xff]
        %v879 = vld [vmem:[%s3 + $0x80] sm:$0xf]
        %v880 = vld [vmem:[%s3 + $0x84] sm:$0xff]
        %v881 = vld [vmem:[%s3 + $0x8c] sm:$0xf]
        %v882 = vld [vmem:[%s3 + $0x90] sm:$0xff]
        %v883 = vld [vmem:[%s3 + $0x98] sm:$0xf]
        %v884 = vld [vmem:[%s3 + $0x9c] sm:$0xff]
        %v885 = vld [vmem:[%s3 + $0xa4] sm:$0xf]
        %v886 = vld [vmem:[%s3 + $0xa8] sm:$0xff]
        %v887 = vld [vmem:[%s3 + $0xb0] sm:$0xf]
        %v888 = vld [vmem:[%s3 + $0xb4] sm:$0xff]
        %v889 = vld [vmem:[%s3 + $0xbc] sm:$0xf]
        %v890 = vld [vmem:[%s3 + $0xc0] sm:$0xff]
        %v891 = vld [vmem:[%s3 + $0xc8] sm:$0xf]
        %v892 = vld [vmem:[%s3 + $0xcc] sm:$0xff]
        %v893 = vld [vmem:[%s3 + $0xd4] sm:$0xf]
        %v894 = vld [vmem:[%s3 + $0xd8] sm:$0xff]
        %v895 = vld [vmem:[%s3 + $0xe0] sm:$0xf]
        %v896 = vld [vmem:[%s3 + $0xe4] sm:$0xff]
        %v897 = vld [vmem:[%s3 + $0xec] sm:$0xf]
        %v898 = vld [vmem:[%s3 + $0xf0] sm:$0xff]
        %v899 = vld [vmem:[%s3 + $0xf8] sm:$0xf]
        %v900 = vld [vmem:[%s3 + $0xfc] sm:$0xff]
        %v901 = vld [vmem:[%s3 + $0x104] sm:$0xf]
        %v902 = vld [vmem:[%s3 + $0x108] sm:$0xff]
        %v903 = vld [vmem:[%s3 + $0x110] sm:$0xf]
        %v904 = vld [vmem:[%s3 + $0x114] sm:$0xff]
        %v905 = vld [vmem:[%s3 + $0x11c] sm:$0xf]
        %v906 = vld [vmem:[%s3 + $0x120] sm:$0xff]
        %v907 = vld [vmem:[%s3 + $0x128] sm:$0xf]
        %v908 = vld [vmem:[%s3 + $0x12c] sm:$0xff]
        %v909 = vld [vmem:[%s3 + $0x134] sm:$0xf]
        %v910 = vld [vmem:[%s3 + $0x138] sm:$0xff]
        %v911 = vld [vmem:[%s3 + $0x140] sm:$0xf]
        %v912 = vld [vmem:[%s3 + $0x144] sm:$0xff]
        %v913 = vld [vmem:[%s3 + $0x14c] sm:$0xf]
        %v914 = vld [vmem:[%s3 + $0x150] sm:$0xff]
        %v915 = vld [vmem:[%s3 + $0x158] sm:$0xf]
        %v916 = vld [vmem:[%s3 + $0x15c] sm:$0xff]
        %v917 = vld [vmem:[%s3 + $0x164] sm:$0xf]
        %v918 = vld [vmem:[%s3 + $0x168] sm:$0xff]
        %v919 = vld [vmem:[%s3 + $0x170] sm:$0xf]
        %v920 = vld [vmem:[%s3 + $0x174] sm:$0xff]
        %v921 = vld [vmem:[%s3 + $0x17c] sm:$0xf]
        %v922 = vld [vmem:[%s3 + $0x180] sm:$0xff]
        %v923 = vld [vmem:[%s3 + $0x188] sm:$0xf]
        %v924 = vld [vmem:[%s3 + $0x18c] sm:$0xff]
        %v925 = vld [vmem:[%s3 + $0x194] sm:$0xf]
        %v926 = vld [vmem:[%s3 + $0x198] sm:$0xff]
        %v927 = vld [vmem:[%s3 + $0x1a0] sm:$0xf]
        %v928 = vld [vmem:[%s3 + $0x1a4] sm:$0xff]
        %v929 = vld [vmem:[%s3 + $0x1ac] sm:$0xf]
        %v930 = vld [vmem:[%s3 + $0x1b0] sm:$0xff]
        %v931 = vld [vmem:[%s3 + $0x1b8] sm:$0xf]
        %v932 = vld [vmem:[%s3 + $0x1bc] sm:$0xff]
        %v933 = vld [vmem:[%s3 + $0x1c4] sm:$0xf]
        %v934 = vld [vmem:[%s3 + $0x1c8] sm:$0xff]
        %v935 = vld [vmem:[%s3 + $0x1d0] sm:$0xf]
        %v936 = vld [vmem:[%s3 + $0x1d4] sm:$0xff]
        %v937 = vld [vmem:[%s3 + $0x1dc] sm:$0xf]
        %v938 = vld [vmem:[%s3 + $0x1e0] sm:$0xff]
        %v939 = vld [vmem:[%s3 + $0x1e8] sm:$0xf]
        %v940 = vld [vmem:[%s3 + $0x1ec] sm:$0xff]
        %v941 = vld [vmem:[%s3 + $0x1f4] sm:$0xf]
        %v942 = vld [vmem:[%s3 + $0x1f8] sm:$0xff]
        %v943 = vld [vmem:[%s3 + $0x200] sm:$0xf]
        %v944 = vld [vmem:[%s3 + $0x204] sm:$0xff]
        %v945 = vld [vmem:[%s3 + $0x20c] sm:$0xf]
        %v946 = vld [vmem:[%s3 + $0x210] sm:$0xff]
        %v947 = vld [vmem:[%s3 + $0x218] sm:$0xf]
        %v948 = vld [vmem:[%s3 + $0x21c] sm:$0xff]
        %v949 = vld [vmem:[%s3 + $0x224] sm:$0xf]
        %v950 = vld [vmem:[%s3 + $0x228] sm:$0xff]
        %v951 = vld [vmem:[%s3 + $0x230] sm:$0xf]
        %v952 = vld [vmem:[%s3 + $0x234] sm:$0xff]
        %v953 = vld [vmem:[%s3 + $0x23c] sm:$0xf]
        %v956 = vunpack.c.l.b16 %v434
        %v957 = vunpack.c.l.b16 %v435
        %v958 = vpack.c.b16 %v957, %v956
        %v961 = vunpack.c.l.b16 %v436
        %v962 = vpack.c.b16 %v961, %v961
        %v964 = vshrl.u32 %v958, 16
        %v966 = vshll.u32 %v958, 16
        %v968 = vrot.slane %v966, 1
        %v969 = vor.u32 %v964, %v968
        %v971 = vshll.u32 %v962, 16
        %v973 = vrot.slane %v971, 1
        %v974 = vsel %vm584, %v969, %v973
        %v976 = vrot.slane %v958, 1
        %v977 = vrot.slane %v962, 1
        %v978 = vsel %vm793, %v976, %v977
        %v980 = vld [vmem:[%s3 + $0x240] sm:$0xff]
        %v981 = vld [vmem:[%s3 + $0x248] sm:$0xf]
        %v982 = vld [vmem:[%s3 + $0x24c] sm:$0xff]
        %v983 = vld [vmem:[%s3 + $0x254] sm:$0xf]
        %v984 = vld [vmem:[%s3 + $0x258] sm:$0xff]
        %v985 = vld [vmem:[%s3 + $0x260] sm:$0xf]
        %v986 = vld [vmem:[%s3 + $0x264] sm:$0xff]
        %v987 = vld [vmem:[%s3 + $0x26c] sm:$0xf]
        %v988 = vld [vmem:[%s3 + $0x270] sm:$0xff]
        %v989 = vld [vmem:[%s3 + $0x278] sm:$0xf]
        %v990 = vld [vmem:[%s3 + $0x27c] sm:$0xff]
        %v991 = vld [vmem:[%s3 + $0x284] sm:$0xf]
        %v992 = vld [vmem:[%s3 + $0x288] sm:$0xff]
        %v993 = vld [vmem:[%s3 + $0x290] sm:$0xf]
        %v994 = vld [vmem:[%s3 + $0x294] sm:$0xff]
        %v995 = vld [vmem:[%s3 + $0x29c] sm:$0xf]
        %v996 = vld [vmem:[%s3 + $0x2a0] sm:$0xff]
        %v997 = vld [vmem:[%s3 + $0x2a8] sm:$0xf]
        %v998 = vld [vmem:[%s3 + $0x2ac] sm:$0xff]
        %v999 = vld [vmem:[%s3 + $0x2b4] sm:$0xf]
        %v1000 = vld [vmem:[%s3 + $0x2b8] sm:$0xff]
        %v1001 = vld [vmem:[%s3 + $0x2c0] sm:$0xf]
        %v1002 = vld [vmem:[%s3 + $0x2c4] sm:$0xff]
        %v1003 = vld [vmem:[%s3 + $0x2cc] sm:$0xf]
        %v1004 = vld [vmem:[%s3 + $0x2d0] sm:$0xff]
        %v1005 = vld [vmem:[%s3 + $0x2d8] sm:$0xf]
        %v1006 = vld [vmem:[%s3 + $0x2dc] sm:$0xff]
        %v1007 = vld [vmem:[%s3 + $0x2e4] sm:$0xf]
        %v1008 = vld [vmem:[%s3 + $0x2e8] sm:$0xff]
        %v1009 = vld [vmem:[%s3 + $0x2f0] sm:$0xf]
        %v1010 = vld [vmem:[%s3 + $0x2f4] sm:$0xff]
        %v1011 = vld [vmem:[%s3 + $0x2fc] sm:$0xf]
        %v1012 = vld [vmem:[%s3 + $0x300] sm:$0xff]
        %v1013 = vld [vmem:[%s3 + $0x308] sm:$0xf]
        %v1014 = vld [vmem:[%s3 + $0x30c] sm:$0xff]
        %v1015 = vld [vmem:[%s3 + $0x314] sm:$0xf]
        %v1016 = vld [vmem:[%s3 + $0x318] sm:$0xff]
        %v1017 = vld [vmem:[%s3 + $0x320] sm:$0xf]
        %v1018 = vld [vmem:[%s3 + $0x324] sm:$0xff]
        %v1019 = vld [vmem:[%s3 + $0x32c] sm:$0xf]
        %v1020 = vld [vmem:[%s3 + $0x330] sm:$0xff]
        %v1021 = vld [vmem:[%s3 + $0x338] sm:$0xf]
        %v1022 = vld [vmem:[%s3 + $0x33c] sm:$0xff]
        %v1023 = vld [vmem:[%s3 + $0x344] sm:$0xf]
        %v1024 = vld [vmem:[%s3 + $0x348] sm:$0xff]
        %v1025 = vld [vmem:[%s3 + $0x350] sm:$0xf]
        %v1026 = vld [vmem:[%s3 + $0x354] sm:$0xff]
        %v1027 = vld [vmem:[%s3 + $0x35c] sm:$0xf]
        %v1028 = vld [vmem:[%s3 + $0x360] sm:$0xff]
        %v1029 = vld [vmem:[%s3 + $0x368] sm:$0xf]
        %v1030 = vld [vmem:[%s3 + $0x36c] sm:$0xff]
        %v1031 = vld [vmem:[%s3 + $0x374] sm:$0xf]
        %v1032 = vld [vmem:[%s3 + $0x378] sm:$0xff]
        %v1033 = vld [vmem:[%s3 + $0x380] sm:$0xf]
        %v1034 = vld [vmem:[%s3 + $0x384] sm:$0xff]
        %v1035 = vld [vmem:[%s3 + $0x38c] sm:$0xf]
        %v1036 = vld [vmem:[%s3 + $0x390] sm:$0xff]
        %v1037 = vld [vmem:[%s3 + $0x398] sm:$0xf]
        %v1038 = vld [vmem:[%s3 + $0x39c] sm:$0xff]
        %v1039 = vld [vmem:[%s3 + $0x3a4] sm:$0xf]
        %v1040 = vld [vmem:[%s3 + $0x3a8] sm:$0xff]
        %v1041 = vld [vmem:[%s3 + $0x3b0] sm:$0xf]
        %v1042 = vld [vmem:[%s3 + $0x3b4] sm:$0xff]
        %v1043 = vld [vmem:[%s3 + $0x3bc] sm:$0xf]
        %v1044 = vld [vmem:[%s3 + $0x3c0] sm:$0xff]
        %v1045 = vld [vmem:[%s3 + $0x3c8] sm:$0xf]
        %v1046 = vld [vmem:[%s3 + $0x3cc] sm:$0xff]
        %v1047 = vld [vmem:[%s3 + $0x3d4] sm:$0xf]
        %v1048 = vld [vmem:[%s3 + $0x3d8] sm:$0xff]
        %v1049 = vld [vmem:[%s3 + $0x3e0] sm:$0xf]
        %v1050 = vld [vmem:[%s3 + $0x3e4] sm:$0xff]
        %v1051 = vld [vmem:[%s3 + $0x3ec] sm:$0xf]
        %v1052 = vld [vmem:[%s3 + $0x3f0] sm:$0xff]
        %v1053 = vld [vmem:[%s3 + $0x3f8] sm:$0xf]
        %v1054 = vld [vmem:[%s3 + $0x3fc] sm:$0xff]
        %v1055 = vld [vmem:[%s3 + $0x404] sm:$0xf]
        %v1056 = vld [vmem:[%s3 + $0x408] sm:$0xff]
        %v1057 = vld [vmem:[%s3 + $0x410] sm:$0xf]
        %v1058 = vld [vmem:[%s3 + $0x414] sm:$0xff]
        %v1059 = vld [vmem:[%s3 + $0x41c] sm:$0xf]
        %v1060 = vld [vmem:[%s3 + $0x420] sm:$0xff]
        %v1061 = vld [vmem:[%s3 + $0x428] sm:$0xf]
        %v1062 = vld [vmem:[%s3 + $0x42c] sm:$0xff]
        %v1063 = vld [vmem:[%s3 + $0x434] sm:$0xf]
        %v1064 = vld [vmem:[%s3 + $0x438] sm:$0xff]
        %v1065 = vld [vmem:[%s3 + $0x440] sm:$0xf]
        %v1066 = vld [vmem:[%s3 + $0x444] sm:$0xff]
        %v1067 = vld [vmem:[%s3 + $0x44c] sm:$0xf]
        %v1068 = vld [vmem:[%s3 + $0x450] sm:$0xff]
        %v1069 = vld [vmem:[%s3 + $0x458] sm:$0xf]
        %v1070 = vld [vmem:[%s3 + $0x45c] sm:$0xff]
        %v1071 = vld [vmem:[%s3 + $0x464] sm:$0xf]
        %v1072 = vld [vmem:[%s3 + $0x468] sm:$0xff]
        %v1073 = vld [vmem:[%s3 + $0x470] sm:$0xf]
        %v1074 = vld [vmem:[%s3 + $0x474] sm:$0xff]
        %v1075 = vld [vmem:[%s3 + $0x47c] sm:$0xf]
        %v1172 = vunpack.c.l.b16 %v980
        %v1173 = vunpack.c.h.b16 %v980
        %v1174 = vunpack.c.l.b16 %v981
        %v1175 = vunpack.c.l.b16 %v982
        %v1176 = vunpack.c.h.b16 %v982
        %v1177 = vunpack.c.l.b16 %v983
        %v1178 = vunpack.c.l.b16 %v984
        %v1179 = vunpack.c.h.b16 %v984
        %v1180 = vunpack.c.l.b16 %v985
        %v1181 = vunpack.c.l.b16 %v986
        %v1182 = vunpack.c.h.b16 %v986
        %v1183 = vunpack.c.l.b16 %v987
        %v1184 = vunpack.c.l.b16 %v988
        %v1185 = vunpack.c.h.b16 %v988
        %v1186 = vunpack.c.l.b16 %v989
        %v1187 = vunpack.c.l.b16 %v990
        %v1188 = vunpack.c.h.b16 %v990
        %v1189 = vunpack.c.l.b16 %v991
        %v1190 = vunpack.c.l.b16 %v992
        %v1191 = vunpack.c.h.b16 %v992
        %v1192 = vunpack.c.l.b16 %v993
        %v1193 = vunpack.c.l.b16 %v994
        %v1194 = vunpack.c.h.b16 %v994
        %v1195 = vunpack.c.l.b16 %v995
        %v1196 = vunpack.c.l.b16 %v996
        %v1197 = vunpack.c.h.b16 %v996
        %v1198 = vunpack.c.l.b16 %v997
        %v1199 = vunpack.c.l.b16 %v998
        %v1200 = vunpack.c.h.b16 %v998
        %v1201 = vunpack.c.l.b16 %v999
        %v1202 = vunpack.c.l.b16 %v1000
        %v1203 = vunpack.c.h.b16 %v1000
        %v1204 = vunpack.c.l.b16 %v1001
        %v1205 = vunpack.c.l.b16 %v1002
        %v1206 = vunpack.c.h.b16 %v1002
        %v1207 = vunpack.c.l.b16 %v1003
        %v1208 = vunpack.c.l.b16 %v1004
        %v1209 = vunpack.c.h.b16 %v1004
        %v1210 = vunpack.c.l.b16 %v1005
        %v1211 = vunpack.c.l.b16 %v1006
        %v1212 = vunpack.c.h.b16 %v1006
        %v1213 = vunpack.c.l.b16 %v1007
        %v1214 = vunpack.c.l.b16 %v1008
        %v1215 = vunpack.c.h.b16 %v1008
        %v1216 = vunpack.c.l.b16 %v1009
        %v1217 = vunpack.c.l.b16 %v1010
        %v1218 = vunpack.c.h.b16 %v1010
        %v1219 = vunpack.c.l.b16 %v1011
        %v1220 = vunpack.c.l.b16 %v1012
        %v1221 = vunpack.c.h.b16 %v1012
        %v1222 = vunpack.c.l.b16 %v1013
        %v1223 = vunpack.c.l.b16 %v1014
        %v1224 = vunpack.c.h.b16 %v1014
        %v1225 = vunpack.c.l.b16 %v1015
        %v1226 = vunpack.c.l.b16 %v1016
        %v1227 = vunpack.c.h.b16 %v1016
        %v1228 = vunpack.c.l.b16 %v1017
        %v1229 = vunpack.c.l.b16 %v1018
        %v1230 = vunpack.c.h.b16 %v1018
        %v1231 = vunpack.c.l.b16 %v1019
        %v1232 = vunpack.c.l.b16 %v1020
        %v1233 = vunpack.c.h.b16 %v1020
        %v1234 = vunpack.c.l.b16 %v1021
        %v1235 = vunpack.c.l.b16 %v1022
        %v1236 = vunpack.c.h.b16 %v1022
        %v1237 = vunpack.c.l.b16 %v1023
        %v1238 = vunpack.c.l.b16 %v1024
        %v1239 = vunpack.c.h.b16 %v1024
        %v1240 = vunpack.c.l.b16 %v1025
        %v1241 = vunpack.c.l.b16 %v1026
        %v1242 = vunpack.c.h.b16 %v1026
        %v1243 = vunpack.c.l.b16 %v1027
        %v1244 = vunpack.c.l.b16 %v1028
        %v1245 = vunpack.c.h.b16 %v1028
        %v1246 = vunpack.c.l.b16 %v1029
        %v1247 = vunpack.c.l.b16 %v1030
        %v1248 = vunpack.c.h.b16 %v1030
        %v1249 = vunpack.c.l.b16 %v1031
        %v1250 = vunpack.c.l.b16 %v1032
        %v1251 = vunpack.c.h.b16 %v1032
        %v1252 = vunpack.c.l.b16 %v1033
        %v1253 = vunpack.c.l.b16 %v1034
        %v1254 = vunpack.c.h.b16 %v1034
        %v1255 = vunpack.c.l.b16 %v1035
        %v1256 = vunpack.c.l.b16 %v1036
        %v1257 = vunpack.c.h.b16 %v1036
        %v1258 = vunpack.c.l.b16 %v1037
        %v1259 = vunpack.c.l.b16 %v1038
        %v1260 = vunpack.c.h.b16 %v1038
        %v1261 = vunpack.c.l.b16 %v1039
        %v1262 = vunpack.c.l.b16 %v1040
        %v1263 = vunpack.c.h.b16 %v1040
        %v1264 = vunpack.c.l.b16 %v1041
        %v1265 = vunpack.c.l.b16 %v1042
        %v1266 = vunpack.c.h.b16 %v1042
        %v1267 = vunpack.c.l.b16 %v1043
        %v1268 = vunpack.c.l.b16 %v1044
        %v1269 = vunpack.c.h.b16 %v1044
        %v1270 = vunpack.c.l.b16 %v1045
        %v1271 = vunpack.c.l.b16 %v1046
        %v1272 = vunpack.c.h.b16 %v1046
        %v1273 = vunpack.c.l.b16 %v1047
        %v1274 = vunpack.c.l.b16 %v1048
        %v1275 = vunpack.c.h.b16 %v1048
        %v1276 = vunpack.c.l.b16 %v1049
        %v1277 = vunpack.c.l.b16 %v1050
        %v1278 = vunpack.c.h.b16 %v1050
        %v1279 = vunpack.c.l.b16 %v1051
        %v1280 = vunpack.c.l.b16 %v1052
        %v1281 = vunpack.c.h.b16 %v1052
        %v1282 = vunpack.c.l.b16 %v1053
        %v1283 = vunpack.c.l.b16 %v1054
        %v1284 = vunpack.c.h.b16 %v1054
        %v1285 = vunpack.c.l.b16 %v1055
        %v1286 = vunpack.c.l.b16 %v1056
        %v1287 = vunpack.c.h.b16 %v1056
        %v1288 = vunpack.c.l.b16 %v1057
        %v1289 = vunpack.c.l.b16 %v1058
        %v1290 = vunpack.c.h.b16 %v1058
        %v1291 = vunpack.c.l.b16 %v1059
        %v1292 = vunpack.c.l.b16 %v1060
        %v1293 = vunpack.c.h.b16 %v1060
        %v1294 = vunpack.c.l.b16 %v1061
        %v1295 = vunpack.c.l.b16 %v1062
        %v1296 = vunpack.c.h.b16 %v1062
        %v1297 = vunpack.c.l.b16 %v1063
        %v1298 = vunpack.c.l.b16 %v1064
        %v1299 = vunpack.c.h.b16 %v1064
        %v1300 = vunpack.c.l.b16 %v1065
        %v1301 = vunpack.c.l.b16 %v1066
        %v1302 = vunpack.c.h.b16 %v1066
        %v1303 = vunpack.c.l.b16 %v1067
        %v1304 = vunpack.c.l.b16 %v1068
        %v1305 = vunpack.c.h.b16 %v1068
        %v1306 = vunpack.c.l.b16 %v1069
        %v1307 = vunpack.c.l.b16 %v1070
        %v1308 = vunpack.c.h.b16 %v1070
        %v1309 = vunpack.c.l.b16 %v1071
        %v1310 = vunpack.c.l.b16 %v1072
        %v1311 = vunpack.c.h.b16 %v1072
        %v1312 = vunpack.c.l.b16 %v1073
        %v1313 = vunpack.c.l.b16 %v1074
        %v1314 = vunpack.c.h.b16 %v1074
        %v1315 = vunpack.c.l.b16 %v1075
        %v1316 = vpack.c.b16 %v1175, %v1172
        %v1317 = vpack.c.b16 %v1176, %v1173
        %v1318 = vpack.c.b16 %v1177, %v1174
        %v1319 = vpack.c.b16 %v1181, %v1178
        %v1320 = vpack.c.b16 %v1182, %v1179
        %v1321 = vpack.c.b16 %v1183, %v1180
        %v1322 = vpack.c.b16 %v1187, %v1184
        %v1323 = vpack.c.b16 %v1188, %v1185
        %v1324 = vpack.c.b16 %v1189, %v1186
        %v1325 = vpack.c.b16 %v1193, %v1190
        %v1326 = vpack.c.b16 %v1194, %v1191
        %v1327 = vpack.c.b16 %v1195, %v1192
        %v1328 = vpack.c.b16 %v1199, %v1196
        %v1329 = vpack.c.b16 %v1200, %v1197
        %v1330 = vpack.c.b16 %v1201, %v1198
        %v1331 = vpack.c.b16 %v1205, %v1202
        %v1332 = vpack.c.b16 %v1206, %v1203
        %v1333 = vpack.c.b16 %v1207, %v1204
        %v1334 = vpack.c.b16 %v1211, %v1208
        %v1335 = vpack.c.b16 %v1212, %v1209
        %v1336 = vpack.c.b16 %v1213, %v1210
        %v1337 = vpack.c.b16 %v1217, %v1214
        %v1338 = vpack.c.b16 %v1218, %v1215
        %v1339 = vpack.c.b16 %v1219, %v1216
        %v1340 = vpack.c.b16 %v1223, %v1220
        %v1341 = vpack.c.b16 %v1224, %v1221
        %v1342 = vpack.c.b16 %v1225, %v1222
        %v1343 = vpack.c.b16 %v1229, %v1226
        %v1344 = vpack.c.b16 %v1230, %v1227
        %v1345 = vpack.c.b16 %v1231, %v1228
        %v1346 = vpack.c.b16 %v1235, %v1232
        %v1347 = vpack.c.b16 %v1236, %v1233
        %v1348 = vpack.c.b16 %v1237, %v1234
        %v1349 = vpack.c.b16 %v1241, %v1238
        %v1350 = vpack.c.b16 %v1242, %v1239
        %v1351 = vpack.c.b16 %v1243, %v1240
        %v1352 = vpack.c.b16 %v1247, %v1244
        %v1353 = vpack.c.b16 %v1248, %v1245
        %v1354 = vpack.c.b16 %v1249, %v1246
        %v1355 = vpack.c.b16 %v1253, %v1250
        %v1356 = vpack.c.b16 %v1254, %v1251
        %v1357 = vpack.c.b16 %v1255, %v1252
        %v1358 = vpack.c.b16 %v1259, %v1256
        %v1359 = vpack.c.b16 %v1260, %v1257
        %v1360 = vpack.c.b16 %v1261, %v1258
        %v1361 = vpack.c.b16 %v1265, %v1262
        %v1362 = vpack.c.b16 %v1266, %v1263
        %v1363 = vpack.c.b16 %v1267, %v1264
        %v1364 = vpack.c.b16 %v1271, %v1268
        %v1365 = vpack.c.b16 %v1272, %v1269
        %v1366 = vpack.c.b16 %v1273, %v1270
        %v1367 = vpack.c.b16 %v1277, %v1274
        %v1368 = vpack.c.b16 %v1278, %v1275
        %v1369 = vpack.c.b16 %v1279, %v1276
        %v1370 = vpack.c.b16 %v1283, %v1280
        %v1371 = vpack.c.b16 %v1284, %v1281
        %v1372 = vpack.c.b16 %v1285, %v1282
        %v1373 = vpack.c.b16 %v1289, %v1286
        %v1374 = vpack.c.b16 %v1290, %v1287
        %v1375 = vpack.c.b16 %v1291, %v1288
        %v1376 = vpack.c.b16 %v1295, %v1292
        %v1377 = vpack.c.b16 %v1296, %v1293
        %v1378 = vpack.c.b16 %v1297, %v1294
        %v1379 = vpack.c.b16 %v1301, %v1298
        %v1380 = vpack.c.b16 %v1302, %v1299
        %v1381 = vpack.c.b16 %v1303, %v1300
        %v1382 = vpack.c.b16 %v1307, %v1304
        %v1383 = vpack.c.b16 %v1308, %v1305
        %v1384 = vpack.c.b16 %v1309, %v1306
        %v1385 = vpack.c.b16 %v1313, %v1310
        %v1386 = vpack.c.b16 %v1314, %v1311
        %v1387 = vpack.c.b16 %v1315, %v1312
        %1460 = vmatprep.subr.bf16.mxu0 %v1317
        %1461 = vmatpush1.bf16.msra.mxu0 %v1316
        %1462 = vmatprep.subr.bf16.mxu0 %v1320
        %1463 = vmatpush1.bf16.msra.mxu0 %v1319
        %1464 = vmatprep.subr.bf16.mxu0 %v1323
        %1465 = vmatpush1.bf16.msra.mxu0 %v1322
        %1466 = vmatprep.subr.bf16.mxu0 %v1326
        %1467 = vmatpush1.bf16.msra.mxu0 %v1325
        %1468 = vmatprep.subr.bf16.mxu0 %v1329
        %1469 = vmatpush1.bf16.msra.mxu0 %v1328
        %1470 = vmatprep.subr.bf16.mxu0 %v1332
        %1471 = vmatpush1.bf16.msra.mxu0 %v1331
        %1472 = vmatprep.subr.bf16.mxu0 %v1335
        %1473 = vmatpush1.bf16.msra.mxu0 %v1334
        %1474 = vmatprep.subr.bf16.mxu0 %v1338
        %1475 = vmatpush1.bf16.msra.mxu0 %v1337
        %1476 = vmatprep.subr.bf16.mxu0 %v1341
        %1477 = vmatpush1.bf16.msra.mxu0 %v1340
        %1478 = vmatprep.subr.bf16.mxu0 %v1344
        %1479 = vmatpush1.bf16.msra.mxu0 %v1343
        %1480 = vmatprep.subr.bf16.mxu0 %v1347
        %1481 = vmatpush1.bf16.msra.mxu0 %v1346
        %1482 = vmatprep.subr.bf16.mxu0 %v1350
        %1483 = vmatpush1.bf16.msra.mxu0 %v1349
        %1484 = vmatprep.subr.bf16.mxu0 %v1353
        %1485 = vmatpush1.bf16.msra.mxu0 %v1352
        %1486 = vmatprep.subr.bf16.mxu0 %v1356
        %1487 = vmatpush1.bf16.msra.mxu0 %v1355
        %1488 = vmatprep.subr.bf16.mxu0 %v1359
        %1489 = vmatpush1.bf16.msra.mxu0 %v1358
        %1490 = vmatprep.subr.bf16.mxu0 %v1362
        %1491 = vmatpush1.bf16.msra.mxu0 %v1361
        %1492 = vmatprep.mubr.bf16.mxu0 %v608
        %1493 = vmatmul.mubr.bf16.gmra.mrb[0].mxu0 %v505
        %v1494 = vpop.f32.mrb[0].mxu0
        %v1495 = vadd.f32 0.0, %v1494
        %v1496 = vpop.f32.mrb[0].mxu0
        %v1497 = vadd.f32 0.0, %v1496
        %v1498 = vpop.f32.mrb[0].mxu0
        %v1499 = vadd.f32 0.0, %v1498
        %v1500 = vpop.f32.mrb[0].mxu0
        %v1501 = vadd.f32 0.0, %v1500
        %1502 = vmatprep.mubr.bf16.mxu0 %v620
        %1503 = vmatmul.mubr.bf16.gmra.mrb[0].mxu0 %v506
        %v1504 = vpop.f32.mrb[0].mxu0
        %v1505 = vadd.f32 0.0, %v1504
        %v1506 = vpop.f32.mrb[0].mxu0
        %v1507 = vadd.f32 0.0, %v1506
        %v1508 = vpop.f32.mrb[0].mxu0
        %v1509 = vadd.f32 0.0, %v1508
        %v1510 = vpop.f32.mrb[0].mxu0
        %v1511 = vadd.f32 0.0, %v1510
        %1512 = vmatprep.mubr.bf16.mxu0 %v632
        %1513 = vmatmul.mubr.bf16.gmra.mrb[0].mxu0 %v507
        %v1514 = vpop.f32.mrb[0].mxu0
        %v1515 = vadd.f32 0.0, %v1514
        %v1516 = vpop.f32.mrb[0].mxu0
        %v1517 = vadd.f32 0.0, %v1516
        %v1518 = vpop.f32.mrb[0].mxu0
        %v1519 = vadd.f32 0.0, %v1518
        %v1520 = vpop.f32.mrb[0].mxu0
        %v1521 = vadd.f32 0.0, %v1520
        %1522 = vmatprep.mubr.bf16.mxu0 %v644
        %1523 = vmatmul.mubr.bf16.gmra.mrb[0].mxu0 %v508
        %v1524 = vpop.f32.mrb[0].mxu0
        %v1525 = vadd.f32 0.0, %v1524
        %v1526 = vpop.f32.mrb[0].mxu0
        %v1527 = vadd.f32 0.0, %v1526
        %v1528 = vpop.f32.mrb[0].mxu0
        %v1529 = vadd.f32 0.0, %v1528
        %v1530 = vpop.f32.mrb[0].mxu0
        %v1531 = vadd.f32 0.0, %v1530
        %1532 = vmatprep.mubr.bf16.mxu0 %v656
        %1533 = vmatmul.mubr.bf16.gmra.mrb[0].mxu0 %v509
        %v1534 = vpop.f32.mrb[0].mxu0
        %v1535 = vadd.f32 0.0, %v1534
        %v1536 = vpop.f32.mrb[0].mxu0
        %v1537 = vadd.f32 0.0, %v1536
        %v1538 = vpop.f32.mrb[0].mxu0
        %v1539 = vadd.f32 0.0, %v1538
        %v1540 = vpop.f32.mrb[0].mxu0
        %v1541 = vadd.f32 0.0, %v1540
        %1542 = vmatprep.mubr.bf16.mxu0 %v668
        %1543 = vmatmul.mubr.bf16.gmra.mrb[0].mxu0 %v510
        %v1544 = vpop.f32.mrb[0].mxu0
        %v1545 = vadd.f32 0.0, %v1544
        %v1546 = vpop.f32.mrb[0].mxu0
        %v1547 = vadd.f32 0.0, %v1546
        %v1548 = vpop.f32.mrb[0].mxu0
        %v1549 = vadd.f32 0.0, %v1548
        %v1550 = vpop.f32.mrb[0].mxu0
        %v1551 = vadd.f32 0.0, %v1550
        %1552 = vmatprep.mubr.bf16.mxu0 %v680
        %1553 = vmatmul.mubr.bf16.gmra.mrb[0].mxu0 %v511
        %v1554 = vpop.f32.mrb[0].mxu0
        %v1555 = vadd.f32 0.0, %v1554
        %v1556 = vpop.f32.mrb[0].mxu0
        %v1557 = vadd.f32 0.0, %v1556
        %v1558 = vpop.f32.mrb[0].mxu0
        %v1559 = vadd.f32 0.0, %v1558
        %v1560 = vpop.f32.mrb[0].mxu0
        %v1561 = vadd.f32 0.0, %v1560
        %1562 = vmatprep.mubr.bf16.mxu0 %v692
        %1563 = vmatmul.mubr.bf16.gmra.mrb[0].mxu0 %v512
        %v1564 = vpop.f32.mrb[0].mxu0
        %v1565 = vadd.f32 0.0, %v1564
        %v1566 = vpop.f32.mrb[0].mxu0
        %v1567 = vadd.f32 0.0, %v1566
        %v1568 = vpop.f32.mrb[0].mxu0
        %v1569 = vadd.f32 0.0, %v1568
        %v1570 = vpop.f32.mrb[0].mxu0
        %v1571 = vadd.f32 0.0, %v1570
        %1572 = vmatprep.mubr.bf16.mxu0 %v704
        %1573 = vmatmul.mubr.bf16.gmra.mrb[0].mxu0 %v513
        %v1574 = vpop.f32.mrb[0].mxu0
        %v1575 = vadd.f32 0.0, %v1574
        %v1576 = vpop.f32.mrb[0].mxu0
        %v1577 = vadd.f32 0.0, %v1576
        %v1578 = vpop.f32.mrb[0].mxu0
        %v1579 = vadd.f32 0.0, %v1578
        %v1580 = vpop.f32.mrb[0].mxu0
        %v1581 = vadd.f32 0.0, %v1580
        %1582 = vmatprep.mubr.bf16.mxu0 %v716
        %1583 = vmatmul.mubr.bf16.gmra.mrb[0].mxu0 %v514
        %v1584 = vpop.f32.mrb[0].mxu0
        %v1585 = vadd.f32 0.0, %v1584
        %v1586 = vpop.f32.mrb[0].mxu0
        %v1587 = vadd.f32 0.0, %v1586
        %v1588 = vpop.f32.mrb[0].mxu0
        %v1589 = vadd.f32 0.0, %v1588
        %v1590 = vpop.f32.mrb[0].mxu0
        %v1591 = vadd.f32 0.0, %v1590
        %1592 = vmatprep.mubr.bf16.mxu0 %v728
        %1593 = vmatmul.mubr.bf16.gmra.mrb[0].mxu0 %v515
        %v1594 = vpop.f32.mrb[0].mxu0
        %v1595 = vadd.f32 0.0, %v1594
        %v1596 = vpop.f32.mrb[0].mxu0
        %v1597 = vadd.f32 0.0, %v1596
        %v1598 = vpop.f32.mrb[0].mxu0
        %v1599 = vadd.f32 0.0, %v1598
        %v1600 = vpop.f32.mrb[0].mxu0
        %v1601 = vadd.f32 0.0, %v1600
        %1602 = vmatprep.mubr.bf16.mxu0 %v740
        %1603 = vmatmul.mubr.bf16.gmra.mrb[0].mxu0 %v516
        %v1604 = vpop.f32.mrb[0].mxu0
        %v1605 = vadd.f32 0.0, %v1604
        %v1606 = vpop.f32.mrb[0].mxu0
        %v1607 = vadd.f32 0.0, %v1606
        %v1608 = vpop.f32.mrb[0].mxu0
        %v1609 = vadd.f32 0.0, %v1608
        %v1610 = vpop.f32.mrb[0].mxu0
        %v1611 = vadd.f32 0.0, %v1610
        %1612 = vmatprep.mubr.bf16.mxu0 %v752
        %1613 = vmatmul.mubr.bf16.gmra.mrb[0].mxu0 %v517
        %v1614 = vpop.f32.mrb[0].mxu0
        %v1615 = vadd.f32 0.0, %v1614
        %v1616 = vpop.f32.mrb[0].mxu0
        %v1617 = vadd.f32 0.0, %v1616
        %v1618 = vpop.f32.mrb[0].mxu0
        %v1619 = vadd.f32 0.0, %v1618
        %v1620 = vpop.f32.mrb[0].mxu0
        %v1621 = vadd.f32 0.0, %v1620
        %1622 = vmatprep.mubr.bf16.mxu0 %v764
        %1623 = vmatmul.mubr.bf16.gmra.mrb[0].mxu0 %v518
        %v1624 = vpop.f32.mrb[0].mxu0
        %v1625 = vadd.f32 0.0, %v1624
        %v1626 = vpop.f32.mrb[0].mxu0
        %v1627 = vadd.f32 0.0, %v1626
        %v1628 = vpop.f32.mrb[0].mxu0
        %v1629 = vadd.f32 0.0, %v1628
        %v1630 = vpop.f32.mrb[0].mxu0
        %v1631 = vadd.f32 0.0, %v1630
        %1632 = vmatprep.mubr.bf16.mxu0 %v776
        %1633 = vmatmul.mubr.bf16.gmra.mrb[0].mxu0 %v519
        %v1634 = vpop.f32.mrb[0].mxu0
        %v1635 = vadd.f32 0.0, %v1634
        %v1636 = vpop.f32.mrb[0].mxu0
        %v1637 = vadd.f32 0.0, %v1636
        %v1638 = vpop.f32.mrb[0].mxu0
        %v1639 = vadd.f32 0.0, %v1638
        %v1640 = vpop.f32.mrb[0].mxu0
        %v1641 = vadd.f32 0.0, %v1640
        %1642 = vmatprep.mubr.bf16.mxu0 %v974
        %1643 = vmatmul.mubr.bf16.gmra.mrb[0].mxu0 %v958
        %v1644 = vpop.f32.mrb[0].mxu0
        %v1645 = vadd.f32 0.0, %v1644
        %v1646 = vpop.f32.mrb[0].mxu0
        %v1647 = vadd.f32 0.0, %v1646
        %v1648 = vpop.f32.mrb[0].mxu0
        %v1649 = vadd.f32 0.0, %v1648
        %v1650 = vpop.f32.mrb[0].mxu0
        %v1651 = vadd.f32 0.0, %v1650
        %1652 = vdwg.mxu0
        %1653 = vmatprep.subr.bf16.mxu0 %v1365
        %1654 = vmatpush1.bf16.msra.mxu0 %v1364
        %1655 = vmatprep.subr.bf16.mxu0 %v1368
        %1656 = vmatpush1.bf16.msra.mxu0 %v1367
        %1657 = vmatprep.subr.bf16.mxu0 %v1371
        %1658 = vmatpush1.bf16.msra.mxu0 %v1370
        %1659 = vmatprep.subr.bf16.mxu0 %v1374
        %1660 = vmatpush1.bf16.msra.mxu0 %v1373
        %1661 = vmatprep.subr.bf16.mxu0 %v1377
        %1662 = vmatpush1.bf16.msra.mxu0 %v1376
        %1663 = vmatprep.subr.bf16.mxu0 %v1380
        %1664 = vmatpush1.bf16.msra.mxu0 %v1379
        %1665 = vmatprep.subr.bf16.mxu0 %v1383
        %1666 = vmatpush1.bf16.msra.mxu0 %v1382
        %1667 = vmatprep.subr.bf16.mxu0 %v1386
        %1668 = vmatpush1.bf16.msra.mxu0 %v1385
        %1669 = vmatprep.subr.bf16.mxu0 0
        %1670 = vmatpush1.bf16.msra.mxu0 0
        %1671 = vmatprep.subr.bf16.mxu0 0
        %1672 = vmatpush1.bf16.msra.mxu0 0
        %1673 = vmatprep.subr.bf16.mxu0 0
        %1674 = vmatpush1.bf16.msra.mxu0 0
        %1675 = vmatprep.subr.bf16.mxu0 0
        %1676 = vmatpush1.bf16.msra.mxu0 0
        %1677 = vmatprep.subr.bf16.mxu0 0
        %1678 = vmatpush1.bf16.msra.mxu0 0
        %1679 = vmatprep.subr.bf16.mxu0 0
        %1680 = vmatpush1.bf16.msra.mxu0 0
        %1681 = vmatprep.subr.bf16.mxu0 0
        %1682 = vmatpush1.bf16.msra.mxu0 0
        %1683 = vmatprep.subr.bf16.mxu0 0
        %1684 = vmatpush1.bf16.msra.mxu0 0
        %1685 = vmatprep.mubr.bf16.mxu0 0
        %1686 = vmatmul.mubr.bf16.gmra.mrb[0].mxu0 %v799
        %v1687 = vpop.f32.mrb[0].mxu0
        %v1688 = vadd.f32 %v1495, %v1687
        %v1689 = vpop.f32.mrb[0].mxu0
        %v1690 = vadd.f32 %v1497, %v1689
        %v1691 = vpop.f32.mrb[0].mxu0
        %v1692 = vadd.f32 %v1499, %v1691
        %v1693 = vpop.f32.mrb[0].mxu0
        %v1694 = vadd.f32 %v1501, %v1693
        %1695 = vmatprep.mubr.bf16.mxu0 0
        %1696 = vmatmul.mubr.bf16.gmra.mrb[0].mxu0 %v802
        %v1697 = vpop.f32.mrb[0].mxu0
        %v1698 = vadd.f32 %v1505, %v1697
        %v1699 = vpop.f32.mrb[0].mxu0
        %v1700 = vadd.f32 %v1507, %v1699
        %v1701 = vpop.f32.mrb[0].mxu0
        %v1702 = vadd.f32 %v1509, %v1701
        %v1703 = vpop.f32.mrb[0].mxu0
        %v1704 = vadd.f32 %v1511, %v1703
        %1705 = vmatprep.mubr.bf16.mxu0 0
        %1706 = vmatmul.mubr.bf16.gmra.mrb[0].mxu0 %v805
        %v1707 = vpop.f32.mrb[0].mxu0
        %v1708 = vadd.f32 %v1515, %v1707
        %v1709 = vpop.f32.mrb[0].mxu0
        %v1710 = vadd.f32 %v1517, %v1709
        %v1711 = vpop.f32.mrb[0].mxu0
        %v1712 = vadd.f32 %v1519, %v1711
        %v1713 = vpop.f32.mrb[0].mxu0
        %v1714 = vadd.f32 %v1521, %v1713
        %1715 = vmatprep.mubr.bf16.mxu0 0
        %1716 = vmatmul.mubr.bf16.gmra.mrb[0].mxu0 %v808
        %v1717 = vpop.f32.mrb[0].mxu0
        %v1718 = vadd.f32 %v1525, %v1717
        %v1719 = vpop.f32.mrb[0].mxu0
        %v1720 = vadd.f32 %v1527, %v1719
        %v1721 = vpop.f32.mrb[0].mxu0
        %v1722 = vadd.f32 %v1529, %v1721
        %v1723 = vpop.f32.mrb[0].mxu0
        %v1724 = vadd.f32 %v1531, %v1723
        %1725 = vmatprep.mubr.bf16.mxu0 0
        %1726 = vmatmul.mubr.bf16.gmra.mrb[0].mxu0 %v811
        %v1727 = vpop.f32.mrb[0].mxu0
        %v1728 = vadd.f32 %v1535, %v1727
        %v1729 = vpop.f32.mrb[0].mxu0
        %v1730 = vadd.f32 %v1537, %v1729
        %v1731 = vpop.f32.mrb[0].mxu0
        %v1732 = vadd.f32 %v1539, %v1731
        %v1733 = vpop.f32.mrb[0].mxu0
        %v1734 = vadd.f32 %v1541, %v1733
        %1735 = vmatprep.mubr.bf16.mxu0 0
        %1736 = vmatmul.mubr.bf16.gmra.mrb[0].mxu0 %v814
        %v1737 = vpop.f32.mrb[0].mxu0
        %v1738 = vadd.f32 %v1545, %v1737
        %v1739 = vpop.f32.mrb[0].mxu0
        %v1740 = vadd.f32 %v1547, %v1739
        %v1741 = vpop.f32.mrb[0].mxu0
        %v1742 = vadd.f32 %v1549, %v1741
        %v1743 = vpop.f32.mrb[0].mxu0
        %v1744 = vadd.f32 %v1551, %v1743
        %1745 = vmatprep.mubr.bf16.mxu0 0
        %1746 = vmatmul.mubr.bf16.gmra.mrb[0].mxu0 %v817
        %v1747 = vpop.f32.mrb[0].mxu0
        %v1748 = vadd.f32 %v1555, %v1747
        %v1749 = vpop.f32.mrb[0].mxu0
        %v1750 = vadd.f32 %v1557, %v1749
        %v1751 = vpop.f32.mrb[0].mxu0
        %v1752 = vadd.f32 %v1559, %v1751
        %v1753 = vpop.f32.mrb[0].mxu0
        %v1754 = vadd.f32 %v1561, %v1753
        %1755 = vmatprep.mubr.bf16.mxu0 0
        %1756 = vmatmul.mubr.bf16.gmra.mrb[0].mxu0 %v820
        %v1757 = vpop.f32.mrb[0].mxu0
        %v1758 = vadd.f32 %v1565, %v1757
        %v1759 = vpop.f32.mrb[0].mxu0
        %v1760 = vadd.f32 %v1567, %v1759
        %v1761 = vpop.f32.mrb[0].mxu0
        %v1762 = vadd.f32 %v1569, %v1761
        %v1763 = vpop.f32.mrb[0].mxu0
        %v1764 = vadd.f32 %v1571, %v1763
        %1765 = vmatprep.mubr.bf16.mxu0 0
        %1766 = vmatmul.mubr.bf16.gmra.mrb[0].mxu0 %v823
        %v1767 = vpop.f32.mrb[0].mxu0
        %v1768 = vadd.f32 %v1575, %v1767
        %v1769 = vpop.f32.mrb[0].mxu0
        %v1770 = vadd.f32 %v1577, %v1769
        %v1771 = vpop.f32.mrb[0].mxu0
        %v1772 = vadd.f32 %v1579, %v1771
        %v1773 = vpop.f32.mrb[0].mxu0
        %v1774 = vadd.f32 %v1581, %v1773
        %1775 = vmatprep.mubr.bf16.mxu0 0
        %1776 = vmatmul.mubr.bf16.gmra.mrb[0].mxu0 %v826
        %v1777 = vpop.f32.mrb[0].mxu0
        %v1778 = vadd.f32 %v1585, %v1777
        %v1779 = vpop.f32.mrb[0].mxu0
        %v1780 = vadd.f32 %v1587, %v1779
        %v1781 = vpop.f32.mrb[0].mxu0
        %v1782 = vadd.f32 %v1589, %v1781
        %v1783 = vpop.f32.mrb[0].mxu0
        %v1784 = vadd.f32 %v1591, %v1783
        %1785 = vmatprep.mubr.bf16.mxu0 0
        %1786 = vmatmul.mubr.bf16.gmra.mrb[0].mxu0 %v829
        %v1787 = vpop.f32.mrb[0].mxu0
        %v1788 = vadd.f32 %v1595, %v1787
        %v1789 = vpop.f32.mrb[0].mxu0
        %v1790 = vadd.f32 %v1597, %v1789
        %v1791 = vpop.f32.mrb[0].mxu0
        %v1792 = vadd.f32 %v1599, %v1791
        %v1793 = vpop.f32.mrb[0].mxu0
        %v1794 = vadd.f32 %v1601, %v1793
        %1795 = vmatprep.mubr.bf16.mxu0 0
        %1796 = vmatmul.mubr.bf16.gmra.mrb[0].mxu0 %v832
        %v1797 = vpop.f32.mrb[0].mxu0
        %v1798 = vadd.f32 %v1605, %v1797
        %v1799 = vpop.f32.mrb[0].mxu0
        %v1800 = vadd.f32 %v1607, %v1799
        %v1801 = vpop.f32.mrb[0].mxu0
        %v1802 = vadd.f32 %v1609, %v1801
        %v1803 = vpop.f32.mrb[0].mxu0
        %v1804 = vadd.f32 %v1611, %v1803
        %1805 = vmatprep.mubr.bf16.mxu0 0
        %1806 = vmatmul.mubr.bf16.gmra.mrb[0].mxu0 %v835
        %v1807 = vpop.f32.mrb[0].mxu0
        %v1808 = vadd.f32 %v1615, %v1807
        %v1809 = vpop.f32.mrb[0].mxu0
        %v1810 = vadd.f32 %v1617, %v1809
        %v1811 = vpop.f32.mrb[0].mxu0
        %v1812 = vadd.f32 %v1619, %v1811
        %v1813 = vpop.f32.mrb[0].mxu0
        %v1814 = vadd.f32 %v1621, %v1813
        %1815 = vmatprep.mubr.bf16.mxu0 0
        %1816 = vmatmul.mubr.bf16.gmra.mrb[0].mxu0 %v838
        %v1817 = vpop.f32.mrb[0].mxu0
        %v1818 = vadd.f32 %v1625, %v1817
        %v1819 = vpop.f32.mrb[0].mxu0
        %v1820 = vadd.f32 %v1627, %v1819
        %v1821 = vpop.f32.mrb[0].mxu0
        %v1822 = vadd.f32 %v1629, %v1821
        %v1823 = vpop.f32.mrb[0].mxu0
        %v1824 = vadd.f32 %v1631, %v1823
        %1825 = vmatprep.mubr.bf16.mxu0 0
        %1826 = vmatmul.mubr.bf16.gmra.mrb[0].mxu0 %v841
        %v1827 = vpop.f32.mrb[0].mxu0
        %v1828 = vadd.f32 %v1635, %v1827
        %v1829 = vpop.f32.mrb[0].mxu0
        %v1830 = vadd.f32 %v1637, %v1829
        %v1831 = vpop.f32.mrb[0].mxu0
        %v1832 = vadd.f32 %v1639, %v1831
        %v1833 = vpop.f32.mrb[0].mxu0
        %v1834 = vadd.f32 %v1641, %v1833
        %1835 = vmatprep.mubr.bf16.mxu0 0
        %1836 = vmatmul.mubr.bf16.gmra.mrb[0].mxu0 %v978
        %v1837 = vpop.f32.mrb[0].mxu0
        %v1838 = vadd.f32 %v1645, %v1837
        %v1839 = vpop.f32.mrb[0].mxu0
        %v1840 = vadd.f32 %v1647, %v1839
        %v1841 = vpop.f32.mrb[0].mxu0
        %v1842 = vadd.f32 %v1649, %v1841
        %v1843 = vpop.f32.mrb[0].mxu0
        %v1844 = vadd.f32 %v1651, %v1843
        %1845 = vdwg.mxu0
        %1846 = vmatprep.subr.bf16.mxu0 0
        %1847 = vmatpush1.bf16.msra.mxu0 %v1318
        %1848 = vmatprep.subr.bf16.mxu0 0
        %1849 = vmatpush1.bf16.msra.mxu0 %v1321
        %1850 = vmatprep.subr.bf16.mxu0 0
        %1851 = vmatpush1.bf16.msra.mxu0 %v1324
        %1852 = vmatprep.subr.bf16.mxu0 0
        %1853 = vmatpush1.bf16.msra.mxu0 %v1327
        %1854 = vmatprep.subr.bf16.mxu0 0
        %1855 = vmatpush1.bf16.msra.mxu0 %v1330
        %1856 = vmatprep.subr.bf16.mxu0 0
        %1857 = vmatpush1.bf16.msra.mxu0 %v1333
        %1858 = vmatprep.subr.bf16.mxu0 0
        %1859 = vmatpush1.bf16.msra.mxu0 %v1336
        %1860 = vmatprep.subr.bf16.mxu0 0
        %1861 = vmatpush1.bf16.msra.mxu0 %v1339
        %1862 = vmatprep.subr.bf16.mxu0 0
        %1863 = vmatpush1.bf16.msra.mxu0 %v1342
        %1864 = vmatprep.subr.bf16.mxu0 0
        %1865 = vmatpush1.bf16.msra.mxu0 %v1345
        %1866 = vmatprep.subr.bf16.mxu0 0
        %1867 = vmatpush1.bf16.msra.mxu0 %v1348
        %1868 = vmatprep.subr.bf16.mxu0 0
        %1869 = vmatpush1.bf16.msra.mxu0 %v1351
        %1870 = vmatprep.subr.bf16.mxu0 0
        %1871 = vmatpush1.bf16.msra.mxu0 %v1354
        %1872 = vmatprep.subr.bf16.mxu0 0
        %1873 = vmatpush1.bf16.msra.mxu0 %v1357
        %1874 = vmatprep.subr.bf16.mxu0 0
        %1875 = vmatpush1.bf16.msra.mxu0 %v1360
        %1876 = vmatprep.subr.bf16.mxu0 0
        %1877 = vmatpush1.bf16.msra.mxu0 %v1363
        %1878 = vmatprep.mubr.bf16.mxu0 %v608
        %1879 = vmatmul.mubr.bf16.gmra.mrb[0].mxu0 %v505
        %v1880 = vpop.f32.mrb[0].mxu0
        %v1881 = vadd.f32 0.0, %v1880
        %v1882 = vpop.f32.mrb[0].mxu0
        %v1883 = vpop.f32.mrb[0].mxu0
        %v1884 = vadd.f32 0.0, %v1883
        %v1885 = vpop.f32.mrb[0].mxu0
        %1886 = vmatprep.mubr.bf16.mxu0 %v620
        %1887 = vmatmul.mubr.bf16.gmra.mrb[0].mxu0 %v506
        %v1888 = vpop.f32.mrb[0].mxu0
        %v1889 = vadd.f32 0.0, %v1888
        %v1890 = vpop.f32.mrb[0].mxu0
        %v1891 = vpop.f32.mrb[0].mxu0
        %v1892 = vadd.f32 0.0, %v1891
        %v1893 = vpop.f32.mrb[0].mxu0
        %1894 = vmatprep.mubr.bf16.mxu0 %v632
        %1895 = vmatmul.mubr.bf16.gmra.mrb[0].mxu0 %v507
        %v1896 = vpop.f32.mrb[0].mxu0
        %v1897 = vadd.f32 0.0, %v1896
        %v1898 = vpop.f32.mrb[0].mxu0
        %v1899 = vpop.f32.mrb[0].mxu0
        %v1900 = vadd.f32 0.0, %v1899
        %v1901 = vpop.f32.mrb[0].mxu0
        %1902 = vmatprep.mubr.bf16.mxu0 %v644
        %1903 = vmatmul.mubr.bf16.gmra.mrb[0].mxu0 %v508
        %v1904 = vpop.f32.mrb[0].mxu0
        %v1905 = vadd.f32 0.0, %v1904
        %v1906 = vpop.f32.mrb[0].mxu0
        %v1907 = vpop.f32.mrb[0].mxu0
        %v1908 = vadd.f32 0.0, %v1907
        %v1909 = vpop.f32.mrb[0].mxu0
        %1910 = vmatprep.mubr.bf16.mxu0 %v656
        %1911 = vmatmul.mubr.bf16.gmra.mrb[0].mxu0 %v509
        %v1912 = vpop.f32.mrb[0].mxu0
        %v1913 = vadd.f32 0.0, %v1912
        %v1914 = vpop.f32.mrb[0].mxu0
        %v1915 = vpop.f32.mrb[0].mxu0
        %v1916 = vadd.f32 0.0, %v1915
        %v1917 = vpop.f32.mrb[0].mxu0
        %1918 = vmatprep.mubr.bf16.mxu0 %v668
        %1919 = vmatmul.mubr.bf16.gmra.mrb[0].mxu0 %v510
        %v1920 = vpop.f32.mrb[0].mxu0
        %v1921 = vadd.f32 0.0, %v1920
        %v1922 = vpop.f32.mrb[0].mxu0
        %v1923 = vpop.f32.mrb[0].mxu0
        %v1924 = vadd.f32 0.0, %v1923
        %v1925 = vpop.f32.mrb[0].mxu0
        %1926 = vmatprep.mubr.bf16.mxu0 %v680
        %1927 = vmatmul.mubr.bf16.gmra.mrb[0].mxu0 %v511
        %v1928 = vpop.f32.mrb[0].mxu0
        %v1929 = vadd.f32 0.0, %v1928
        %v1930 = vpop.f32.mrb[0].mxu0
        %v1931 = vpop.f32.mrb[0].mxu0
        %v1932 = vadd.f32 0.0, %v1931
        %v1933 = vpop.f32.mrb[0].mxu0
        %1934 = vmatprep.mubr.bf16.mxu0 %v692
        %1935 = vmatmul.mubr.bf16.gmra.mrb[0].mxu0 %v512
        %v1936 = vpop.f32.mrb[0].mxu0
        %v1937 = vadd.f32 0.0, %v1936
        %v1938 = vpop.f32.mrb[0].mxu0
        %v1939 = vpop.f32.mrb[0].mxu0
        %v1940 = vadd.f32 0.0, %v1939
        %v1941 = vpop.f32.mrb[0].mxu0
        %1942 = vmatprep.mubr.bf16.mxu0 %v704
        %1943 = vmatmul.mubr.bf16.gmra.mrb[0].mxu0 %v513
        %v1944 = vpop.f32.mrb[0].mxu0
        %v1945 = vadd.f32 0.0, %v1944
        %v1946 = vpop.f32.mrb[0].mxu0
        %v1947 = vpop.f32.mrb[0].mxu0
        %v1948 = vadd.f32 0.0, %v1947
        %v1949 = vpop.f32.mrb[0].mxu0
        %1950 = vmatprep.mubr.bf16.mxu0 %v716
        %1951 = vmatmul.mubr.bf16.gmra.mrb[0].mxu0 %v514
        %v1952 = vpop.f32.mrb[0].mxu0
        %v1953 = vadd.f32 0.0, %v1952
        %v1954 = vpop.f32.mrb[0].mxu0
        %v1955 = vpop.f32.mrb[0].mxu0
        %v1956 = vadd.f32 0.0, %v1955
        %v1957 = vpop.f32.mrb[0].mxu0
        %1958 = vmatprep.mubr.bf16.mxu0 %v728
        %1959 = vmatmul.mubr.bf16.gmra.mrb[0].mxu0 %v515
        %v1960 = vpop.f32.mrb[0].mxu0
        %v1961 = vadd.f32 0.0, %v1960
        %v1962 = vpop.f32.mrb[0].mxu0
        %v1963 = vpop.f32.mrb[0].mxu0
        %v1964 = vadd.f32 0.0, %v1963
        %v1965 = vpop.f32.mrb[0].mxu0
        %1966 = vmatprep.mubr.bf16.mxu0 %v740
        %1967 = vmatmul.mubr.bf16.gmra.mrb[0].mxu0 %v516
        %v1968 = vpop.f32.mrb[0].mxu0
        %v1969 = vadd.f32 0.0, %v1968
        %v1970 = vpop.f32.mrb[0].mxu0
        %v1971 = vpop.f32.mrb[0].mxu0
        %v1972 = vadd.f32 0.0, %v1971
        %v1973 = vpop.f32.mrb[0].mxu0
        %1974 = vmatprep.mubr.bf16.mxu0 %v752
        %1975 = vmatmul.mubr.bf16.gmra.mrb[0].mxu0 %v517
        %v1976 = vpop.f32.mrb[0].mxu0
        %v1977 = vadd.f32 0.0, %v1976
        %v1978 = vpop.f32.mrb[0].mxu0
        %v1979 = vpop.f32.mrb[0].mxu0
        %v1980 = vadd.f32 0.0, %v1979
        %v1981 = vpop.f32.mrb[0].mxu0
        %1982 = vmatprep.mubr.bf16.mxu0 %v764
        %1983 = vmatmul.mubr.bf16.gmra.mrb[0].mxu0 %v518
        %v1984 = vpop.f32.mrb[0].mxu0
        %v1985 = vadd.f32 0.0, %v1984
        %v1986 = vpop.f32.mrb[0].mxu0
        %v1987 = vpop.f32.mrb[0].mxu0
        %v1988 = vadd.f32 0.0, %v1987
        %v1989 = vpop.f32.mrb[0].mxu0
        %1990 = vmatprep.mubr.bf16.mxu0 %v776
        %1991 = vmatmul.mubr.bf16.gmra.mrb[0].mxu0 %v519
        %v1992 = vpop.f32.mrb[0].mxu0
        %v1993 = vadd.f32 0.0, %v1992
        %v1994 = vpop.f32.mrb[0].mxu0
        %v1995 = vpop.f32.mrb[0].mxu0
        %v1996 = vadd.f32 0.0, %v1995
        %v1997 = vpop.f32.mrb[0].mxu0
        %1998 = vmatprep.mubr.bf16.mxu0 %v974
        %1999 = vmatmul.mubr.bf16.gmra.mrb[0].mxu0 %v958
        %v2000 = vpop.f32.mrb[0].mxu0
        %v2001 = vadd.f32 0.0, %v2000
        %v2002 = vpop.f32.mrb[0].mxu0
        %v2003 = vpop.f32.mrb[0].mxu0
        %v2004 = vadd.f32 0.0, %v2003
        %v2005 = vpop.f32.mrb[0].mxu0
        %2006 = vdwg.mxu0
        %2007 = vmatprep.subr.bf16.mxu0 0
        %2008 = vmatpush1.bf16.msra.mxu0 %v1366
        %2009 = vmatprep.subr.bf16.mxu0 0
        %2010 = vmatpush1.bf16.msra.mxu0 %v1369
        %2011 = vmatprep.subr.bf16.mxu0 0
        %2012 = vmatpush1.bf16.msra.mxu0 %v1372
        %2013 = vmatprep.subr.bf16.mxu0 0
        %2014 = vmatpush1.bf16.msra.mxu0 %v1375
        %2015 = vmatprep.subr.bf16.mxu0 0
        %2016 = vmatpush1.bf16.msra.mxu0 %v1378
        %2017 = vmatprep.subr.bf16.mxu0 0
        %2018 = vmatpush1.bf16.msra.mxu0 %v1381
        %2019 = vmatprep.subr.bf16.mxu0 0
        %2020 = vmatpush1.bf16.msra.mxu0 %v1384
        %2021 = vmatprep.subr.bf16.mxu0 0
        %2022 = vmatpush1.bf16.msra.mxu0 %v1387
        %2023 = vmatprep.subr.bf16.mxu0 0
        %2024 = vmatpush1.bf16.msra.mxu0 0
        %2025 = vmatprep.subr.bf16.mxu0 0
        %2026 = vmatpush1.bf16.msra.mxu0 0
        %2027 = vmatprep.subr.bf16.mxu0 0
        %2028 = vmatpush1.bf16.msra.mxu0 0
        %2029 = vmatprep.subr.bf16.mxu0 0
        %2030 = vmatpush1.bf16.msra.mxu0 0
        %2031 = vmatprep.subr.bf16.mxu0 0
        %2032 = vmatpush1.bf16.msra.mxu0 0
        %2033 = vmatprep.subr.bf16.mxu0 0
        %2034 = vmatpush1.bf16.msra.mxu0 0
        %2035 = vmatprep.subr.bf16.mxu0 0
        %2036 = vmatpush1.bf16.msra.mxu0 0
        %2037 = vmatprep.subr.bf16.mxu0 0
        %2038 = vmatpush1.bf16.msra.mxu0 0
        %2039 = vmatprep.mubr.bf16.mxu0 0
        %2040 = vmatmul.mubr.bf16.gmra.mrb[0].mxu0 %v799
        %v2041 = vpop.f32.mrb[0].mxu0
        %v2042 = vadd.f32 %v1881, %v2041
        %v2043 = vpop.f32.mrb[0].mxu0
        %v2044 = vpop.f32.mrb[0].mxu0
        %v2045 = vadd.f32 %v1884, %v2044
        %v2046 = vpop.f32.mrb[0].mxu0
        %2047 = vmatprep.mubr.bf16.mxu0 0
        %2048 = vmatmul.mubr.bf16.gmra.mrb[0].mxu0 %v802
        %v2049 = vpop.f32.mrb[0].mxu0
        %v2050 = vadd.f32 %v1889, %v2049
        %v2051 = vpop.f32.mrb[0].mxu0
        %v2052 = vpop.f32.mrb[0].mxu0
        %v2053 = vadd.f32 %v1892, %v2052
        %v2054 = vpop.f32.mrb[0].mxu0
        %2055 = vmatprep.mubr.bf16.mxu0 0
        %2056 = vmatmul.mubr.bf16.gmra.mrb[0].mxu0 %v805
        %v2057 = vpop.f32.mrb[0].mxu0
        %v2058 = vadd.f32 %v1897, %v2057
        %v2059 = vpop.f32.mrb[0].mxu0
        %v2060 = vpop.f32.mrb[0].mxu0
        %v2061 = vadd.f32 %v1900, %v2060
        %v2062 = vpop.f32.mrb[0].mxu0
        %2063 = vmatprep.mubr.bf16.mxu0 0
        %2064 = vmatmul.mubr.bf16.gmra.mrb[0].mxu0 %v808
        %v2065 = vpop.f32.mrb[0].mxu0
        %v2066 = vadd.f32 %v1905, %v2065
        %v2067 = vpop.f32.mrb[0].mxu0
        %v2068 = vpop.f32.mrb[0].mxu0
        %v2069 = vadd.f32 %v1908, %v2068
        %v2070 = vpop.f32.mrb[0].mxu0
        %2071 = vmatprep.mubr.bf16.mxu0 0
        %2072 = vmatmul.mubr.bf16.gmra.mrb[0].mxu0 %v811
        %v2073 = vpop.f32.mrb[0].mxu0
        %v2074 = vadd.f32 %v1913, %v2073
        %v2075 = vpop.f32.mrb[0].mxu0
        %v2076 = vpop.f32.mrb[0].mxu0
        %v2077 = vadd.f32 %v1916, %v2076
        %v2078 = vpop.f32.mrb[0].mxu0
        %2079 = vmatprep.mubr.bf16.mxu0 0
        %2080 = vmatmul.mubr.bf16.gmra.mrb[0].mxu0 %v814
        %v2081 = vpop.f32.mrb[0].mxu0
        %v2082 = vadd.f32 %v1921, %v2081
        %v2083 = vpop.f32.mrb[0].mxu0
        %v2084 = vpop.f32.mrb[0].mxu0
        %v2085 = vadd.f32 %v1924, %v2084
        %v2086 = vpop.f32.mrb[0].mxu0
        %2087 = vmatprep.mubr.bf16.mxu0 0
        %2088 = vmatmul.mubr.bf16.gmra.mrb[0].mxu0 %v817
        %v2089 = vpop.f32.mrb[0].mxu0
        %v2090 = vadd.f32 %v1929, %v2089
        %v2091 = vpop.f32.mrb[0].mxu0
        %v2092 = vpop.f32.mrb[0].mxu0
        %v2093 = vadd.f32 %v1932, %v2092
        %v2094 = vpop.f32.mrb[0].mxu0
        %2095 = vmatprep.mubr.bf16.mxu0 0
        %2096 = vmatmul.mubr.bf16.gmra.mrb[0].mxu0 %v820
        %v2097 = vpop.f32.mrb[0].mxu0
        %v2098 = vadd.f32 %v1937, %v2097
        %v2099 = vpop.f32.mrb[0].mxu0
        %v2100 = vpop.f32.mrb[0].mxu0
        %v2101 = vadd.f32 %v1940, %v2100
        %v2102 = vpop.f32.mrb[0].mxu0
        %2103 = vmatprep.mubr.bf16.mxu0 0
        %2104 = vmatmul.mubr.bf16.gmra.mrb[0].mxu0 %v823
        %v2105 = vpop.f32.mrb[0].mxu0
        %v2106 = vadd.f32 %v1945, %v2105
        %v2107 = vpop.f32.mrb[0].mxu0
        %v2108 = vpop.f32.mrb[0].mxu0
        %v2109 = vadd.f32 %v1948, %v2108
        %v2110 = vpop.f32.mrb[0].mxu0
        %2111 = vmatprep.mubr.bf16.mxu0 0
        %2112 = vmatmul.mubr.bf16.gmra.mrb[0].mxu0 %v826
        %v2113 = vpop.f32.mrb[0].mxu0
        %v2114 = vadd.f32 %v1953, %v2113
        %v2115 = vpop.f32.mrb[0].mxu0
        %v2116 = vpop.f32.mrb[0].mxu0
        %v2117 = vadd.f32 %v1956, %v2116
        %v2118 = vpop.f32.mrb[0].mxu0
        %2119 = vmatprep.mubr.bf16.mxu0 0
        %2120 = vmatmul.mubr.bf16.gmra.mrb[0].mxu0 %v829
        %v2121 = vpop.f32.mrb[0].mxu0
        %v2122 = vadd.f32 %v1961, %v2121
        %v2123 = vpop.f32.mrb[0].mxu0
        %v2124 = vpop.f32.mrb[0].mxu0
        %v2125 = vadd.f32 %v1964, %v2124
        %v2126 = vpop.f32.mrb[0].mxu0
        %2127 = vmatprep.mubr.bf16.mxu0 0
        %2128 = vmatmul.mubr.bf16.gmra.mrb[0].mxu0 %v832
        %v2129 = vpop.f32.mrb[0].mxu0
        %v2130 = vadd.f32 %v1969, %v2129
        %v2131 = vpop.f32.mrb[0].mxu0
        %v2132 = vpop.f32.mrb[0].mxu0
        %v2133 = vadd.f32 %v1972, %v2132
        %v2134 = vpop.f32.mrb[0].mxu0
        %2135 = vmatprep.mubr.bf16.mxu0 0
        %2136 = vmatmul.mubr.bf16.gmra.mrb[0].mxu0 %v835
        %v2137 = vpop.f32.mrb[0].mxu0
        %v2138 = vadd.f32 %v1977, %v2137
        %v2139 = vpop.f32.mrb[0].mxu0
        %v2140 = vpop.f32.mrb[0].mxu0
        %v2141 = vadd.f32 %v1980, %v2140
        %v2142 = vpop.f32.mrb[0].mxu0
        %2143 = vmatprep.mubr.bf16.mxu0 0
        %2144 = vmatmul.mubr.bf16.gmra.mrb[0].mxu0 %v838
        %v2145 = vpop.f32.mrb[0].mxu0
        %v2146 = vadd.f32 %v1985, %v2145
        %v2147 = vpop.f32.mrb[0].mxu0
        %v2148 = vpop.f32.mrb[0].mxu0
        %v2149 = vadd.f32 %v1988, %v2148
        %v2150 = vpop.f32.mrb[0].mxu0
        %2151 = vmatprep.mubr.bf16.mxu0 0
        %2152 = vmatmul.mubr.bf16.gmra.mrb[0].mxu0 %v841
        %v2153 = vpop.f32.mrb[0].mxu0
        %v2154 = vadd.f32 %v1993, %v2153
        %v2155 = vpop.f32.mrb[0].mxu0
        %v2156 = vpop.f32.mrb[0].mxu0
        %v2157 = vadd.f32 %v1996, %v2156
        %v2158 = vpop.f32.mrb[0].mxu0
        %2159 = vmatprep.mubr.bf16.mxu0 0
        %2160 = vmatmul.mubr.bf16.gmra.mrb[0].mxu0 %v978
        %v2161 = vpop.f32.mrb[0].mxu0
        %v2162 = vadd.f32 %v2001, %v2161
        %v2163 = vpop.f32.mrb[0].mxu0
        %v2164 = vpop.f32.mrb[0].mxu0
        %v2165 = vadd.f32 %v2004, %v2164
        %v2166 = vpop.f32.mrb[0].mxu0
        %2167 = vdwg.mxu0
        %v2264 = vunpack.c.l.b16 %v858
        %v2265 = vunpack.c.h.b16 %v858
        %v2266 = vunpack.c.l.b16 %v859
        %v2267 = vunpack.c.l.b16 %v860
        %v2268 = vunpack.c.h.b16 %v860
        %v2269 = vunpack.c.l.b16 %v861
        %v2270 = vunpack.c.l.b16 %v862
        %v2271 = vunpack.c.h.b16 %v862
        %v2272 = vunpack.c.l.b16 %v863
        %v2273 = vunpack.c.l.b16 %v864
        %v2274 = vunpack.c.h.b16 %v864
        %v2275 = vunpack.c.l.b16 %v865
        %v2276 = vunpack.c.l.b16 %v866
        %v2277 = vunpack.c.h.b16 %v866
        %v2278 = vunpack.c.l.b16 %v867
        %v2279 = vunpack.c.l.b16 %v868
        %v2280 = vunpack.c.h.b16 %v868
        %v2281 = vunpack.c.l.b16 %v869
        %v2282 = vunpack.c.l.b16 %v870
        %v2283 = vunpack.c.h.b16 %v870
        %v2284 = vunpack.c.l.b16 %v871
        %v2285 = vunpack.c.l.b16 %v872
        %v2286 = vunpack.c.h.b16 %v872
        %v2287 = vunpack.c.l.b16 %v873
        %v2288 = vunpack.c.l.b16 %v874
        %v2289 = vunpack.c.h.b16 %v874
        %v2290 = vunpack.c.l.b16 %v875
        %v2291 = vunpack.c.l.b16 %v876
        %v2292 = vunpack.c.h.b16 %v876
        %v2293 = vunpack.c.l.b16 %v877
        %v2294 = vunpack.c.l.b16 %v878
        %v2295 = vunpack.c.h.b16 %v878
        %v2296 = vunpack.c.l.b16 %v879
        %v2297 = vunpack.c.l.b16 %v880
        %v2298 = vunpack.c.h.b16 %v880
        %v2299 = vunpack.c.l.b16 %v881
        %v2300 = vunpack.c.l.b16 %v882
        %v2301 = vunpack.c.h.b16 %v882
        %v2302 = vunpack.c.l.b16 %v883
        %v2303 = vunpack.c.l.b16 %v884
        %v2304 = vunpack.c.h.b16 %v884
        %v2305 = vunpack.c.l.b16 %v885
        %v2306 = vunpack.c.l.b16 %v886
        %v2307 = vunpack.c.h.b16 %v886
        %v2308 = vunpack.c.l.b16 %v887
        %v2309 = vunpack.c.l.b16 %v888
        %v2310 = vunpack.c.h.b16 %v888
        %v2311 = vunpack.c.l.b16 %v889
        %v2312 = vunpack.c.l.b16 %v890
        %v2313 = vunpack.c.h.b16 %v890
        %v2314 = vunpack.c.l.b16 %v891
        %v2315 = vunpack.c.l.b16 %v892
        %v2316 = vunpack.c.h.b16 %v892
        %v2317 = vunpack.c.l.b16 %v893
        %v2318 = vunpack.c.l.b16 %v894
        %v2319 = vunpack.c.h.b16 %v894
        %v2320 = vunpack.c.l.b16 %v895
        %v2321 = vunpack.c.l.b16 %v896
        %v2322 = vunpack.c.h.b16 %v896
        %v2323 = vunpack.c.l.b16 %v897
        %v2324 = vunpack.c.l.b16 %v898
        %v2325 = vunpack.c.h.b16 %v898
        %v2326 = vunpack.c.l.b16 %v899
        %v2327 = vunpack.c.l.b16 %v900
        %v2328 = vunpack.c.h.b16 %v900
        %v2329 = vunpack.c.l.b16 %v901
        %v2330 = vunpack.c.l.b16 %v902
        %v2331 = vunpack.c.h.b16 %v902
        %v2332 = vunpack.c.l.b16 %v903
        %v2333 = vunpack.c.l.b16 %v904
        %v2334 = vunpack.c.h.b16 %v904
        %v2335 = vunpack.c.l.b16 %v905
        %v2336 = vunpack.c.l.b16 %v906
        %v2337 = vunpack.c.h.b16 %v906
        %v2338 = vunpack.c.l.b16 %v907
        %v2339 = vunpack.c.l.b16 %v908
        %v2340 = vunpack.c.h.b16 %v908
        %v2341 = vunpack.c.l.b16 %v909
        %v2342 = vunpack.c.l.b16 %v910
        %v2343 = vunpack.c.h.b16 %v910
        %v2344 = vunpack.c.l.b16 %v911
        %v2345 = vunpack.c.l.b16 %v912
        %v2346 = vunpack.c.h.b16 %v912
        %v2347 = vunpack.c.l.b16 %v913
        %v2348 = vunpack.c.l.b16 %v914
        %v2349 = vunpack.c.h.b16 %v914
        %v2350 = vunpack.c.l.b16 %v915
        %v2351 = vunpack.c.l.b16 %v916
        %v2352 = vunpack.c.h.b16 %v916
        %v2353 = vunpack.c.l.b16 %v917
        %v2354 = vunpack.c.l.b16 %v918
        %v2355 = vunpack.c.h.b16 %v918
        %v2356 = vunpack.c.l.b16 %v919
        %v2357 = vunpack.c.l.b16 %v920
        %v2358 = vunpack.c.h.b16 %v920
        %v2359 = vunpack.c.l.b16 %v921
        %v2360 = vunpack.c.l.b16 %v922
        %v2361 = vunpack.c.h.b16 %v922
        %v2362 = vunpack.c.l.b16 %v923
        %v2363 = vunpack.c.l.b16 %v924
        %v2364 = vunpack.c.h.b16 %v924
        %v2365 = vunpack.c.l.b16 %v925
        %v2366 = vunpack.c.l.b16 %v926
        %v2367 = vunpack.c.h.b16 %v926
        %v2368 = vunpack.c.l.b16 %v927
        %v2369 = vunpack.c.l.b16 %v928
        %v2370 = vunpack.c.h.b16 %v928
        %v2371 = vunpack.c.l.b16 %v929
        %v2372 = vunpack.c.l.b16 %v930
        %v2373 = vunpack.c.h.b16 %v930
        %v2374 = vunpack.c.l.b16 %v931
        %v2375 = vunpack.c.l.b16 %v932
        %v2376 = vunpack.c.h.b16 %v932
        %v2377 = vunpack.c.l.b16 %v933
        %v2378 = vunpack.c.l.b16 %v934
        %v2379 = vunpack.c.h.b16 %v934
        %v2380 = vunpack.c.l.b16 %v935
        %v2381 = vunpack.c.l.b16 %v936
        %v2382 = vunpack.c.h.b16 %v936
        %v2383 = vunpack.c.l.b16 %v937
        %v2384 = vunpack.c.l.b16 %v938
        %v2385 = vunpack.c.h.b16 %v938
        %v2386 = vunpack.c.l.b16 %v939
        %v2387 = vunpack.c.l.b16 %v940
        %v2388 = vunpack.c.h.b16 %v940
        %v2389 = vunpack.c.l.b16 %v941
        %v2390 = vunpack.c.l.b16 %v942
        %v2391 = vunpack.c.h.b16 %v942
        %v2392 = vunpack.c.l.b16 %v943
        %v2393 = vunpack.c.l.b16 %v944
        %v2394 = vunpack.c.h.b16 %v944
        %v2395 = vunpack.c.l.b16 %v945
        %v2396 = vunpack.c.l.b16 %v946
        %v2397 = vunpack.c.h.b16 %v946
        %v2398 = vunpack.c.l.b16 %v947
        %v2399 = vunpack.c.l.b16 %v948
        %v2400 = vunpack.c.h.b16 %v948
        %v2401 = vunpack.c.l.b16 %v949
        %v2402 = vunpack.c.l.b16 %v950
        %v2403 = vunpack.c.h.b16 %v950
        %v2404 = vunpack.c.l.b16 %v951
        %v2405 = vunpack.c.l.b16 %v952
        %v2406 = vunpack.c.h.b16 %v952
        %v2407 = vunpack.c.l.b16 %v953
        %v2408 = vpack.c.b16 %v2267, %v2264
        %v2409 = vpack.c.b16 %v2268, %v2265
        %v2410 = vpack.c.b16 %v2269, %v2266
        %v2411 = vpack.c.b16 %v2273, %v2270
        %v2412 = vpack.c.b16 %v2274, %v2271
        %v2413 = vpack.c.b16 %v2275, %v2272
        %v2414 = vpack.c.b16 %v2279, %v2276
        %v2415 = vpack.c.b16 %v2280, %v2277
        %v2416 = vpack.c.b16 %v2281, %v2278
        %v2417 = vpack.c.b16 %v2285, %v2282
        %v2418 = vpack.c.b16 %v2286, %v2283
        %v2419 = vpack.c.b16 %v2287, %v2284
        %v2420 = vpack.c.b16 %v2291, %v2288
        %v2421 = vpack.c.b16 %v2292, %v2289
        %v2422 = vpack.c.b16 %v2293, %v2290
        %v2423 = vpack.c.b16 %v2297, %v2294
        %v2424 = vpack.c.b16 %v2298, %v2295
        %v2425 = vpack.c.b16 %v2299, %v2296
        %v2426 = vpack.c.b16 %v2303, %v2300
        %v2427 = vpack.c.b16 %v2304, %v2301
        %v2428 = vpack.c.b16 %v2305, %v2302
        %v2429 = vpack.c.b16 %v2309, %v2306
        %v2430 = vpack.c.b16 %v2310, %v2307
        %v2431 = vpack.c.b16 %v2311, %v2308
        %v2432 = vpack.c.b16 %v2315, %v2312
        %v2433 = vpack.c.b16 %v2316, %v2313
        %v2434 = vpack.c.b16 %v2317, %v2314
        %v2435 = vpack.c.b16 %v2321, %v2318
        %v2436 = vpack.c.b16 %v2322, %v2319
        %v2437 = vpack.c.b16 %v2323, %v2320
        %v2438 = vpack.c.b16 %v2327, %v2324
        %v2439 = vpack.c.b16 %v2328, %v2325
        %v2440 = vpack.c.b16 %v2329, %v2326
        %v2441 = vpack.c.b16 %v2333, %v2330
        %v2442 = vpack.c.b16 %v2334, %v2331
        %v2443 = vpack.c.b16 %v2335, %v2332
        %v2444 = vpack.c.b16 %v2339, %v2336
        %v2445 = vpack.c.b16 %v2340, %v2337
        %v2446 = vpack.c.b16 %v2341, %v2338
        %v2447 = vpack.c.b16 %v2345, %v2342
        %v2448 = vpack.c.b16 %v2346, %v2343
        %v2449 = vpack.c.b16 %v2347, %v2344
        %v2450 = vpack.c.b16 %v2351, %v2348
        %v2451 = vpack.c.b16 %v2352, %v2349
        %v2452 = vpack.c.b16 %v2353, %v2350
        %v2453 = vpack.c.b16 %v2357, %v2354
        %v2454 = vpack.c.b16 %v2358, %v2355
        %v2455 = vpack.c.b16 %v2359, %v2356
        %v2456 = vpack.c.b16 %v2363, %v2360
        %v2457 = vpack.c.b16 %v2364, %v2361
        %v2458 = vpack.c.b16 %v2365, %v2362
        %v2459 = vpack.c.b16 %v2369, %v2366
        %v2460 = vpack.c.b16 %v2370, %v2367
        %v2461 = vpack.c.b16 %v2371, %v2368
        %v2462 = vpack.c.b16 %v2375, %v2372
        %v2463 = vpack.c.b16 %v2376, %v2373
        %v2464 = vpack.c.b16 %v2377, %v2374
        %v2465 = vpack.c.b16 %v2381, %v2378
        %v2466 = vpack.c.b16 %v2382, %v2379
        %v2467 = vpack.c.b16 %v2383, %v2380
        %v2468 = vpack.c.b16 %v2387, %v2384
        %v2469 = vpack.c.b16 %v2388, %v2385
        %v2470 = vpack.c.b16 %v2389, %v2386
        %v2471 = vpack.c.b16 %v2393, %v2390
        %v2472 = vpack.c.b16 %v2394, %v2391
        %v2473 = vpack.c.b16 %v2395, %v2392
        %v2474 = vpack.c.b16 %v2399, %v2396
        %v2475 = vpack.c.b16 %v2400, %v2397
        %v2476 = vpack.c.b16 %v2401, %v2398
        %v2477 = vpack.c.b16 %v2405, %v2402
        %v2478 = vpack.c.b16 %v2406, %v2403
        %v2479 = vpack.c.b16 %v2407, %v2404
        %2552 = vmatprep.subr.bf16.mxu0 %v2409
        %2553 = vmatpush1.bf16.msra.mxu0 %v2408
        %2554 = vmatprep.subr.bf16.mxu0 %v2412
        %2555 = vmatpush1.bf16.msra.mxu0 %v2411
        %2556 = vmatprep.subr.bf16.mxu0 %v2415
        %2557 = vmatpush1.bf16.msra.mxu0 %v2414
        %2558 = vmatprep.subr.bf16.mxu0 %v2418
        %2559 = vmatpush1.bf16.msra.mxu0 %v2417
        %2560 = vmatprep.subr.bf16.mxu0 %v2421
        %2561 = vmatpush1.bf16.msra.mxu0 %v2420
        %2562 = vmatprep.subr.bf16.mxu0 %v2424
        %2563 = vmatpush1.bf16.msra.mxu0 %v2423
        %2564 = vmatprep.subr.bf16.mxu0 %v2427
        %2565 = vmatpush1.bf16.msra.mxu0 %v2426
        %2566 = vmatprep.subr.bf16.mxu0 %v2430
        %2567 = vmatpush1.bf16.msra.mxu0 %v2429
        %2568 = vmatprep.subr.bf16.mxu0 %v2433
        %2569 = vmatpush1.bf16.msra.mxu0 %v2432
        %2570 = vmatprep.subr.bf16.mxu0 %v2436
        %2571 = vmatpush1.bf16.msra.mxu0 %v2435
        %2572 = vmatprep.subr.bf16.mxu0 %v2439
        %2573 = vmatpush1.bf16.msra.mxu0 %v2438
        %2574 = vmatprep.subr.bf16.mxu0 %v2442
        %2575 = vmatpush1.bf16.msra.mxu0 %v2441
        %2576 = vmatprep.subr.bf16.mxu0 %v2445
        %2577 = vmatpush1.bf16.msra.mxu0 %v2444
        %2578 = vmatprep.subr.bf16.mxu0 %v2448
        %2579 = vmatpush1.bf16.msra.mxu0 %v2447
        %2580 = vmatprep.subr.bf16.mxu0 %v2451
        %2581 = vmatpush1.bf16.msra.mxu0 %v2450
        %2582 = vmatprep.subr.bf16.mxu0 %v2454
        %2583 = vmatpush1.bf16.msra.mxu0 %v2453
        %2584 = vmatprep.mubr.bf16.mxu0 %v596
        %2585 = vmatmul.mubr.bf16.gmra.mrb[0].mxu0 %v504
        %v2586 = vpop.f32.mrb[0].mxu0
        %v2587 = vadd.f32 %v1688, %v2586
        %v2588 = vpop.f32.mrb[0].mxu0
        %v2589 = vadd.f32 %v1690, %v2588
        %v2590 = vpop.f32.mrb[0].mxu0
        %v2591 = vadd.f32 %v1692, %v2590
        %v2592 = vpop.f32.mrb[0].mxu0
        %v2593 = vadd.f32 %v1694, %v2592
        %2594 = vmatprep.mubr.bf16.mxu0 %v608
        %2595 = vmatmul.mubr.bf16.gmra.mrb[0].mxu0 %v505
        %v2596 = vpop.f32.mrb[0].mxu0
        %v2597 = vadd.f32 %v1698, %v2596
        %v2598 = vpop.f32.mrb[0].mxu0
        %v2599 = vadd.f32 %v1700, %v2598
        %v2600 = vpop.f32.mrb[0].mxu0
        %v2601 = vadd.f32 %v1702, %v2600
        %v2602 = vpop.f32.mrb[0].mxu0
        %v2603 = vadd.f32 %v1704, %v2602
        %2604 = vmatprep.mubr.bf16.mxu0 %v620
        %2605 = vmatmul.mubr.bf16.gmra.mrb[0].mxu0 %v506
        %v2606 = vpop.f32.mrb[0].mxu0
        %v2607 = vadd.f32 %v1708, %v2606
        %v2608 = vpop.f32.mrb[0].mxu0
        %v2609 = vadd.f32 %v1710, %v2608
        %v2610 = vpop.f32.mrb[0].mxu0
        %v2611 = vadd.f32 %v1712, %v2610
        %v2612 = vpop.f32.mrb[0].mxu0
        %v2613 = vadd.f32 %v1714, %v2612
        %2614 = vmatprep.mubr.bf16.mxu0 %v632
        %2615 = vmatmul.mubr.bf16.gmra.mrb[0].mxu0 %v507
        %v2616 = vpop.f32.mrb[0].mxu0
        %v2617 = vadd.f32 %v1718, %v2616
        %v2618 = vpop.f32.mrb[0].mxu0
        %v2619 = vadd.f32 %v1720, %v2618
        %v2620 = vpop.f32.mrb[0].mxu0
        %v2621 = vadd.f32 %v1722, %v2620
        %v2622 = vpop.f32.mrb[0].mxu0
        %v2623 = vadd.f32 %v1724, %v2622
        %2624 = vmatprep.mubr.bf16.mxu0 %v644
        %2625 = vmatmul.mubr.bf16.gmra.mrb[0].mxu0 %v508
        %v2626 = vpop.f32.mrb[0].mxu0
        %v2627 = vadd.f32 %v1728, %v2626
        %v2628 = vpop.f32.mrb[0].mxu0
        %v2629 = vadd.f32 %v1730, %v2628
        %v2630 = vpop.f32.mrb[0].mxu0
        %v2631 = vadd.f32 %v1732, %v2630
        %v2632 = vpop.f32.mrb[0].mxu0
        %v2633 = vadd.f32 %v1734, %v2632
        %2634 = vmatprep.mubr.bf16.mxu0 %v656
        %2635 = vmatmul.mubr.bf16.gmra.mrb[0].mxu0 %v509
        %v2636 = vpop.f32.mrb[0].mxu0
        %v2637 = vadd.f32 %v1738, %v2636
        %v2638 = vpop.f32.mrb[0].mxu0
        %v2639 = vadd.f32 %v1740, %v2638
        %v2640 = vpop.f32.mrb[0].mxu0
        %v2641 = vadd.f32 %v1742, %v2640
        %v2642 = vpop.f32.mrb[0].mxu0
        %v2643 = vadd.f32 %v1744, %v2642
        %2644 = vmatprep.mubr.bf16.mxu0 %v668
        %2645 = vmatmul.mubr.bf16.gmra.mrb[0].mxu0 %v510
        %v2646 = vpop.f32.mrb[0].mxu0
        %v2647 = vadd.f32 %v1748, %v2646
        %v2648 = vpop.f32.mrb[0].mxu0
        %v2649 = vadd.f32 %v1750, %v2648
        %v2650 = vpop.f32.mrb[0].mxu0
        %v2651 = vadd.f32 %v1752, %v2650
        %v2652 = vpop.f32.mrb[0].mxu0
        %v2653 = vadd.f32 %v1754, %v2652
        %2654 = vmatprep.mubr.bf16.mxu0 %v680
        %2655 = vmatmul.mubr.bf16.gmra.mrb[0].mxu0 %v511
        %v2656 = vpop.f32.mrb[0].mxu0
        %v2657 = vadd.f32 %v1758, %v2656
        %v2658 = vpop.f32.mrb[0].mxu0
        %v2659 = vadd.f32 %v1760, %v2658
        %v2660 = vpop.f32.mrb[0].mxu0
        %v2661 = vadd.f32 %v1762, %v2660
        %v2662 = vpop.f32.mrb[0].mxu0
        %v2663 = vadd.f32 %v1764, %v2662
        %2664 = vmatprep.mubr.bf16.mxu0 %v692
        %2665 = vmatmul.mubr.bf16.gmra.mrb[0].mxu0 %v512
        %v2666 = vpop.f32.mrb[0].mxu0
        %v2667 = vadd.f32 %v1768, %v2666
        %v2668 = vpop.f32.mrb[0].mxu0
        %v2669 = vadd.f32 %v1770, %v2668
        %v2670 = vpop.f32.mrb[0].mxu0
        %v2671 = vadd.f32 %v1772, %v2670
        %v2672 = vpop.f32.mrb[0].mxu0
        %v2673 = vadd.f32 %v1774, %v2672
        %2674 = vmatprep.mubr.bf16.mxu0 %v704
        %2675 = vmatmul.mubr.bf16.gmra.mrb[0].mxu0 %v513
        %v2676 = vpop.f32.mrb[0].mxu0
        %v2677 = vadd.f32 %v1778, %v2676
        %v2678 = vpop.f32.mrb[0].mxu0
        %v2679 = vadd.f32 %v1780, %v2678
        %v2680 = vpop.f32.mrb[0].mxu0
        %v2681 = vadd.f32 %v1782, %v2680
        %v2682 = vpop.f32.mrb[0].mxu0
        %v2683 = vadd.f32 %v1784, %v2682
        %2684 = vmatprep.mubr.bf16.mxu0 %v716
        %2685 = vmatmul.mubr.bf16.gmra.mrb[0].mxu0 %v514
        %v2686 = vpop.f32.mrb[0].mxu0
        %v2687 = vadd.f32 %v1788, %v2686
        %v2688 = vpop.f32.mrb[0].mxu0
        %v2689 = vadd.f32 %v1790, %v2688
        %v2690 = vpop.f32.mrb[0].mxu0
        %v2691 = vadd.f32 %v1792, %v2690
        %v2692 = vpop.f32.mrb[0].mxu0
        %v2693 = vadd.f32 %v1794, %v2692
        %2694 = vmatprep.mubr.bf16.mxu0 %v728
        %2695 = vmatmul.mubr.bf16.gmra.mrb[0].mxu0 %v515
        %v2696 = vpop.f32.mrb[0].mxu0
        %v2697 = vadd.f32 %v1798, %v2696
        %v2698 = vpop.f32.mrb[0].mxu0
        %v2699 = vadd.f32 %v1800, %v2698
        %v2700 = vpop.f32.mrb[0].mxu0
        %v2701 = vadd.f32 %v1802, %v2700
        %v2702 = vpop.f32.mrb[0].mxu0
        %v2703 = vadd.f32 %v1804, %v2702
        %2704 = vmatprep.mubr.bf16.mxu0 %v740
        %2705 = vmatmul.mubr.bf16.gmra.mrb[0].mxu0 %v516
        %v2706 = vpop.f32.mrb[0].mxu0
        %v2707 = vadd.f32 %v1808, %v2706
        %v2708 = vpop.f32.mrb[0].mxu0
        %v2709 = vadd.f32 %v1810, %v2708
        %v2710 = vpop.f32.mrb[0].mxu0
        %v2711 = vadd.f32 %v1812, %v2710
        %v2712 = vpop.f32.mrb[0].mxu0
        %v2713 = vadd.f32 %v1814, %v2712
        %2714 = vmatprep.mubr.bf16.mxu0 %v752
        %2715 = vmatmul.mubr.bf16.gmra.mrb[0].mxu0 %v517
        %v2716 = vpop.f32.mrb[0].mxu0
        %v2717 = vadd.f32 %v1818, %v2716
        %v2718 = vpop.f32.mrb[0].mxu0
        %v2719 = vadd.f32 %v1820, %v2718
        %v2720 = vpop.f32.mrb[0].mxu0
        %v2721 = vadd.f32 %v1822, %v2720
        %v2722 = vpop.f32.mrb[0].mxu0
        %v2723 = vadd.f32 %v1824, %v2722
        %2724 = vmatprep.mubr.bf16.mxu0 %v764
        %2725 = vmatmul.mubr.bf16.gmra.mrb[0].mxu0 %v518
        %v2726 = vpop.f32.mrb[0].mxu0
        %v2727 = vadd.f32 %v1828, %v2726
        %v2728 = vpop.f32.mrb[0].mxu0
        %v2729 = vadd.f32 %v1830, %v2728
        %v2730 = vpop.f32.mrb[0].mxu0
        %v2731 = vadd.f32 %v1832, %v2730
        %v2732 = vpop.f32.mrb[0].mxu0
        %v2733 = vadd.f32 %v1834, %v2732
        %2734 = vmatprep.mubr.bf16.mxu0 %v776
        %2735 = vmatmul.mubr.bf16.gmra.mrb[0].mxu0 %v519
        %v2736 = vpop.f32.mrb[0].mxu0
        %v2737 = vadd.f32 %v1838, %v2736
        %v2738 = vpop.f32.mrb[0].mxu0
        %v2739 = vadd.f32 %v1840, %v2738
        %v2740 = vpop.f32.mrb[0].mxu0
        %v2741 = vadd.f32 %v1842, %v2740
        %v2742 = vpop.f32.mrb[0].mxu0
        %v2743 = vadd.f32 %v1844, %v2742
        %2744 = vdwg.mxu0
        %2745 = vmatprep.subr.bf16.mxu0 %v2457
        %2746 = vmatpush1.bf16.msra.mxu0 %v2456
        %2747 = vmatprep.subr.bf16.mxu0 %v2460
        %2748 = vmatpush1.bf16.msra.mxu0 %v2459
        %2749 = vmatprep.subr.bf16.mxu0 %v2463
        %2750 = vmatpush1.bf16.msra.mxu0 %v2462
        %2751 = vmatprep.subr.bf16.mxu0 %v2466
        %2752 = vmatpush1.bf16.msra.mxu0 %v2465
        %2753 = vmatprep.subr.bf16.mxu0 %v2469
        %2754 = vmatpush1.bf16.msra.mxu0 %v2468
        %2755 = vmatprep.subr.bf16.mxu0 %v2472
        %2756 = vmatpush1.bf16.msra.mxu0 %v2471
        %2757 = vmatprep.subr.bf16.mxu0 %v2475
        %2758 = vmatpush1.bf16.msra.mxu0 %v2474
        %2759 = vmatprep.subr.bf16.mxu0 %v2478
        %2760 = vmatpush1.bf16.msra.mxu0 %v2477
        %2761 = vmatprep.subr.bf16.mxu0 0
        %2762 = vmatpush1.bf16.msra.mxu0 0
        %2763 = vmatprep.subr.bf16.mxu0 0
        %2764 = vmatpush1.bf16.msra.mxu0 0
        %2765 = vmatprep.subr.bf16.mxu0 0
        %2766 = vmatpush1.bf16.msra.mxu0 0
        %2767 = vmatprep.subr.bf16.mxu0 0
        %2768 = vmatpush1.bf16.msra.mxu0 0
        %2769 = vmatprep.subr.bf16.mxu0 0
        %2770 = vmatpush1.bf16.msra.mxu0 0
        %2771 = vmatprep.subr.bf16.mxu0 0
        %2772 = vmatpush1.bf16.msra.mxu0 0
        %2773 = vmatprep.subr.bf16.mxu0 0
        %2774 = vmatpush1.bf16.msra.mxu0 0
        %2775 = vmatprep.subr.bf16.mxu0 0
        %2776 = vmatpush1.bf16.msra.mxu0 0
        %2777 = vmatprep.mubr.bf16.mxu0 0
        %2778 = vmatmul.mubr.bf16.gmra.mrb[0].mxu0 %v796
        %v2779 = vpop.f32.mrb[0].mxu0
        %v2780 = vadd.f32 %v2587, %v2779
        %v2781 = vpop.f32.mrb[0].mxu0
        %v2782 = vadd.f32 %v2589, %v2781
        %v2783 = vpop.f32.mrb[0].mxu0
        %v2784 = vadd.f32 %v2591, %v2783
        %v2785 = vpop.f32.mrb[0].mxu0
        %v2786 = vadd.f32 %v2593, %v2785
        %2787 = vmatprep.mubr.bf16.mxu0 0
        %2788 = vmatmul.mubr.bf16.gmra.mrb[0].mxu0 %v799
        %v2789 = vpop.f32.mrb[0].mxu0
        %v2790 = vadd.f32 %v2597, %v2789
        %v2791 = vpop.f32.mrb[0].mxu0
        %v2792 = vadd.f32 %v2599, %v2791
        %v2793 = vpop.f32.mrb[0].mxu0
        %v2794 = vadd.f32 %v2601, %v2793
        %v2795 = vpop.f32.mrb[0].mxu0
        %v2796 = vadd.f32 %v2603, %v2795
        %2797 = vmatprep.mubr.bf16.mxu0 0
        %2798 = vmatmul.mubr.bf16.gmra.mrb[0].mxu0 %v802
        %v2799 = vpop.f32.mrb[0].mxu0
        %v2800 = vadd.f32 %v2607, %v2799
        %v2801 = vpop.f32.mrb[0].mxu0
        %v2802 = vadd.f32 %v2609, %v2801
        %v2803 = vpop.f32.mrb[0].mxu0
        %v2804 = vadd.f32 %v2611, %v2803
        %v2805 = vpop.f32.mrb[0].mxu0
        %v2806 = vadd.f32 %v2613, %v2805
        %2807 = vmatprep.mubr.bf16.mxu0 0
        %2808 = vmatmul.mubr.bf16.gmra.mrb[0].mxu0 %v805
        %v2809 = vpop.f32.mrb[0].mxu0
        %v2810 = vadd.f32 %v2617, %v2809
        %v2811 = vpop.f32.mrb[0].mxu0
        %v2812 = vadd.f32 %v2619, %v2811
        %v2813 = vpop.f32.mrb[0].mxu0
        %v2814 = vadd.f32 %v2621, %v2813
        %v2815 = vpop.f32.mrb[0].mxu0
        %v2816 = vadd.f32 %v2623, %v2815
        %2817 = vmatprep.mubr.bf16.mxu0 0
        %2818 = vmatmul.mubr.bf16.gmra.mrb[0].mxu0 %v808
        %v2819 = vpop.f32.mrb[0].mxu0
        %v2820 = vadd.f32 %v2627, %v2819
        %v2821 = vpop.f32.mrb[0].mxu0
        %v2822 = vadd.f32 %v2629, %v2821
        %v2823 = vpop.f32.mrb[0].mxu0
        %v2824 = vadd.f32 %v2631, %v2823
        %v2825 = vpop.f32.mrb[0].mxu0
        %v2826 = vadd.f32 %v2633, %v2825
        %2827 = vmatprep.mubr.bf16.mxu0 0
        %2828 = vmatmul.mubr.bf16.gmra.mrb[0].mxu0 %v811
        %v2829 = vpop.f32.mrb[0].mxu0
        %v2830 = vadd.f32 %v2637, %v2829
        %v2831 = vpop.f32.mrb[0].mxu0
        %v2832 = vadd.f32 %v2639, %v2831
        %v2833 = vpop.f32.mrb[0].mxu0
        %v2834 = vadd.f32 %v2641, %v2833
        %v2835 = vpop.f32.mrb[0].mxu0
        %v2836 = vadd.f32 %v2643, %v2835
        %2837 = vmatprep.mubr.bf16.mxu0 0
        %2838 = vmatmul.mubr.bf16.gmra.mrb[0].mxu0 %v814
        %v2839 = vpop.f32.mrb[0].mxu0
        %v2840 = vadd.f32 %v2647, %v2839
        %v2841 = vpop.f32.mrb[0].mxu0
        %v2842 = vadd.f32 %v2649, %v2841
        %v2843 = vpop.f32.mrb[0].mxu0
        %v2844 = vadd.f32 %v2651, %v2843
        %v2845 = vpop.f32.mrb[0].mxu0
        %v2846 = vadd.f32 %v2653, %v2845
        %2847 = vmatprep.mubr.bf16.mxu0 0
        %2848 = vmatmul.mubr.bf16.gmra.mrb[0].mxu0 %v817
        %v2849 = vpop.f32.mrb[0].mxu0
        %v2850 = vadd.f32 %v2657, %v2849
        %v2851 = vpop.f32.mrb[0].mxu0
        %v2852 = vadd.f32 %v2659, %v2851
        %v2853 = vpop.f32.mrb[0].mxu0
        %v2854 = vadd.f32 %v2661, %v2853
        %v2855 = vpop.f32.mrb[0].mxu0
        %v2856 = vadd.f32 %v2663, %v2855
        %2857 = vmatprep.mubr.bf16.mxu0 0
        %2858 = vmatmul.mubr.bf16.gmra.mrb[0].mxu0 %v820
        %v2859 = vpop.f32.mrb[0].mxu0
        %v2860 = vadd.f32 %v2667, %v2859
        %v2861 = vpop.f32.mrb[0].mxu0
        %v2862 = vadd.f32 %v2669, %v2861
        %v2863 = vpop.f32.mrb[0].mxu0
        %v2864 = vadd.f32 %v2671, %v2863
        %v2865 = vpop.f32.mrb[0].mxu0
        %v2866 = vadd.f32 %v2673, %v2865
        %2867 = vmatprep.mubr.bf16.mxu0 0
        %2868 = vmatmul.mubr.bf16.gmra.mrb[0].mxu0 %v823
        %v2869 = vpop.f32.mrb[0].mxu0
        %v2870 = vadd.f32 %v2677, %v2869
        %v2871 = vpop.f32.mrb[0].mxu0
        %v2872 = vadd.f32 %v2679, %v2871
        %v2873 = vpop.f32.mrb[0].mxu0
        %v2874 = vadd.f32 %v2681, %v2873
        %v2875 = vpop.f32.mrb[0].mxu0
        %v2876 = vadd.f32 %v2683, %v2875
        %2877 = vmatprep.mubr.bf16.mxu0 0
        %2878 = vmatmul.mubr.bf16.gmra.mrb[0].mxu0 %v826
        %v2879 = vpop.f32.mrb[0].mxu0
        %v2880 = vadd.f32 %v2687, %v2879
        %v2881 = vpop.f32.mrb[0].mxu0
        %v2882 = vadd.f32 %v2689, %v2881
        %v2883 = vpop.f32.mrb[0].mxu0
        %v2884 = vadd.f32 %v2691, %v2883
        %v2885 = vpop.f32.mrb[0].mxu0
        %v2886 = vadd.f32 %v2693, %v2885
        %2887 = vmatprep.mubr.bf16.mxu0 0
        %2888 = vmatmul.mubr.bf16.gmra.mrb[0].mxu0 %v829
        %v2889 = vpop.f32.mrb[0].mxu0
        %v2890 = vadd.f32 %v2697, %v2889
        %v2891 = vpop.f32.mrb[0].mxu0
        %v2892 = vadd.f32 %v2699, %v2891
        %v2893 = vpop.f32.mrb[0].mxu0
        %v2894 = vadd.f32 %v2701, %v2893
        %v2895 = vpop.f32.mrb[0].mxu0
        %v2896 = vadd.f32 %v2703, %v2895
        %2897 = vmatprep.mubr.bf16.mxu0 0
        %2898 = vmatmul.mubr.bf16.gmra.mrb[0].mxu0 %v832
        %v2899 = vpop.f32.mrb[0].mxu0
        %v2900 = vadd.f32 %v2707, %v2899
        %v2901 = vpop.f32.mrb[0].mxu0
        %v2902 = vadd.f32 %v2709, %v2901
        %v2903 = vpop.f32.mrb[0].mxu0
        %v2904 = vadd.f32 %v2711, %v2903
        %v2905 = vpop.f32.mrb[0].mxu0
        %v2906 = vadd.f32 %v2713, %v2905
        %2907 = vmatprep.mubr.bf16.mxu0 0
        %2908 = vmatmul.mubr.bf16.gmra.mrb[0].mxu0 %v835
        %v2909 = vpop.f32.mrb[0].mxu0
        %v2910 = vadd.f32 %v2717, %v2909
        %v2911 = vpop.f32.mrb[0].mxu0
        %v2912 = vadd.f32 %v2719, %v2911
        %v2913 = vpop.f32.mrb[0].mxu0
        %v2914 = vadd.f32 %v2721, %v2913
        %v2915 = vpop.f32.mrb[0].mxu0
        %v2916 = vadd.f32 %v2723, %v2915
        %2917 = vmatprep.mubr.bf16.mxu0 0
        %2918 = vmatmul.mubr.bf16.gmra.mrb[0].mxu0 %v838
        %v2919 = vpop.f32.mrb[0].mxu0
        %v2920 = vadd.f32 %v2727, %v2919
        %v2921 = vpop.f32.mrb[0].mxu0
        %v2922 = vadd.f32 %v2729, %v2921
        %v2923 = vpop.f32.mrb[0].mxu0
        %v2924 = vadd.f32 %v2731, %v2923
        %v2925 = vpop.f32.mrb[0].mxu0
        %v2926 = vadd.f32 %v2733, %v2925
        %2927 = vmatprep.mubr.bf16.mxu0 0
        %2928 = vmatmul.mubr.bf16.gmra.mrb[0].mxu0 %v841
        %v2929 = vpop.f32.mrb[0].mxu0
        %v2930 = vadd.f32 %v2737, %v2929
        %v2931 = vpop.f32.mrb[0].mxu0
        %v2932 = vadd.f32 %v2739, %v2931
        %v2933 = vpop.f32.mrb[0].mxu0
        %v2934 = vadd.f32 %v2741, %v2933
        %v2935 = vpop.f32.mrb[0].mxu0
        %v2936 = vadd.f32 %v2743, %v2935
        %2937 = vdwg.mxu0
        %2938 = vmatprep.subr.bf16.mxu0 0
        %2939 = vmatpush1.bf16.msra.mxu0 %v2410
        %2940 = vmatprep.subr.bf16.mxu0 0
        %2941 = vmatpush1.bf16.msra.mxu0 %v2413
        %2942 = vmatprep.subr.bf16.mxu0 0
        %2943 = vmatpush1.bf16.msra.mxu0 %v2416
        %2944 = vmatprep.subr.bf16.mxu0 0
        %2945 = vmatpush1.bf16.msra.mxu0 %v2419
        %2946 = vmatprep.subr.bf16.mxu0 0
        %2947 = vmatpush1.bf16.msra.mxu0 %v2422
        %2948 = vmatprep.subr.bf16.mxu0 0
        %2949 = vmatpush1.bf16.msra.mxu0 %v2425
        %2950 = vmatprep.subr.bf16.mxu0 0
        %2951 = vmatpush1.bf16.msra.mxu0 %v2428
        %2952 = vmatprep.subr.bf16.mxu0 0
        %2953 = vmatpush1.bf16.msra.mxu0 %v2431
        %2954 = vmatprep.subr.bf16.mxu0 0
        %2955 = vmatpush1.bf16.msra.mxu0 %v2434
        %2956 = vmatprep.subr.bf16.mxu0 0
        %2957 = vmatpush1.bf16.msra.mxu0 %v2437
        %2958 = vmatprep.subr.bf16.mxu0 0
        %2959 = vmatpush1.bf16.msra.mxu0 %v2440
        %2960 = vmatprep.subr.bf16.mxu0 0
        %2961 = vmatpush1.bf16.msra.mxu0 %v2443
        %2962 = vmatprep.subr.bf16.mxu0 0
        %2963 = vmatpush1.bf16.msra.mxu0 %v2446
        %2964 = vmatprep.subr.bf16.mxu0 0
        %2965 = vmatpush1.bf16.msra.mxu0 %v2449
        %2966 = vmatprep.subr.bf16.mxu0 0
        %2967 = vmatpush1.bf16.msra.mxu0 %v2452
        %2968 = vmatprep.subr.bf16.mxu0 0
        %2969 = vmatpush1.bf16.msra.mxu0 %v2455
        %2970 = vmatprep.mubr.bf16.mxu0 %v596
        %2971 = vmatmul.mubr.bf16.gmra.mrb[0].mxu0 %v504
        %v2972 = vpop.f32.mrb[0].mxu0
        %v2973 = vadd.f32 %v2042, %v2972
        %v2974 = vpop.f32.mrb[0].mxu0
        %v2975 = vpop.f32.mrb[0].mxu0
        %v2976 = vadd.f32 %v2045, %v2975
        %v2977 = vpop.f32.mrb[0].mxu0
        %2978 = vmatprep.mubr.bf16.mxu0 %v608
        %2979 = vmatmul.mubr.bf16.gmra.mrb[0].mxu0 %v505
        %v2980 = vpop.f32.mrb[0].mxu0
        %v2981 = vadd.f32 %v2050, %v2980
        %v2982 = vpop.f32.mrb[0].mxu0
        %v2983 = vpop.f32.mrb[0].mxu0
        %v2984 = vadd.f32 %v2053, %v2983
        %v2985 = vpop.f32.mrb[0].mxu0
        %2986 = vmatprep.mubr.bf16.mxu0 %v620
        %2987 = vmatmul.mubr.bf16.gmra.mrb[0].mxu0 %v506
        %v2988 = vpop.f32.mrb[0].mxu0
        %v2989 = vadd.f32 %v2058, %v2988
        %v2990 = vpop.f32.mrb[0].mxu0
        %v2991 = vpop.f32.mrb[0].mxu0
        %v2992 = vadd.f32 %v2061, %v2991
        %v2993 = vpop.f32.mrb[0].mxu0
        %2994 = vmatprep.mubr.bf16.mxu0 %v632
        %2995 = vmatmul.mubr.bf16.gmra.mrb[0].mxu0 %v507
        %v2996 = vpop.f32.mrb[0].mxu0
        %v2997 = vadd.f32 %v2066, %v2996
        %v2998 = vpop.f32.mrb[0].mxu0
        %v2999 = vpop.f32.mrb[0].mxu0
        %v3000 = vadd.f32 %v2069, %v2999
        %v3001 = vpop.f32.mrb[0].mxu0
        %3002 = vmatprep.mubr.bf16.mxu0 %v644
        %3003 = vmatmul.mubr.bf16.gmra.mrb[0].mxu0 %v508
        %v3004 = vpop.f32.mrb[0].mxu0
        %v3005 = vadd.f32 %v2074, %v3004
        %v3006 = vpop.f32.mrb[0].mxu0
        %v3007 = vpop.f32.mrb[0].mxu0
        %v3008 = vadd.f32 %v2077, %v3007
        %v3009 = vpop.f32.mrb[0].mxu0
        %3010 = vmatprep.mubr.bf16.mxu0 %v656
        %3011 = vmatmul.mubr.bf16.gmra.mrb[0].mxu0 %v509
        %v3012 = vpop.f32.mrb[0].mxu0
        %v3013 = vadd.f32 %v2082, %v3012
        %v3014 = vpop.f32.mrb[0].mxu0
        %v3015 = vpop.f32.mrb[0].mxu0
        %v3016 = vadd.f32 %v2085, %v3015
        %v3017 = vpop.f32.mrb[0].mxu0
        %3018 = vmatprep.mubr.bf16.mxu0 %v668
        %3019 = vmatmul.mubr.bf16.gmra.mrb[0].mxu0 %v510
        %v3020 = vpop.f32.mrb[0].mxu0
        %v3021 = vadd.f32 %v2090, %v3020
        %v3022 = vpop.f32.mrb[0].mxu0
        %v3023 = vpop.f32.mrb[0].mxu0
        %v3024 = vadd.f32 %v2093, %v3023
        %v3025 = vpop.f32.mrb[0].mxu0
        %3026 = vmatprep.mubr.bf16.mxu0 %v680
        %3027 = vmatmul.mubr.bf16.gmra.mrb[0].mxu0 %v511
        %v3028 = vpop.f32.mrb[0].mxu0
        %v3029 = vadd.f32 %v2098, %v3028
        %v3030 = vpop.f32.mrb[0].mxu0
        %v3031 = vpop.f32.mrb[0].mxu0
        %v3032 = vadd.f32 %v2101, %v3031
        %v3033 = vpop.f32.mrb[0].mxu0
        %3034 = vmatprep.mubr.bf16.mxu0 %v692
        %3035 = vmatmul.mubr.bf16.gmra.mrb[0].mxu0 %v512
        %v3036 = vpop.f32.mrb[0].mxu0
        %v3037 = vadd.f32 %v2106, %v3036
        %v3038 = vpop.f32.mrb[0].mxu0
        %v3039 = vpop.f32.mrb[0].mxu0
        %v3040 = vadd.f32 %v2109, %v3039
        %v3041 = vpop.f32.mrb[0].mxu0
        %3042 = vmatprep.mubr.bf16.mxu0 %v704
        %3043 = vmatmul.mubr.bf16.gmra.mrb[0].mxu0 %v513
        %v3044 = vpop.f32.mrb[0].mxu0
        %v3045 = vadd.f32 %v2114, %v3044
        %v3046 = vpop.f32.mrb[0].mxu0
        %v3047 = vpop.f32.mrb[0].mxu0
        %v3048 = vadd.f32 %v2117, %v3047
        %v3049 = vpop.f32.mrb[0].mxu0
        %3050 = vmatprep.mubr.bf16.mxu0 %v716
        %3051 = vmatmul.mubr.bf16.gmra.mrb[0].mxu0 %v514
        %v3052 = vpop.f32.mrb[0].mxu0
        %v3053 = vadd.f32 %v2122, %v3052
        %v3054 = vpop.f32.mrb[0].mxu0
        %v3055 = vpop.f32.mrb[0].mxu0
        %v3056 = vadd.f32 %v2125, %v3055
        %v3057 = vpop.f32.mrb[0].mxu0
        %3058 = vmatprep.mubr.bf16.mxu0 %v728
        %3059 = vmatmul.mubr.bf16.gmra.mrb[0].mxu0 %v515
        %v3060 = vpop.f32.mrb[0].mxu0
        %v3061 = vadd.f32 %v2130, %v3060
        %v3062 = vpop.f32.mrb[0].mxu0
        %v3063 = vpop.f32.mrb[0].mxu0
        %v3064 = vadd.f32 %v2133, %v3063
        %v3065 = vpop.f32.mrb[0].mxu0
        %3066 = vmatprep.mubr.bf16.mxu0 %v740
        %3067 = vmatmul.mubr.bf16.gmra.mrb[0].mxu0 %v516
        %v3068 = vpop.f32.mrb[0].mxu0
        %v3069 = vadd.f32 %v2138, %v3068
        %v3070 = vpop.f32.mrb[0].mxu0
        %v3071 = vpop.f32.mrb[0].mxu0
        %v3072 = vadd.f32 %v2141, %v3071
        %v3073 = vpop.f32.mrb[0].mxu0
        %3074 = vmatprep.mubr.bf16.mxu0 %v752
        %3075 = vmatmul.mubr.bf16.gmra.mrb[0].mxu0 %v517
        %v3076 = vpop.f32.mrb[0].mxu0
        %v3077 = vadd.f32 %v2146, %v3076
        %v3078 = vpop.f32.mrb[0].mxu0
        %v3079 = vpop.f32.mrb[0].mxu0
        %v3080 = vadd.f32 %v2149, %v3079
        %v3081 = vpop.f32.mrb[0].mxu0
        %3082 = vmatprep.mubr.bf16.mxu0 %v764
        %3083 = vmatmul.mubr.bf16.gmra.mrb[0].mxu0 %v518
        %v3084 = vpop.f32.mrb[0].mxu0
        %v3085 = vadd.f32 %v2154, %v3084
        %v3086 = vpop.f32.mrb[0].mxu0
        %v3087 = vpop.f32.mrb[0].mxu0
        %v3088 = vadd.f32 %v2157, %v3087
        %v3089 = vpop.f32.mrb[0].mxu0
        %3090 = vmatprep.mubr.bf16.mxu0 %v776
        %3091 = vmatmul.mubr.bf16.gmra.mrb[0].mxu0 %v519
        %v3092 = vpop.f32.mrb[0].mxu0
        %v3093 = vadd.f32 %v2162, %v3092
        %v3094 = vpop.f32.mrb[0].mxu0
        %v3095 = vpop.f32.mrb[0].mxu0
        %v3096 = vadd.f32 %v2165, %v3095
        %v3097 = vpop.f32.mrb[0].mxu0
        %3098 = vdwg.mxu0
        %3099 = vmatprep.subr.bf16.mxu0 0
        %3100 = vmatpush1.bf16.msra.mxu0 %v2458
        %3101 = vmatprep.subr.bf16.mxu0 0
        %3102 = vmatpush1.bf16.msra.mxu0 %v2461
        %3103 = vmatprep.subr.bf16.mxu0 0
        %3104 = vmatpush1.bf16.msra.mxu0 %v2464
        %3105 = vmatprep.subr.bf16.mxu0 0
        %3106 = vmatpush1.bf16.msra.mxu0 %v2467
        %3107 = vmatprep.subr.bf16.mxu0 0
        %3108 = vmatpush1.bf16.msra.mxu0 %v2470
        %3109 = vmatprep.subr.bf16.mxu0 0
        %3110 = vmatpush1.bf16.msra.mxu0 %v2473
        %3111 = vmatprep.subr.bf16.mxu0 0
        %3112 = vmatpush1.bf16.msra.mxu0 %v2476
        %3113 = vmatprep.subr.bf16.mxu0 0
        %3114 = vmatpush1.bf16.msra.mxu0 %v2479
        %3115 = vmatprep.subr.bf16.mxu0 0
        %3116 = vmatpush1.bf16.msra.mxu0 0
        %3117 = vmatprep.subr.bf16.mxu0 0
        %3118 = vmatpush1.bf16.msra.mxu0 0
        %3119 = vmatprep.subr.bf16.mxu0 0
        %3120 = vmatpush1.bf16.msra.mxu0 0
        %3121 = vmatprep.subr.bf16.mxu0 0
        %3122 = vmatpush1.bf16.msra.mxu0 0
        %3123 = vmatprep.subr.bf16.mxu0 0
        %3124 = vmatpush1.bf16.msra.mxu0 0
        %3125 = vmatprep.subr.bf16.mxu0 0
        %3126 = vmatpush1.bf16.msra.mxu0 0
        %3127 = vmatprep.subr.bf16.mxu0 0
        %3128 = vmatpush1.bf16.msra.mxu0 0
        %3129 = vmatprep.subr.bf16.mxu0 0
        %3130 = vmatpush1.bf16.msra.mxu0 0
        %3131 = vmatprep.mubr.bf16.mxu0 0
        %3132 = vmatmul.mubr.bf16.gmra.mrb[0].mxu0 %v796
        %v3133 = vpop.f32.mrb[0].mxu0
        %v3134 = vadd.f32 %v2973, %v3133
        %v3135 = vpop.f32.mrb[0].mxu0
        %v3136 = vpop.f32.mrb[0].mxu0
        %v3137 = vadd.f32 %v2976, %v3136
        %v3138 = vpop.f32.mrb[0].mxu0
        %3139 = vmatprep.mubr.bf16.mxu0 0
        %3140 = vmatmul.mubr.bf16.gmra.mrb[0].mxu0 %v799
        %v3141 = vpop.f32.mrb[0].mxu0
        %v3142 = vadd.f32 %v2981, %v3141
        %v3143 = vpop.f32.mrb[0].mxu0
        %v3144 = vpop.f32.mrb[0].mxu0
        %v3145 = vadd.f32 %v2984, %v3144
        %v3146 = vpop.f32.mrb[0].mxu0
        %3147 = vmatprep.mubr.bf16.mxu0 0
        %3148 = vmatmul.mubr.bf16.gmra.mrb[0].mxu0 %v802
        %v3149 = vpop.f32.mrb[0].mxu0
        %v3150 = vadd.f32 %v2989, %v3149
        %v3151 = vpop.f32.mrb[0].mxu0
        %v3152 = vpop.f32.mrb[0].mxu0
        %v3153 = vadd.f32 %v2992, %v3152
        %v3154 = vpop.f32.mrb[0].mxu0
        %3155 = vmatprep.mubr.bf16.mxu0 0
        %3156 = vmatmul.mubr.bf16.gmra.mrb[0].mxu0 %v805
        %v3157 = vpop.f32.mrb[0].mxu0
        %v3158 = vadd.f32 %v2997, %v3157
        %v3159 = vpop.f32.mrb[0].mxu0
        %v3160 = vpop.f32.mrb[0].mxu0
        %v3161 = vadd.f32 %v3000, %v3160
        %v3162 = vpop.f32.mrb[0].mxu0
        %3163 = vmatprep.mubr.bf16.mxu0 0
        %3164 = vmatmul.mubr.bf16.gmra.mrb[0].mxu0 %v808
        %v3165 = vpop.f32.mrb[0].mxu0
        %v3166 = vadd.f32 %v3005, %v3165
        %v3167 = vpop.f32.mrb[0].mxu0
        %v3168 = vpop.f32.mrb[0].mxu0
        %v3169 = vadd.f32 %v3008, %v3168
        %v3170 = vpop.f32.mrb[0].mxu0
        %3171 = vmatprep.mubr.bf16.mxu0 0
        %3172 = vmatmul.mubr.bf16.gmra.mrb[0].mxu0 %v811
        %v3173 = vpop.f32.mrb[0].mxu0
        %v3174 = vadd.f32 %v3013, %v3173
        %v3175 = vpop.f32.mrb[0].mxu0
        %v3176 = vpop.f32.mrb[0].mxu0
        %v3177 = vadd.f32 %v3016, %v3176
        %v3178 = vpop.f32.mrb[0].mxu0
        %3179 = vmatprep.mubr.bf16.mxu0 0
        %3180 = vmatmul.mubr.bf16.gmra.mrb[0].mxu0 %v814
        %v3181 = vpop.f32.mrb[0].mxu0
        %v3182 = vadd.f32 %v3021, %v3181
        %v3183 = vpop.f32.mrb[0].mxu0
        %v3184 = vpop.f32.mrb[0].mxu0
        %v3185 = vadd.f32 %v3024, %v3184
        %v3186 = vpop.f32.mrb[0].mxu0
        %3187 = vmatprep.mubr.bf16.mxu0 0
        %3188 = vmatmul.mubr.bf16.gmra.mrb[0].mxu0 %v817
        %v3189 = vpop.f32.mrb[0].mxu0
        %v3190 = vadd.f32 %v3029, %v3189
        %v3191 = vpop.f32.mrb[0].mxu0
        %v3192 = vpop.f32.mrb[0].mxu0
        %v3193 = vadd.f32 %v3032, %v3192
        %v3194 = vpop.f32.mrb[0].mxu0
        %3195 = vmatprep.mubr.bf16.mxu0 0
        %3196 = vmatmul.mubr.bf16.gmra.mrb[0].mxu0 %v820
        %v3197 = vpop.f32.mrb[0].mxu0
        %v3198 = vadd.f32 %v3037, %v3197
        %v3199 = vpop.f32.mrb[0].mxu0
        %v3200 = vpop.f32.mrb[0].mxu0
        %v3201 = vadd.f32 %v3040, %v3200
        %v3202 = vpop.f32.mrb[0].mxu0
        %3203 = vmatprep.mubr.bf16.mxu0 0
        %3204 = vmatmul.mubr.bf16.gmra.mrb[0].mxu0 %v823
        %v3205 = vpop.f32.mrb[0].mxu0
        %v3206 = vadd.f32 %v3045, %v3205
        %v3207 = vpop.f32.mrb[0].mxu0
        %v3208 = vpop.f32.mrb[0].mxu0
        %v3209 = vadd.f32 %v3048, %v3208
        %v3210 = vpop.f32.mrb[0].mxu0
        %3211 = vmatprep.mubr.bf16.mxu0 0
        %3212 = vmatmul.mubr.bf16.gmra.mrb[0].mxu0 %v826
        %v3213 = vpop.f32.mrb[0].mxu0
        %v3214 = vadd.f32 %v3053, %v3213
        %v3215 = vpop.f32.mrb[0].mxu0
        %v3216 = vpop.f32.mrb[0].mxu0
        %v3217 = vadd.f32 %v3056, %v3216
        %v3218 = vpop.f32.mrb[0].mxu0
        %3219 = vmatprep.mubr.bf16.mxu0 0
        %3220 = vmatmul.mubr.bf16.gmra.mrb[0].mxu0 %v829
        %v3221 = vpop.f32.mrb[0].mxu0
        %v3222 = vadd.f32 %v3061, %v3221
        %v3223 = vpop.f32.mrb[0].mxu0
        %v3224 = vpop.f32.mrb[0].mxu0
        %v3225 = vadd.f32 %v3064, %v3224
        %v3226 = vpop.f32.mrb[0].mxu0
        %3227 = vmatprep.mubr.bf16.mxu0 0
        %3228 = vmatmul.mubr.bf16.gmra.mrb[0].mxu0 %v832
        %v3229 = vpop.f32.mrb[0].mxu0
        %v3230 = vadd.f32 %v3069, %v3229
        %v3231 = vpop.f32.mrb[0].mxu0
        %v3232 = vpop.f32.mrb[0].mxu0
        %v3233 = vadd.f32 %v3072, %v3232
        %v3234 = vpop.f32.mrb[0].mxu0
        %3235 = vmatprep.mubr.bf16.mxu0 0
        %3236 = vmatmul.mubr.bf16.gmra.mrb[0].mxu0 %v835
        %v3237 = vpop.f32.mrb[0].mxu0
        %v3238 = vadd.f32 %v3077, %v3237
        %v3239 = vpop.f32.mrb[0].mxu0
        %v3240 = vpop.f32.mrb[0].mxu0
        %v3241 = vadd.f32 %v3080, %v3240
        %v3242 = vpop.f32.mrb[0].mxu0
        %3243 = vmatprep.mubr.bf16.mxu0 0
        %3244 = vmatmul.mubr.bf16.gmra.mrb[0].mxu0 %v838
        %v3245 = vpop.f32.mrb[0].mxu0
        %v3246 = vadd.f32 %v3085, %v3245
        %v3247 = vpop.f32.mrb[0].mxu0
        %v3248 = vpop.f32.mrb[0].mxu0
        %v3249 = vadd.f32 %v3088, %v3248
        %v3250 = vpop.f32.mrb[0].mxu0
        %3251 = vmatprep.mubr.bf16.mxu0 0
        %3252 = vmatmul.mubr.bf16.gmra.mrb[0].mxu0 %v841
        %v3253 = vpop.f32.mrb[0].mxu0
        %v3254 = vadd.f32 %v3093, %v3253
        %v3255 = vpop.f32.mrb[0].mxu0
        %v3256 = vpop.f32.mrb[0].mxu0
        %v3257 = vadd.f32 %v3096, %v3256
        %v3258 = vpop.f32.mrb[0].mxu0
        %3259 = vdwg.mxu0
        %v3262 = vunpack.c.l.b16 %v437
        %v3263 = vunpack.c.l.b16 %v438
        %v3264 = vpack.c.b16 %v3263, %v3262
        %v3267 = vunpack.c.l.b16 %v439
        %v3268 = vpack.c.b16 %v3267, %v3267
        %v3270 = vshrl.u32 %v3264, 16
        %v3272 = vshll.u32 %v3264, 16
        %v3274 = vrot.slane %v3272, 1
        %v3275 = vor.u32 %v3270, %v3274
        %v3277 = vshll.u32 %v3268, 16
        %v3279 = vrot.slane %v3277, 1
        %v3280 = vsel %vm584, %v3275, %v3279
        %v3282 = vrot.slane %v3264, 1
        %v3283 = vrot.slane %v3268, 1
        %v3284 = vsel %vm793, %v3282, %v3283
        %v3286 = vld [vmem:[%s3 + $0x480] sm:$0xff]
        %v3287 = vld [vmem:[%s3 + $0x488] sm:$0xf]
        %v3288 = vld [vmem:[%s3 + $0x48c] sm:$0xff]
        %v3289 = vld [vmem:[%s3 + $0x494] sm:$0xf]
        %v3290 = vld [vmem:[%s3 + $0x498] sm:$0xff]
        %v3291 = vld [vmem:[%s3 + $0x4a0] sm:$0xf]
        %v3292 = vld [vmem:[%s3 + $0x4a4] sm:$0xff]
        %v3293 = vld [vmem:[%s3 + $0x4ac] sm:$0xf]
        %v3294 = vld [vmem:[%s3 + $0x4b0] sm:$0xff]
        %v3295 = vld [vmem:[%s3 + $0x4b8] sm:$0xf]
        %v3296 = vld [vmem:[%s3 + $0x4bc] sm:$0xff]
        %v3297 = vld [vmem:[%s3 + $0x4c4] sm:$0xf]
        %v3298 = vld [vmem:[%s3 + $0x4c8] sm:$0xff]
        %v3299 = vld [vmem:[%s3 + $0x4d0] sm:$0xf]
        %v3300 = vld [vmem:[%s3 + $0x4d4] sm:$0xff]
        %v3301 = vld [vmem:[%s3 + $0x4dc] sm:$0xf]
        %v3302 = vld [vmem:[%s3 + $0x4e0] sm:$0xff]
        %v3303 = vld [vmem:[%s3 + $0x4e8] sm:$0xf]
        %v3304 = vld [vmem:[%s3 + $0x4ec] sm:$0xff]
        %v3305 = vld [vmem:[%s3 + $0x4f4] sm:$0xf]
        %v3306 = vld [vmem:[%s3 + $0x4f8] sm:$0xff]
        %v3307 = vld [vmem:[%s3 + $0x500] sm:$0xf]
        %v3308 = vld [vmem:[%s3 + $0x504] sm:$0xff]
        %v3309 = vld [vmem:[%s3 + $0x50c] sm:$0xf]
        %v3310 = vld [vmem:[%s3 + $0x510] sm:$0xff]
        %v3311 = vld [vmem:[%s3 + $0x518] sm:$0xf]
        %v3312 = vld [vmem:[%s3 + $0x51c] sm:$0xff]
        %v3313 = vld [vmem:[%s3 + $0x524] sm:$0xf]
        %v3314 = vld [vmem:[%s3 + $0x528] sm:$0xff]
        %v3315 = vld [vmem:[%s3 + $0x530] sm:$0xf]
        %v3316 = vld [vmem:[%s3 + $0x534] sm:$0xff]
        %v3317 = vld [vmem:[%s3 + $0x53c] sm:$0xf]
        %v3318 = vld [vmem:[%s3 + $0x540] sm:$0xff]
        %v3319 = vld [vmem:[%s3 + $0x548] sm:$0xf]
        %v3320 = vld [vmem:[%s3 + $0x54c] sm:$0xff]
        %v3321 = vld [vmem:[%s3 + $0x554] sm:$0xf]
        %v3322 = vld [vmem:[%s3 + $0x558] sm:$0xff]
        %v3323 = vld [vmem:[%s3 + $0x560] sm:$0xf]
        %v3324 = vld [vmem:[%s3 + $0x564] sm:$0xff]
        %v3325 = vld [vmem:[%s3 + $0x56c] sm:$0xf]
        %v3326 = vld [vmem:[%s3 + $0x570] sm:$0xff]
        %v3327 = vld [vmem:[%s3 + $0x578] sm:$0xf]
        %v3328 = vld [vmem:[%s3 + $0x57c] sm:$0xff]
        %v3329 = vld [vmem:[%s3 + $0x584] sm:$0xf]
        %v3330 = vld [vmem:[%s3 + $0x588] sm:$0xff]
        %v3331 = vld [vmem:[%s3 + $0x590] sm:$0xf]
        %v3332 = vld [vmem:[%s3 + $0x594] sm:$0xff]
        %v3333 = vld [vmem:[%s3 + $0x59c] sm:$0xf]
        %v3334 = vld [vmem:[%s3 + $0x5a0] sm:$0xff]
        %v3335 = vld [vmem:[%s3 + $0x5a8] sm:$0xf]
        %v3336 = vld [vmem:[%s3 + $0x5ac] sm:$0xff]
        %v3337 = vld [vmem:[%s3 + $0x5b4] sm:$0xf]
        %v3338 = vld [vmem:[%s3 + $0x5b8] sm:$0xff]
        %v3339 = vld [vmem:[%s3 + $0x5c0] sm:$0xf]
        %v3340 = vld [vmem:[%s3 + $0x5c4] sm:$0xff]
        %v3341 = vld [vmem:[%s3 + $0x5cc] sm:$0xf]
        %v3342 = vld [vmem:[%s3 + $0x5d0] sm:$0xff]
        %v3343 = vld [vmem:[%s3 + $0x5d8] sm:$0xf]
        %v3344 = vld [vmem:[%s3 + $0x5dc] sm:$0xff]
        %v3345 = vld [vmem:[%s3 + $0x5e4] sm:$0xf]
        %v3346 = vld [vmem:[%s3 + $0x5e8] sm:$0xff]
        %v3347 = vld [vmem:[%s3 + $0x5f0] sm:$0xf]
        %v3348 = vld [vmem:[%s3 + $0x5f4] sm:$0xff]
        %v3349 = vld [vmem:[%s3 + $0x5fc] sm:$0xf]
        %v3350 = vld [vmem:[%s3 + $0x600] sm:$0xff]
        %v3351 = vld [vmem:[%s3 + $0x608] sm:$0xf]
        %v3352 = vld [vmem:[%s3 + $0x60c] sm:$0xff]
        %v3353 = vld [vmem:[%s3 + $0x614] sm:$0xf]
        %v3354 = vld [vmem:[%s3 + $0x618] sm:$0xff]
        %v3355 = vld [vmem:[%s3 + $0x620] sm:$0xf]
        %v3356 = vld [vmem:[%s3 + $0x624] sm:$0xff]
        %v3357 = vld [vmem:[%s3 + $0x62c] sm:$0xf]
        %v3358 = vld [vmem:[%s3 + $0x630] sm:$0xff]
        %v3359 = vld [vmem:[%s3 + $0x638] sm:$0xf]
        %v3360 = vld [vmem:[%s3 + $0x63c] sm:$0xff]
        %v3361 = vld [vmem:[%s3 + $0x644] sm:$0xf]
        %v3362 = vld [vmem:[%s3 + $0x648] sm:$0xff]
        %v3363 = vld [vmem:[%s3 + $0x650] sm:$0xf]
        %v3364 = vld [vmem:[%s3 + $0x654] sm:$0xff]
        %v3365 = vld [vmem:[%s3 + $0x65c] sm:$0xf]
        %v3366 = vld [vmem:[%s3 + $0x660] sm:$0xff]
        %v3367 = vld [vmem:[%s3 + $0x668] sm:$0xf]
        %v3368 = vld [vmem:[%s3 + $0x66c] sm:$0xff]
        %v3369 = vld [vmem:[%s3 + $0x674] sm:$0xf]
        %v3370 = vld [vmem:[%s3 + $0x678] sm:$0xff]
        %v3371 = vld [vmem:[%s3 + $0x680] sm:$0xf]
        %v3372 = vld [vmem:[%s3 + $0x684] sm:$0xff]
        %v3373 = vld [vmem:[%s3 + $0x68c] sm:$0xf]
        %v3374 = vld [vmem:[%s3 + $0x690] sm:$0xff]
        %v3375 = vld [vmem:[%s3 + $0x698] sm:$0xf]
        %v3376 = vld [vmem:[%s3 + $0x69c] sm:$0xff]
        %v3377 = vld [vmem:[%s3 + $0x6a4] sm:$0xf]
        %v3378 = vld [vmem:[%s3 + $0x6a8] sm:$0xff]
        %v3379 = vld [vmem:[%s3 + $0x6b0] sm:$0xf]
        %v3380 = vld [vmem:[%s3 + $0x6b4] sm:$0xff]
        %v3381 = vld [vmem:[%s3 + $0x6bc] sm:$0xf]
        %v3478 = vunpack.c.l.b16 %v3286
        %v3479 = vunpack.c.h.b16 %v3286
        %v3480 = vunpack.c.l.b16 %v3287
        %v3481 = vunpack.c.l.b16 %v3288
        %v3482 = vunpack.c.h.b16 %v3288
        %v3483 = vunpack.c.l.b16 %v3289
        %v3484 = vunpack.c.l.b16 %v3290
        %v3485 = vunpack.c.h.b16 %v3290
        %v3486 = vunpack.c.l.b16 %v3291
        %v3487 = vunpack.c.l.b16 %v3292
        %v3488 = vunpack.c.h.b16 %v3292
        %v3489 = vunpack.c.l.b16 %v3293
        %v3490 = vunpack.c.l.b16 %v3294
        %v3491 = vunpack.c.h.b16 %v3294
        %v3492 = vunpack.c.l.b16 %v3295
        %v3493 = vunpack.c.l.b16 %v3296
        %v3494 = vunpack.c.h.b16 %v3296
        %v3495 = vunpack.c.l.b16 %v3297
        %v3496 = vunpack.c.l.b16 %v3298
        %v3497 = vunpack.c.h.b16 %v3298
        %v3498 = vunpack.c.l.b16 %v3299
        %v3499 = vunpack.c.l.b16 %v3300
        %v3500 = vunpack.c.h.b16 %v3300
        %v3501 = vunpack.c.l.b16 %v3301
        %v3502 = vunpack.c.l.b16 %v3302
        %v3503 = vunpack.c.h.b16 %v3302
        %v3504 = vunpack.c.l.b16 %v3303
        %v3505 = vunpack.c.l.b16 %v3304
        %v3506 = vunpack.c.h.b16 %v3304
        %v3507 = vunpack.c.l.b16 %v3305
        %v3508 = vunpack.c.l.b16 %v3306
        %v3509 = vunpack.c.h.b16 %v3306
        %v3510 = vunpack.c.l.b16 %v3307
        %v3511 = vunpack.c.l.b16 %v3308
        %v3512 = vunpack.c.h.b16 %v3308
        %v3513 = vunpack.c.l.b16 %v3309
        %v3514 = vunpack.c.l.b16 %v3310
        %v3515 = vunpack.c.h.b16 %v3310
        %v3516 = vunpack.c.l.b16 %v3311
        %v3517 = vunpack.c.l.b16 %v3312
        %v3518 = vunpack.c.h.b16 %v3312
        %v3519 = vunpack.c.l.b16 %v3313
        %v3520 = vunpack.c.l.b16 %v3314
        %v3521 = vunpack.c.h.b16 %v3314
        %v3522 = vunpack.c.l.b16 %v3315
        %v3523 = vunpack.c.l.b16 %v3316
        %v3524 = vunpack.c.h.b16 %v3316
        %v3525 = vunpack.c.l.b16 %v3317
        %v3526 = vunpack.c.l.b16 %v3318
        %v3527 = vunpack.c.h.b16 %v3318
        %v3528 = vunpack.c.l.b16 %v3319
        %v3529 = vunpack.c.l.b16 %v3320
        %v3530 = vunpack.c.h.b16 %v3320
        %v3531 = vunpack.c.l.b16 %v3321
        %v3532 = vunpack.c.l.b16 %v3322
        %v3533 = vunpack.c.h.b16 %v3322
        %v3534 = vunpack.c.l.b16 %v3323
        %v3535 = vunpack.c.l.b16 %v3324
        %v3536 = vunpack.c.h.b16 %v3324
        %v3537 = vunpack.c.l.b16 %v3325
        %v3538 = vunpack.c.l.b16 %v3326
        %v3539 = vunpack.c.h.b16 %v3326
        %v3540 = vunpack.c.l.b16 %v3327
        %v3541 = vunpack.c.l.b16 %v3328
        %v3542 = vunpack.c.h.b16 %v3328
        %v3543 = vunpack.c.l.b16 %v3329
        %v3544 = vunpack.c.l.b16 %v3330
        %v3545 = vunpack.c.h.b16 %v3330
        %v3546 = vunpack.c.l.b16 %v3331
        %v3547 = vunpack.c.l.b16 %v3332
        %v3548 = vunpack.c.h.b16 %v3332
        %v3549 = vunpack.c.l.b16 %v3333
        %v3550 = vunpack.c.l.b16 %v3334
        %v3551 = vunpack.c.h.b16 %v3334
        %v3552 = vunpack.c.l.b16 %v3335
        %v3553 = vunpack.c.l.b16 %v3336
        %v3554 = vunpack.c.h.b16 %v3336
        %v3555 = vunpack.c.l.b16 %v3337
        %v3556 = vunpack.c.l.b16 %v3338
        %v3557 = vunpack.c.h.b16 %v3338
        %v3558 = vunpack.c.l.b16 %v3339
        %v3559 = vunpack.c.l.b16 %v3340
        %v3560 = vunpack.c.h.b16 %v3340
        %v3561 = vunpack.c.l.b16 %v3341
        %v3562 = vunpack.c.l.b16 %v3342
        %v3563 = vunpack.c.h.b16 %v3342
        %v3564 = vunpack.c.l.b16 %v3343
        %v3565 = vunpack.c.l.b16 %v3344
        %v3566 = vunpack.c.h.b16 %v3344
        %v3567 = vunpack.c.l.b16 %v3345
        %v3568 = vunpack.c.l.b16 %v3346
        %v3569 = vunpack.c.h.b16 %v3346
        %v3570 = vunpack.c.l.b16 %v3347
        %v3571 = vunpack.c.l.b16 %v3348
        %v3572 = vunpack.c.h.b16 %v3348
        %v3573 = vunpack.c.l.b16 %v3349
        %v3574 = vunpack.c.l.b16 %v3350
        %v3575 = vunpack.c.h.b16 %v3350
        %v3576 = vunpack.c.l.b16 %v3351
        %v3577 = vunpack.c.l.b16 %v3352
        %v3578 = vunpack.c.h.b16 %v3352
        %v3579 = vunpack.c.l.b16 %v3353
        %v3580 = vunpack.c.l.b16 %v3354
        %v3581 = vunpack.c.h.b16 %v3354
        %v3582 = vunpack.c.l.b16 %v3355
        %v3583 = vunpack.c.l.b16 %v3356
        %v3584 = vunpack.c.h.b16 %v3356
        %v3585 = vunpack.c.l.b16 %v3357
        %v3586 = vunpack.c.l.b16 %v3358
        %v3587 = vunpack.c.h.b16 %v3358
        %v3588 = vunpack.c.l.b16 %v3359
        %v3589 = vunpack.c.l.b16 %v3360
        %v3590 = vunpack.c.h.b16 %v3360
        %v3591 = vunpack.c.l.b16 %v3361
        %v3592 = vunpack.c.l.b16 %v3362
        %v3593 = vunpack.c.h.b16 %v3362
        %v3594 = vunpack.c.l.b16 %v3363
        %v3595 = vunpack.c.l.b16 %v3364
        %v3596 = vunpack.c.h.b16 %v3364
        %v3597 = vunpack.c.l.b16 %v3365
        %v3598 = vunpack.c.l.b16 %v3366
        %v3599 = vunpack.c.h.b16 %v3366
        %v3600 = vunpack.c.l.b16 %v3367
        %v3601 = vunpack.c.l.b16 %v3368
        %v3602 = vunpack.c.h.b16 %v3368
        %v3603 = vunpack.c.l.b16 %v3369
        %v3604 = vunpack.c.l.b16 %v3370
        %v3605 = vunpack.c.h.b16 %v3370
        %v3606 = vunpack.c.l.b16 %v3371
        %v3607 = vunpack.c.l.b16 %v3372
        %v3608 = vunpack.c.h.b16 %v3372
        %v3609 = vunpack.c.l.b16 %v3373
        %v3610 = vunpack.c.l.b16 %v3374
        %v3611 = vunpack.c.h.b16 %v3374
        %v3612 = vunpack.c.l.b16 %v3375
        %v3613 = vunpack.c.l.b16 %v3376
        %v3614 = vunpack.c.h.b16 %v3376
        %v3615 = vunpack.c.l.b16 %v3377
        %v3616 = vunpack.c.l.b16 %v3378
        %v3617 = vunpack.c.h.b16 %v3378
        %v3618 = vunpack.c.l.b16 %v3379
        %v3619 = vunpack.c.l.b16 %v3380
        %v3620 = vunpack.c.h.b16 %v3380
        %v3621 = vunpack.c.l.b16 %v3381
        %v3622 = vpack.c.b16 %v3481, %v3478
        %v3623 = vpack.c.b16 %v3482, %v3479
        %v3624 = vpack.c.b16 %v3483, %v3480
        %v3625 = vpack.c.b16 %v3487, %v3484
        %v3626 = vpack.c.b16 %v3488, %v3485
        %v3627 = vpack.c.b16 %v3489, %v3486
        %v3628 = vpack.c.b16 %v3493, %v3490
        %v3629 = vpack.c.b16 %v3494, %v3491
        %v3630 = vpack.c.b16 %v3495, %v3492
        %v3631 = vpack.c.b16 %v3499, %v3496
        %v3632 = vpack.c.b16 %v3500, %v3497
        %v3633 = vpack.c.b16 %v3501, %v3498
        %v3634 = vpack.c.b16 %v3505, %v3502
        %v3635 = vpack.c.b16 %v3506, %v3503
        %v3636 = vpack.c.b16 %v3507, %v3504
        %v3637 = vpack.c.b16 %v3511, %v3508
        %v3638 = vpack.c.b16 %v3512, %v3509
        %v3639 = vpack.c.b16 %v3513, %v3510
        %v3640 = vpack.c.b16 %v3517, %v3514
        %v3641 = vpack.c.b16 %v3518, %v3515
        %v3642 = vpack.c.b16 %v3519, %v3516
        %v3643 = vpack.c.b16 %v3523, %v3520
        %v3644 = vpack.c.b16 %v3524, %v3521
        %v3645 = vpack.c.b16 %v3525, %v3522
        %v3646 = vpack.c.b16 %v3529, %v3526
        %v3647 = vpack.c.b16 %v3530, %v3527
        %v3648 = vpack.c.b16 %v3531, %v3528
        %v3649 = vpack.c.b16 %v3535, %v3532
        %v3650 = vpack.c.b16 %v3536, %v3533
        %v3651 = vpack.c.b16 %v3537, %v3534
        %v3652 = vpack.c.b16 %v3541, %v3538
        %v3653 = vpack.c.b16 %v3542, %v3539
        %v3654 = vpack.c.b16 %v3543, %v3540
        %v3655 = vpack.c.b16 %v3547, %v3544
        %v3656 = vpack.c.b16 %v3548, %v3545
        %v3657 = vpack.c.b16 %v3549, %v3546
        %v3658 = vpack.c.b16 %v3553, %v3550
        %v3659 = vpack.c.b16 %v3554, %v3551
        %v3660 = vpack.c.b16 %v3555, %v3552
        %v3661 = vpack.c.b16 %v3559, %v3556
        %v3662 = vpack.c.b16 %v3560, %v3557
        %v3663 = vpack.c.b16 %v3561, %v3558
        %v3664 = vpack.c.b16 %v3565, %v3562
        %v3665 = vpack.c.b16 %v3566, %v3563
        %v3666 = vpack.c.b16 %v3567, %v3564
        %v3667 = vpack.c.b16 %v3571, %v3568
        %v3668 = vpack.c.b16 %v3572, %v3569
        %v3669 = vpack.c.b16 %v3573, %v3570
        %v3670 = vpack.c.b16 %v3577, %v3574
        %v3671 = vpack.c.b16 %v3578, %v3575
        %v3672 = vpack.c.b16 %v3579, %v3576
        %v3673 = vpack.c.b16 %v3583, %v3580
        %v3674 = vpack.c.b16 %v3584, %v3581
        %v3675 = vpack.c.b16 %v3585, %v3582
        %v3676 = vpack.c.b16 %v3589, %v3586
        %v3677 = vpack.c.b16 %v3590, %v3587
        %v3678 = vpack.c.b16 %v3591, %v3588
        %v3679 = vpack.c.b16 %v3595, %v3592
        %v3680 = vpack.c.b16 %v3596, %v3593
        %v3681 = vpack.c.b16 %v3597, %v3594
        %v3682 = vpack.c.b16 %v3601, %v3598
        %v3683 = vpack.c.b16 %v3602, %v3599
        %v3684 = vpack.c.b16 %v3603, %v3600
        %v3685 = vpack.c.b16 %v3607, %v3604
        %v3686 = vpack.c.b16 %v3608, %v3605
        %v3687 = vpack.c.b16 %v3609, %v3606
        %v3688 = vpack.c.b16 %v3613, %v3610
        %v3689 = vpack.c.b16 %v3614, %v3611
        %v3690 = vpack.c.b16 %v3615, %v3612
        %v3691 = vpack.c.b16 %v3619, %v3616
        %v3692 = vpack.c.b16 %v3620, %v3617
        %v3693 = vpack.c.b16 %v3621, %v3618
        %3766 = vmatprep.subr.bf16.mxu0 %v3623
        %3767 = vmatpush1.bf16.msra.mxu0 %v3622
        %3768 = vmatprep.subr.bf16.mxu0 %v3626
        %3769 = vmatpush1.bf16.msra.mxu0 %v3625
        %3770 = vmatprep.subr.bf16.mxu0 %v3629
        %3771 = vmatpush1.bf16.msra.mxu0 %v3628
        %3772 = vmatprep.subr.bf16.mxu0 %v3632
        %3773 = vmatpush1.bf16.msra.mxu0 %v3631
        %3774 = vmatprep.subr.bf16.mxu0 %v3635
        %3775 = vmatpush1.bf16.msra.mxu0 %v3634
        %3776 = vmatprep.subr.bf16.mxu0 %v3638
        %3777 = vmatpush1.bf16.msra.mxu0 %v3637
        %3778 = vmatprep.subr.bf16.mxu0 %v3641
        %3779 = vmatpush1.bf16.msra.mxu0 %v3640
        %3780 = vmatprep.subr.bf16.mxu0 %v3644
        %3781 = vmatpush1.bf16.msra.mxu0 %v3643
        %3782 = vmatprep.subr.bf16.mxu0 %v3647
        %3783 = vmatpush1.bf16.msra.mxu0 %v3646
        %3784 = vmatprep.subr.bf16.mxu0 %v3650
        %3785 = vmatpush1.bf16.msra.mxu0 %v3649
        %3786 = vmatprep.subr.bf16.mxu0 %v3653
        %3787 = vmatpush1.bf16.msra.mxu0 %v3652
        %3788 = vmatprep.subr.bf16.mxu0 %v3656
        %3789 = vmatpush1.bf16.msra.mxu0 %v3655
        %3790 = vmatprep.subr.bf16.mxu0 %v3659
        %3791 = vmatpush1.bf16.msra.mxu0 %v3658
        %3792 = vmatprep.subr.bf16.mxu0 %v3662
        %3793 = vmatpush1.bf16.msra.mxu0 %v3661
        %3794 = vmatprep.subr.bf16.mxu0 %v3665
        %3795 = vmatpush1.bf16.msra.mxu0 %v3664
        %3796 = vmatprep.subr.bf16.mxu0 %v3668
        %3797 = vmatpush1.bf16.msra.mxu0 %v3667
        %3798 = vmatprep.mubr.bf16.mxu0 %v620
        %3799 = vmatmul.mubr.bf16.gmra.mrb[0].mxu0 %v506
        %v3800 = vpop.f32.mrb[0].mxu0
        %v3801 = vadd.f32 0.0, %v3800
        %v3802 = vpop.f32.mrb[0].mxu0
        %v3803 = vadd.f32 0.0, %v3802
        %v3804 = vpop.f32.mrb[0].mxu0
        %v3805 = vadd.f32 0.0, %v3804
        %v3806 = vpop.f32.mrb[0].mxu0
        %v3807 = vadd.f32 0.0, %v3806
        %3808 = vmatprep.mubr.bf16.mxu0 %v632
        %3809 = vmatmul.mubr.bf16.gmra.mrb[0].mxu0 %v507
        %v3810 = vpop.f32.mrb[0].mxu0
        %v3811 = vadd.f32 0.0, %v3810
        %v3812 = vpop.f32.mrb[0].mxu0
        %v3813 = vadd.f32 0.0, %v3812
        %v3814 = vpop.f32.mrb[0].mxu0
        %v3815 = vadd.f32 0.0, %v3814
        %v3816 = vpop.f32.mrb[0].mxu0
        %v3817 = vadd.f32 0.0, %v3816
        %3818 = vmatprep.mubr.bf16.mxu0 %v644
        %3819 = vmatmul.mubr.bf16.gmra.mrb[0].mxu0 %v508
        %v3820 = vpop.f32.mrb[0].mxu0
        %v3821 = vadd.f32 0.0, %v3820
        %v3822 = vpop.f32.mrb[0].mxu0
        %v3823 = vadd.f32 0.0, %v3822
        %v3824 = vpop.f32.mrb[0].mxu0
        %v3825 = vadd.f32 0.0, %v3824
        %v3826 = vpop.f32.mrb[0].mxu0
        %v3827 = vadd.f32 0.0, %v3826
        %3828 = vmatprep.mubr.bf16.mxu0 %v656
        %3829 = vmatmul.mubr.bf16.gmra.mrb[0].mxu0 %v509
        %v3830 = vpop.f32.mrb[0].mxu0
        %v3831 = vadd.f32 0.0, %v3830
        %v3832 = vpop.f32.mrb[0].mxu0
        %v3833 = vadd.f32 0.0, %v3832
        %v3834 = vpop.f32.mrb[0].mxu0
        %v3835 = vadd.f32 0.0, %v3834
        %v3836 = vpop.f32.mrb[0].mxu0
        %v3837 = vadd.f32 0.0, %v3836
        %3838 = vmatprep.mubr.bf16.mxu0 %v668
        %3839 = vmatmul.mubr.bf16.gmra.mrb[0].mxu0 %v510
        %v3840 = vpop.f32.mrb[0].mxu0
        %v3841 = vadd.f32 0.0, %v3840
        %v3842 = vpop.f32.mrb[0].mxu0
        %v3843 = vadd.f32 0.0, %v3842
        %v3844 = vpop.f32.mrb[0].mxu0
        %v3845 = vadd.f32 0.0, %v3844
        %v3846 = vpop.f32.mrb[0].mxu0
        %v3847 = vadd.f32 0.0, %v3846
        %3848 = vmatprep.mubr.bf16.mxu0 %v680
        %3849 = vmatmul.mubr.bf16.gmra.mrb[0].mxu0 %v511
        %v3850 = vpop.f32.mrb[0].mxu0
        %v3851 = vadd.f32 0.0, %v3850
        %v3852 = vpop.f32.mrb[0].mxu0
        %v3853 = vadd.f32 0.0, %v3852
        %v3854 = vpop.f32.mrb[0].mxu0
        %v3855 = vadd.f32 0.0, %v3854
        %v3856 = vpop.f32.mrb[0].mxu0
        %v3857 = vadd.f32 0.0, %v3856
        %3858 = vmatprep.mubr.bf16.mxu0 %v692
        %3859 = vmatmul.mubr.bf16.gmra.mrb[0].mxu0 %v512
        %v3860 = vpop.f32.mrb[0].mxu0
        %v3861 = vadd.f32 0.0, %v3860
        %v3862 = vpop.f32.mrb[0].mxu0
        %v3863 = vadd.f32 0.0, %v3862
        %v3864 = vpop.f32.mrb[0].mxu0
        %v3865 = vadd.f32 0.0, %v3864
        %v3866 = vpop.f32.mrb[0].mxu0
        %v3867 = vadd.f32 0.0, %v3866
        %3868 = vmatprep.mubr.bf16.mxu0 %v704
        %3869 = vmatmul.mubr.bf16.gmra.mrb[0].mxu0 %v513
        %v3870 = vpop.f32.mrb[0].mxu0
        %v3871 = vadd.f32 0.0, %v3870
        %v3872 = vpop.f32.mrb[0].mxu0
        %v3873 = vadd.f32 0.0, %v3872
        %v3874 = vpop.f32.mrb[0].mxu0
        %v3875 = vadd.f32 0.0, %v3874
        %v3876 = vpop.f32.mrb[0].mxu0
        %v3877 = vadd.f32 0.0, %v3876
        %3878 = vmatprep.mubr.bf16.mxu0 %v716
        %3879 = vmatmul.mubr.bf16.gmra.mrb[0].mxu0 %v514
        %v3880 = vpop.f32.mrb[0].mxu0
        %v3881 = vadd.f32 0.0, %v3880
        %v3882 = vpop.f32.mrb[0].mxu0
        %v3883 = vadd.f32 0.0, %v3882
        %v3884 = vpop.f32.mrb[0].mxu0
        %v3885 = vadd.f32 0.0, %v3884
        %v3886 = vpop.f32.mrb[0].mxu0
        %v3887 = vadd.f32 0.0, %v3886
        %3888 = vmatprep.mubr.bf16.mxu0 %v728
        %3889 = vmatmul.mubr.bf16.gmra.mrb[0].mxu0 %v515
        %v3890 = vpop.f32.mrb[0].mxu0
        %v3891 = vadd.f32 0.0, %v3890
        %v3892 = vpop.f32.mrb[0].mxu0
        %v3893 = vadd.f32 0.0, %v3892
        %v3894 = vpop.f32.mrb[0].mxu0
        %v3895 = vadd.f32 0.0, %v3894
        %v3896 = vpop.f32.mrb[0].mxu0
        %v3897 = vadd.f32 0.0, %v3896
        %3898 = vmatprep.mubr.bf16.mxu0 %v740
        %3899 = vmatmul.mubr.bf16.gmra.mrb[0].mxu0 %v516
        %v3900 = vpop.f32.mrb[0].mxu0
        %v3901 = vadd.f32 0.0, %v3900
        %v3902 = vpop.f32.mrb[0].mxu0
        %v3903 = vadd.f32 0.0, %v3902
        %v3904 = vpop.f32.mrb[0].mxu0
        %v3905 = vadd.f32 0.0, %v3904
        %v3906 = vpop.f32.mrb[0].mxu0
        %v3907 = vadd.f32 0.0, %v3906
        %3908 = vmatprep.mubr.bf16.mxu0 %v752
        %3909 = vmatmul.mubr.bf16.gmra.mrb[0].mxu0 %v517
        %v3910 = vpop.f32.mrb[0].mxu0
        %v3911 = vadd.f32 0.0, %v3910
        %v3912 = vpop.f32.mrb[0].mxu0
        %v3913 = vadd.f32 0.0, %v3912
        %v3914 = vpop.f32.mrb[0].mxu0
        %v3915 = vadd.f32 0.0, %v3914
        %v3916 = vpop.f32.mrb[0].mxu0
        %v3917 = vadd.f32 0.0, %v3916
        %3918 = vmatprep.mubr.bf16.mxu0 %v764
        %3919 = vmatmul.mubr.bf16.gmra.mrb[0].mxu0 %v518
        %v3920 = vpop.f32.mrb[0].mxu0
        %v3921 = vadd.f32 0.0, %v3920
        %v3922 = vpop.f32.mrb[0].mxu0
        %v3923 = vadd.f32 0.0, %v3922
        %v3924 = vpop.f32.mrb[0].mxu0
        %v3925 = vadd.f32 0.0, %v3924
        %v3926 = vpop.f32.mrb[0].mxu0
        %v3927 = vadd.f32 0.0, %v3926
        %3928 = vmatprep.mubr.bf16.mxu0 %v776
        %3929 = vmatmul.mubr.bf16.gmra.mrb[0].mxu0 %v519
        %v3930 = vpop.f32.mrb[0].mxu0
        %v3931 = vadd.f32 0.0, %v3930
        %v3932 = vpop.f32.mrb[0].mxu0
        %v3933 = vadd.f32 0.0, %v3932
        %v3934 = vpop.f32.mrb[0].mxu0
        %v3935 = vadd.f32 0.0, %v3934
        %v3936 = vpop.f32.mrb[0].mxu0
        %v3937 = vadd.f32 0.0, %v3936
        %3938 = vmatprep.mubr.bf16.mxu0 %v974
        %3939 = vmatmul.mubr.bf16.gmra.mrb[0].mxu0 %v958
        %v3940 = vpop.f32.mrb[0].mxu0
        %v3941 = vadd.f32 0.0, %v3940
        %v3942 = vpop.f32.mrb[0].mxu0
        %v3943 = vadd.f32 0.0, %v3942
        %v3944 = vpop.f32.mrb[0].mxu0
        %v3945 = vadd.f32 0.0, %v3944
        %v3946 = vpop.f32.mrb[0].mxu0
        %v3947 = vadd.f32 0.0, %v3946
        %3948 = vmatprep.mubr.bf16.mxu0 %v3280
        %3949 = vmatmul.mubr.bf16.gmra.mrb[0].mxu0 %v3264
        %v3950 = vpop.f32.mrb[0].mxu0
        %v3951 = vadd.f32 0.0, %v3950
        %v3952 = vpop.f32.mrb[0].mxu0
        %v3953 = vadd.f32 0.0, %v3952
        %v3954 = vpop.f32.mrb[0].mxu0
        %v3955 = vadd.f32 0.0, %v3954
        %v3956 = vpop.f32.mrb[0].mxu0
        %v3957 = vadd.f32 0.0, %v3956
        %3958 = vdwg.mxu0
        %3959 = vmatprep.subr.bf16.mxu0 %v3671
        %3960 = vmatpush1.bf16.msra.mxu0 %v3670
        %3961 = vmatprep.subr.bf16.mxu0 %v3674
        %3962 = vmatpush1.bf16.msra.mxu0 %v3673
        %3963 = vmatprep.subr.bf16.mxu0 %v3677
        %3964 = vmatpush1.bf16.msra.mxu0 %v3676
        %3965 = vmatprep.subr.bf16.mxu0 %v3680
        %3966 = vmatpush1.bf16.msra.mxu0 %v3679
        %3967 = vmatprep.subr.bf16.mxu0 %v3683
        %3968 = vmatpush1.bf16.msra.mxu0 %v3682
        %3969 = vmatprep.subr.bf16.mxu0 %v3686
        %3970 = vmatpush1.bf16.msra.mxu0 %v3685
        %3971 = vmatprep.subr.bf16.mxu0 %v3689
        %3972 = vmatpush1.bf16.msra.mxu0 %v3688
        %3973 = vmatprep.subr.bf16.mxu0 %v3692
        %3974 = vmatpush1.bf16.msra.mxu0 %v3691
        %3975 = vmatprep.subr.bf16.mxu0 0
        %3976 = vmatpush1.bf16.msra.mxu0 0
        %3977 = vmatprep.subr.bf16.mxu0 0
        %3978 = vmatpush1.bf16.msra.mxu0 0
        %3979 = vmatprep.subr.bf16.mxu0 0
        %3980 = vmatpush1.bf16.msra.mxu0 0
        %3981 = vmatprep.subr.bf16.mxu0 0
        %3982 = vmatpush1.bf16.msra.mxu0 0
        %3983 = vmatprep.subr.bf16.mxu0 0
        %3984 = vmatpush1.bf16.msra.mxu0 0
        %3985 = vmatprep.subr.bf16.mxu0 0
        %3986 = vmatpush1.bf16.msra.mxu0 0
        %3987 = vmatprep.subr.bf16.mxu0 0
        %3988 = vmatpush1.bf16.msra.mxu0 0
        %3989 = vmatprep.subr.bf16.mxu0 0
        %3990 = vmatpush1.bf16.msra.mxu0 0
        %3991 = vmatprep.mubr.bf16.mxu0 0
        %3992 = vmatmul.mubr.bf16.gmra.mrb[0].mxu0 %v802
        %v3993 = vpop.f32.mrb[0].mxu0
        %v3994 = vadd.f32 %v3801, %v3993
        %v3995 = vpop.f32.mrb[0].mxu0
        %v3996 = vadd.f32 %v3803, %v3995
        %v3997 = vpop.f32.mrb[0].mxu0
        %v3998 = vadd.f32 %v3805, %v3997
        %v3999 = vpop.f32.mrb[0].mxu0
        %v4000 = vadd.f32 %v3807, %v3999
        %4001 = vmatprep.mubr.bf16.mxu0 0
        %4002 = vmatmul.mubr.bf16.gmra.mrb[0].mxu0 %v805
        %v4003 = vpop.f32.mrb[0].mxu0
        %v4004 = vadd.f32 %v3811, %v4003
        %v4005 = vpop.f32.mrb[0].mxu0
        %v4006 = vadd.f32 %v3813, %v4005
        %v4007 = vpop.f32.mrb[0].mxu0
        %v4008 = vadd.f32 %v3815, %v4007
        %v4009 = vpop.f32.mrb[0].mxu0
        %v4010 = vadd.f32 %v3817, %v4009
        %4011 = vmatprep.mubr.bf16.mxu0 0
        %4012 = vmatmul.mubr.bf16.gmra.mrb[0].mxu0 %v808
        %v4013 = vpop.f32.mrb[0].mxu0
        %v4014 = vadd.f32 %v3821, %v4013
        %v4015 = vpop.f32.mrb[0].mxu0
        %v4016 = vadd.f32 %v3823, %v4015
        %v4017 = vpop.f32.mrb[0].mxu0
        %v4018 = vadd.f32 %v3825, %v4017
        %v4019 = vpop.f32.mrb[0].mxu0
        %v4020 = vadd.f32 %v3827, %v4019
        %4021 = vmatprep.mubr.bf16.mxu0 0
        %4022 = vmatmul.mubr.bf16.gmra.mrb[0].mxu0 %v811
        %v4023 = vpop.f32.mrb[0].mxu0
        %v4024 = vadd.f32 %v3831, %v4023
        %v4025 = vpop.f32.mrb[0].mxu0
        %v4026 = vadd.f32 %v3833, %v4025
        %v4027 = vpop.f32.mrb[0].mxu0
        %v4028 = vadd.f32 %v3835, %v4027
        %v4029 = vpop.f32.mrb[0].mxu0
        %v4030 = vadd.f32 %v3837, %v4029
        %4031 = vmatprep.mubr.bf16.mxu0 0
        %4032 = vmatmul.mubr.bf16.gmra.mrb[0].mxu0 %v814
        %v4033 = vpop.f32.mrb[0].mxu0
        %v4034 = vadd.f32 %v3841, %v4033
        %v4035 = vpop.f32.mrb[0].mxu0
        %v4036 = vadd.f32 %v3843, %v4035
        %v4037 = vpop.f32.mrb[0].mxu0
        %v4038 = vadd.f32 %v3845, %v4037
        %v4039 = vpop.f32.mrb[0].mxu0
        %v4040 = vadd.f32 %v3847, %v4039
        %4041 = vmatprep.mubr.bf16.mxu0 0
        %4042 = vmatmul.mubr.bf16.gmra.mrb[0].mxu0 %v817
        %v4043 = vpop.f32.mrb[0].mxu0
        %v4044 = vadd.f32 %v3851, %v4043
        %v4045 = vpop.f32.mrb[0].mxu0
        %v4046 = vadd.f32 %v3853, %v4045
        %v4047 = vpop.f32.mrb[0].mxu0
        %v4048 = vadd.f32 %v3855, %v4047
        %v4049 = vpop.f32.mrb[0].mxu0
        %v4050 = vadd.f32 %v3857, %v4049
        %4051 = vmatprep.mubr.bf16.mxu0 0
        %4052 = vmatmul.mubr.bf16.gmra.mrb[0].mxu0 %v820
        %v4053 = vpop.f32.mrb[0].mxu0
        %v4054 = vadd.f32 %v3861, %v4053
        %v4055 = vpop.f32.mrb[0].mxu0
        %v4056 = vadd.f32 %v3863, %v4055
        %v4057 = vpop.f32.mrb[0].mxu0
        %v4058 = vadd.f32 %v3865, %v4057
        %v4059 = vpop.f32.mrb[0].mxu0
        %v4060 = vadd.f32 %v3867, %v4059
        %4061 = vmatprep.mubr.bf16.mxu0 0
        %4062 = vmatmul.mubr.bf16.gmra.mrb[0].mxu0 %v823
        %v4063 = vpop.f32.mrb[0].mxu0
        %v4064 = vadd.f32 %v3871, %v4063
        %v4065 = vpop.f32.mrb[0].mxu0
        %v4066 = vadd.f32 %v3873, %v4065
        %v4067 = vpop.f32.mrb[0].mxu0
        %v4068 = vadd.f32 %v3875, %v4067
        %v4069 = vpop.f32.mrb[0].mxu0
        %v4070 = vadd.f32 %v3877, %v4069
        %4071 = vmatprep.mubr.bf16.mxu0 0
        %4072 = vmatmul.mubr.bf16.gmra.mrb[0].mxu0 %v826
        %v4073 = vpop.f32.mrb[0].mxu0
        %v4074 = vadd.f32 %v3881, %v4073
        %v4075 = vpop.f32.mrb[0].mxu0
        %v4076 = vadd.f32 %v3883, %v4075
        %v4077 = vpop.f32.mrb[0].mxu0
        %v4078 = vadd.f32 %v3885, %v4077
        %v4079 = vpop.f32.mrb[0].mxu0
        %v4080 = vadd.f32 %v3887, %v4079
        %4081 = vmatprep.mubr.bf16.mxu0 0
        %4082 = vmatmul.mubr.bf16.gmra.mrb[0].mxu0 %v829
        %v4083 = vpop.f32.mrb[0].mxu0
        %v4084 = vadd.f32 %v3891, %v4083
        %v4085 = vpop.f32.mrb[0].mxu0
        %v4086 = vadd.f32 %v3893, %v4085
        %v4087 = vpop.f32.mrb[0].mxu0
        %v4088 = vadd.f32 %v3895, %v4087
        %v4089 = vpop.f32.mrb[0].mxu0
        %v4090 = vadd.f32 %v3897, %v4089
        %4091 = vmatprep.mubr.bf16.mxu0 0
        %4092 = vmatmul.mubr.bf16.gmra.mrb[0].mxu0 %v832
        %v4093 = vpop.f32.mrb[0].mxu0
        %v4094 = vadd.f32 %v3901, %v4093
        %v4095 = vpop.f32.mrb[0].mxu0
        %v4096 = vadd.f32 %v3903, %v4095
        %v4097 = vpop.f32.mrb[0].mxu0
        %v4098 = vadd.f32 %v3905, %v4097
        %v4099 = vpop.f32.mrb[0].mxu0
        %v4100 = vadd.f32 %v3907, %v4099
        %4101 = vmatprep.mubr.bf16.mxu0 0
        %4102 = vmatmul.mubr.bf16.gmra.mrb[0].mxu0 %v835
        %v4103 = vpop.f32.mrb[0].mxu0
        %v4104 = vadd.f32 %v3911, %v4103
        %v4105 = vpop.f32.mrb[0].mxu0
        %v4106 = vadd.f32 %v3913, %v4105
        %v4107 = vpop.f32.mrb[0].mxu0
        %v4108 = vadd.f32 %v3915, %v4107
        %v4109 = vpop.f32.mrb[0].mxu0
        %v4110 = vadd.f32 %v3917, %v4109
        %4111 = vmatprep.mubr.bf16.mxu0 0
        %4112 = vmatmul.mubr.bf16.gmra.mrb[0].mxu0 %v838
        %v4113 = vpop.f32.mrb[0].mxu0
        %v4114 = vadd.f32 %v3921, %v4113
        %v4115 = vpop.f32.mrb[0].mxu0
        %v4116 = vadd.f32 %v3923, %v4115
        %v4117 = vpop.f32.mrb[0].mxu0
        %v4118 = vadd.f32 %v3925, %v4117
        %v4119 = vpop.f32.mrb[0].mxu0
        %v4120 = vadd.f32 %v3927, %v4119
        %4121 = vmatprep.mubr.bf16.mxu0 0
        %4122 = vmatmul.mubr.bf16.gmra.mrb[0].mxu0 %v841
        %v4123 = vpop.f32.mrb[0].mxu0
        %v4124 = vadd.f32 %v3931, %v4123
        %v4125 = vpop.f32.mrb[0].mxu0
        %v4126 = vadd.f32 %v3933, %v4125
        %v4127 = vpop.f32.mrb[0].mxu0
        %v4128 = vadd.f32 %v3935, %v4127
        %v4129 = vpop.f32.mrb[0].mxu0
        %v4130 = vadd.f32 %v3937, %v4129
        %4131 = vmatprep.mubr.bf16.mxu0 0
        %4132 = vmatmul.mubr.bf16.gmra.mrb[0].mxu0 %v978
        %v4133 = vpop.f32.mrb[0].mxu0
        %v4134 = vadd.f32 %v3941, %v4133
        %v4135 = vpop.f32.mrb[0].mxu0
        %v4136 = vadd.f32 %v3943, %v4135
        %v4137 = vpop.f32.mrb[0].mxu0
        %v4138 = vadd.f32 %v3945, %v4137
        %v4139 = vpop.f32.mrb[0].mxu0
        %v4140 = vadd.f32 %v3947, %v4139
        %4141 = vmatprep.mubr.bf16.mxu0 0
        %4142 = vmatmul.mubr.bf16.gmra.mrb[0].mxu0 %v3284
        %v4143 = vpop.f32.mrb[0].mxu0
        %v4144 = vadd.f32 %v3951, %v4143
        %v4145 = vpop.f32.mrb[0].mxu0
        %v4146 = vadd.f32 %v3953, %v4145
        %v4147 = vpop.f32.mrb[0].mxu0
        %v4148 = vadd.f32 %v3955, %v4147
        %v4149 = vpop.f32.mrb[0].mxu0
        %v4150 = vadd.f32 %v3957, %v4149
        %4151 = vdwg.mxu0
        %4152 = vmatprep.subr.bf16.mxu0 0
        %4153 = vmatpush1.bf16.msra.mxu0 %v3624
        %4154 = vmatprep.subr.bf16.mxu0 0
        %4155 = vmatpush1.bf16.msra.mxu0 %v3627
        %4156 = vmatprep.subr.bf16.mxu0 0
        %4157 = vmatpush1.bf16.msra.mxu0 %v3630
        %4158 = vmatprep.subr.bf16.mxu0 0
        %4159 = vmatpush1.bf16.msra.mxu0 %v3633
        %4160 = vmatprep.subr.bf16.mxu0 0
        %4161 = vmatpush1.bf16.msra.mxu0 %v3636
        %4162 = vmatprep.subr.bf16.mxu0 0
        %4163 = vmatpush1.bf16.msra.mxu0 %v3639
        %4164 = vmatprep.subr.bf16.mxu0 0
        %4165 = vmatpush1.bf16.msra.mxu0 %v3642
        %4166 = vmatprep.subr.bf16.mxu0 0
        %4167 = vmatpush1.bf16.msra.mxu0 %v3645
        %4168 = vmatprep.subr.bf16.mxu0 0
        %4169 = vmatpush1.bf16.msra.mxu0 %v3648
        %4170 = vmatprep.subr.bf16.mxu0 0
        %4171 = vmatpush1.bf16.msra.mxu0 %v3651
        %4172 = vmatprep.subr.bf16.mxu0 0
        %4173 = vmatpush1.bf16.msra.mxu0 %v3654
        %4174 = vmatprep.subr.bf16.mxu0 0
        %4175 = vmatpush1.bf16.msra.mxu0 %v3657
        %4176 = vmatprep.subr.bf16.mxu0 0
        %4177 = vmatpush1.bf16.msra.mxu0 %v3660
        %4178 = vmatprep.subr.bf16.mxu0 0
        %4179 = vmatpush1.bf16.msra.mxu0 %v3663
        %4180 = vmatprep.subr.bf16.mxu0 0
        %4181 = vmatpush1.bf16.msra.mxu0 %v3666
        %4182 = vmatprep.subr.bf16.mxu0 0
        %4183 = vmatpush1.bf16.msra.mxu0 %v3669
        %4184 = vmatprep.mubr.bf16.mxu0 %v620
        %4185 = vmatmul.mubr.bf16.gmra.mrb[0].mxu0 %v506
        %v4186 = vpop.f32.mrb[0].mxu0
        %v4187 = vadd.f32 0.0, %v4186
        %v4188 = vpop.f32.mrb[0].mxu0
        %v4189 = vpop.f32.mrb[0].mxu0
        %v4190 = vadd.f32 0.0, %v4189
        %v4191 = vpop.f32.mrb[0].mxu0
        %4192 = vmatprep.mubr.bf16.mxu0 %v632
        %4193 = vmatmul.mubr.bf16.gmra.mrb[0].mxu0 %v507
        %v4194 = vpop.f32.mrb[0].mxu0
        %v4195 = vadd.f32 0.0, %v4194
        %v4196 = vpop.f32.mrb[0].mxu0
        %v4197 = vpop.f32.mrb[0].mxu0
        %v4198 = vadd.f32 0.0, %v4197
        %v4199 = vpop.f32.mrb[0].mxu0
        %4200 = vmatprep.mubr.bf16.mxu0 %v644
        %4201 = vmatmul.mubr.bf16.gmra.mrb[0].mxu0 %v508
        %v4202 = vpop.f32.mrb[0].mxu0
        %v4203 = vadd.f32 0.0, %v4202
        %v4204 = vpop.f32.mrb[0].mxu0
        %v4205 = vpop.f32.mrb[0].mxu0
        %v4206 = vadd.f32 0.0, %v4205
        %v4207 = vpop.f32.mrb[0].mxu0
        %4208 = vmatprep.mubr.bf16.mxu0 %v656
        %4209 = vmatmul.mubr.bf16.gmra.mrb[0].mxu0 %v509
        %v4210 = vpop.f32.mrb[0].mxu0
        %v4211 = vadd.f32 0.0, %v4210
        %v4212 = vpop.f32.mrb[0].mxu0
        %v4213 = vpop.f32.mrb[0].mxu0
        %v4214 = vadd.f32 0.0, %v4213
        %v4215 = vpop.f32.mrb[0].mxu0
        %4216 = vmatprep.mubr.bf16.mxu0 %v668
        %4217 = vmatmul.mubr.bf16.gmra.mrb[0].mxu0 %v510
        %v4218 = vpop.f32.mrb[0].mxu0
        %v4219 = vadd.f32 0.0, %v4218
        %v4220 = vpop.f32.mrb[0].mxu0
        %v4221 = vpop.f32.mrb[0].mxu0
        %v4222 = vadd.f32 0.0, %v4221
        %v4223 = vpop.f32.mrb[0].mxu0
        %4224 = vmatprep.mubr.bf16.mxu0 %v680
        %4225 = vmatmul.mubr.bf16.gmra.mrb[0].mxu0 %v511
        %v4226 = vpop.f32.mrb[0].mxu0
        %v4227 = vadd.f32 0.0, %v4226
        %v4228 = vpop.f32.mrb[0].mxu0
        %v4229 = vpop.f32.mrb[0].mxu0
        %v4230 = vadd.f32 0.0, %v4229
        %v4231 = vpop.f32.mrb[0].mxu0
        %4232 = vmatprep.mubr.bf16.mxu0 %v692
        %4233 = vmatmul.mubr.bf16.gmra.mrb[0].mxu0 %v512
        %v4234 = vpop.f32.mrb[0].mxu0
        %v4235 = vadd.f32 0.0, %v4234
        %v4236 = vpop.f32.mrb[0].mxu0
        %v4237 = vpop.f32.mrb[0].mxu0
        %v4238 = vadd.f32 0.0, %v4237
        %v4239 = vpop.f32.mrb[0].mxu0
        %4240 = vmatprep.mubr.bf16.mxu0 %v704
        %4241 = vmatmul.mubr.bf16.gmra.mrb[0].mxu0 %v513
        %v4242 = vpop.f32.mrb[0].mxu0
        %v4243 = vadd.f32 0.0, %v4242
        %v4244 = vpop.f32.mrb[0].mxu0
        %v4245 = vpop.f32.mrb[0].mxu0
        %v4246 = vadd.f32 0.0, %v4245
        %v4247 = vpop.f32.mrb[0].mxu0
        %4248 = vmatprep.mubr.bf16.mxu0 %v716
        %4249 = vmatmul.mubr.bf16.gmra.mrb[0].mxu0 %v514
        %v4250 = vpop.f32.mrb[0].mxu0
        %v4251 = vadd.f32 0.0, %v4250
        %v4252 = vpop.f32.mrb[0].mxu0
        %v4253 = vpop.f32.mrb[0].mxu0
        %v4254 = vadd.f32 0.0, %v4253
        %v4255 = vpop.f32.mrb[0].mxu0
        %4256 = vmatprep.mubr.bf16.mxu0 %v728
        %4257 = vmatmul.mubr.bf16.gmra.mrb[0].mxu0 %v515
        %v4258 = vpop.f32.mrb[0].mxu0
        %v4259 = vadd.f32 0.0, %v4258
        %v4260 = vpop.f32.mrb[0].mxu0
        %v4261 = vpop.f32.mrb[0].mxu0
        %v4262 = vadd.f32 0.0, %v4261
        %v4263 = vpop.f32.mrb[0].mxu0
        %4264 = vmatprep.mubr.bf16.mxu0 %v740
        %4265 = vmatmul.mubr.bf16.gmra.mrb[0].mxu0 %v516
        %v4266 = vpop.f32.mrb[0].mxu0
        %v4267 = vadd.f32 0.0, %v4266
        %v4268 = vpop.f32.mrb[0].mxu0
        %v4269 = vpop.f32.mrb[0].mxu0
        %v4270 = vadd.f32 0.0, %v4269
        %v4271 = vpop.f32.mrb[0].mxu0
        %4272 = vmatprep.mubr.bf16.mxu0 %v752
        %4273 = vmatmul.mubr.bf16.gmra.mrb[0].mxu0 %v517
        %v4274 = vpop.f32.mrb[0].mxu0
        %v4275 = vadd.f32 0.0, %v4274
        %v4276 = vpop.f32.mrb[0].mxu0
        %v4277 = vpop.f32.mrb[0].mxu0
        %v4278 = vadd.f32 0.0, %v4277
        %v4279 = vpop.f32.mrb[0].mxu0
        %4280 = vmatprep.mubr.bf16.mxu0 %v764
        %4281 = vmatmul.mubr.bf16.gmra.mrb[0].mxu0 %v518
        %v4282 = vpop.f32.mrb[0].mxu0
        %v4283 = vadd.f32 0.0, %v4282
        %v4284 = vpop.f32.mrb[0].mxu0
        %v4285 = vpop.f32.mrb[0].mxu0
        %v4286 = vadd.f32 0.0, %v4285
        %v4287 = vpop.f32.mrb[0].mxu0
        %4288 = vmatprep.mubr.bf16.mxu0 %v776
        %4289 = vmatmul.mubr.bf16.gmra.mrb[0].mxu0 %v519
        %v4290 = vpop.f32.mrb[0].mxu0
        %v4291 = vadd.f32 0.0, %v4290
        %v4292 = vpop.f32.mrb[0].mxu0
        %v4293 = vpop.f32.mrb[0].mxu0
        %v4294 = vadd.f32 0.0, %v4293
        %v4295 = vpop.f32.mrb[0].mxu0
        %4296 = vmatprep.mubr.bf16.mxu0 %v974
        %4297 = vmatmul.mubr.bf16.gmra.mrb[0].mxu0 %v958
        %v4298 = vpop.f32.mrb[0].mxu0
        %v4299 = vadd.f32 0.0, %v4298
        %v4300 = vpop.f32.mrb[0].mxu0
        %v4301 = vpop.f32.mrb[0].mxu0
        %v4302 = vadd.f32 0.0, %v4301
        %v4303 = vpop.f32.mrb[0].mxu0
        %4304 = vmatprep.mubr.bf16.mxu0 %v3280
        %4305 = vmatmul.mubr.bf16.gmra.mrb[0].mxu0 %v3264
        %v4306 = vpop.f32.mrb[0].mxu0
        %v4307 = vadd.f32 0.0, %v4306
        %v4308 = vpop.f32.mrb[0].mxu0
        %v4309 = vpop.f32.mrb[0].mxu0
        %v4310 = vadd.f32 0.0, %v4309
        %v4311 = vpop.f32.mrb[0].mxu0
        %4312 = vdwg.mxu0
        %4313 = vmatprep.subr.bf16.mxu0 0
        %4314 = vmatpush1.bf16.msra.mxu0 %v3672
        %4315 = vmatprep.subr.bf16.mxu0 0
        %4316 = vmatpush1.bf16.msra.mxu0 %v3675
        %4317 = vmatprep.subr.bf16.mxu0 0
        %4318 = vmatpush1.bf16.msra.mxu0 %v3678
        %4319 = vmatprep.subr.bf16.mxu0 0
        %4320 = vmatpush1.bf16.msra.mxu0 %v3681
        %4321 = vmatprep.subr.bf16.mxu0 0
        %4322 = vmatpush1.bf16.msra.mxu0 %v3684
        %4323 = vmatprep.subr.bf16.mxu0 0
        %4324 = vmatpush1.bf16.msra.mxu0 %v3687
        %4325 = vmatprep.subr.bf16.mxu0 0
        %4326 = vmatpush1.bf16.msra.mxu0 %v3690
        %4327 = vmatprep.subr.bf16.mxu0 0
        %4328 = vmatpush1.bf16.msra.mxu0 %v3693
        %4329 = vmatprep.subr.bf16.mxu0 0
        %4330 = vmatpush1.bf16.msra.mxu0 0
        %4331 = vmatprep.subr.bf16.mxu0 0
        %4332 = vmatpush1.bf16.msra.mxu0 0
        %4333 = vmatprep.subr.bf16.mxu0 0
        %4334 = vmatpush1.bf16.msra.mxu0 0
        %4335 = vmatprep.subr.bf16.mxu0 0
        %4336 = vmatpush1.bf16.msra.mxu0 0
        %4337 = vmatprep.subr.bf16.mxu0 0
        %4338 = vmatpush1.bf16.msra.mxu0 0
        %4339 = vmatprep.subr.bf16.mxu0 0
        %4340 = vmatpush1.bf16.msra.mxu0 0
        %4341 = vmatprep.subr.bf16.mxu0 0
        %4342 = vmatpush1.bf16.msra.mxu0 0
        %4343 = vmatprep.subr.bf16.mxu0 0
        %4344 = vmatpush1.bf16.msra.mxu0 0
        %4345 = vmatprep.mubr.bf16.mxu0 0
        %4346 = vmatmul.mubr.bf16.gmra.mrb[0].mxu0 %v802
        %v4347 = vpop.f32.mrb[0].mxu0
        %v4348 = vadd.f32 %v4187, %v4347
        %v4349 = vpop.f32.mrb[0].mxu0
        %v4350 = vpop.f32.mrb[0].mxu0
        %v4351 = vadd.f32 %v4190, %v4350
        %v4352 = vpop.f32.mrb[0].mxu0
        %4353 = vmatprep.mubr.bf16.mxu0 0
        %4354 = vmatmul.mubr.bf16.gmra.mrb[0].mxu0 %v805
        %v4355 = vpop.f32.mrb[0].mxu0
        %v4356 = vadd.f32 %v4195, %v4355
        %v4357 = vpop.f32.mrb[0].mxu0
        %v4358 = vpop.f32.mrb[0].mxu0
        %v4359 = vadd.f32 %v4198, %v4358
        %v4360 = vpop.f32.mrb[0].mxu0
        %4361 = vmatprep.mubr.bf16.mxu0 0
        %4362 = vmatmul.mubr.bf16.gmra.mrb[0].mxu0 %v808
        %v4363 = vpop.f32.mrb[0].mxu0
        %v4364 = vadd.f32 %v4203, %v4363
        %v4365 = vpop.f32.mrb[0].mxu0
        %v4366 = vpop.f32.mrb[0].mxu0
        %v4367 = vadd.f32 %v4206, %v4366
        %v4368 = vpop.f32.mrb[0].mxu0
        %4369 = vmatprep.mubr.bf16.mxu0 0
        %4370 = vmatmul.mubr.bf16.gmra.mrb[0].mxu0 %v811
        %v4371 = vpop.f32.mrb[0].mxu0
        %v4372 = vadd.f32 %v4211, %v4371
        %v4373 = vpop.f32.mrb[0].mxu0
        %v4374 = vpop.f32.mrb[0].mxu0
        %v4375 = vadd.f32 %v4214, %v4374
        %v4376 = vpop.f32.mrb[0].mxu0
        %4377 = vmatprep.mubr.bf16.mxu0 0
        %4378 = vmatmul.mubr.bf16.gmra.mrb[0].mxu0 %v814
        %v4379 = vpop.f32.mrb[0].mxu0
        %v4380 = vadd.f32 %v4219, %v4379
        %v4381 = vpop.f32.mrb[0].mxu0
        %v4382 = vpop.f32.mrb[0].mxu0
        %v4383 = vadd.f32 %v4222, %v4382
        %v4384 = vpop.f32.mrb[0].mxu0
        %4385 = vmatprep.mubr.bf16.mxu0 0
        %4386 = vmatmul.mubr.bf16.gmra.mrb[0].mxu0 %v817
        %v4387 = vpop.f32.mrb[0].mxu0
        %v4388 = vadd.f32 %v4227, %v4387
        %v4389 = vpop.f32.mrb[0].mxu0
        %v4390 = vpop.f32.mrb[0].mxu0
        %v4391 = vadd.f32 %v4230, %v4390
        %v4392 = vpop.f32.mrb[0].mxu0
        %4393 = vmatprep.mubr.bf16.mxu0 0
        %4394 = vmatmul.mubr.bf16.gmra.mrb[0].mxu0 %v820
        %v4395 = vpop.f32.mrb[0].mxu0
        %v4396 = vadd.f32 %v4235, %v4395
        %v4397 = vpop.f32.mrb[0].mxu0
        %v4398 = vpop.f32.mrb[0].mxu0
        %v4399 = vadd.f32 %v4238, %v4398
        %v4400 = vpop.f32.mrb[0].mxu0
        %4401 = vmatprep.mubr.bf16.mxu0 0
        %4402 = vmatmul.mubr.bf16.gmra.mrb[0].mxu0 %v823
        %v4403 = vpop.f32.mrb[0].mxu0
        %v4404 = vadd.f32 %v4243, %v4403
        %v4405 = vpop.f32.mrb[0].mxu0
        %v4406 = vpop.f32.mrb[0].mxu0
        %v4407 = vadd.f32 %v4246, %v4406
        %v4408 = vpop.f32.mrb[0].mxu0
        %4409 = vmatprep.mubr.bf16.mxu0 0
        %4410 = vmatmul.mubr.bf16.gmra.mrb[0].mxu0 %v826
        %v4411 = vpop.f32.mrb[0].mxu0
        %v4412 = vadd.f32 %v4251, %v4411
        %v4413 = vpop.f32.mrb[0].mxu0
        %v4414 = vpop.f32.mrb[0].mxu0
        %v4415 = vadd.f32 %v4254, %v4414
        %v4416 = vpop.f32.mrb[0].mxu0
        %4417 = vmatprep.mubr.bf16.mxu0 0
        %4418 = vmatmul.mubr.bf16.gmra.mrb[0].mxu0 %v829
        %v4419 = vpop.f32.mrb[0].mxu0
        %v4420 = vadd.f32 %v4259, %v4419
        %v4421 = vpop.f32.mrb[0].mxu0
        %v4422 = vpop.f32.mrb[0].mxu0
        %v4423 = vadd.f32 %v4262, %v4422
        %v4424 = vpop.f32.mrb[0].mxu0
        %4425 = vmatprep.mubr.bf16.mxu0 0
        %4426 = vmatmul.mubr.bf16.gmra.mrb[0].mxu0 %v832
        %v4427 = vpop.f32.mrb[0].mxu0
        %v4428 = vadd.f32 %v4267, %v4427
        %v4429 = vpop.f32.mrb[0].mxu0
        %v4430 = vpop.f32.mrb[0].mxu0
        %v4431 = vadd.f32 %v4270, %v4430
        %v4432 = vpop.f32.mrb[0].mxu0
        %4433 = vmatprep.mubr.bf16.mxu0 0
        %4434 = vmatmul.mubr.bf16.gmra.mrb[0].mxu0 %v835
        %v4435 = vpop.f32.mrb[0].mxu0
        %v4436 = vadd.f32 %v4275, %v4435
        %v4437 = vpop.f32.mrb[0].mxu0
        %v4438 = vpop.f32.mrb[0].mxu0
        %v4439 = vadd.f32 %v4278, %v4438
        %v4440 = vpop.f32.mrb[0].mxu0
        %4441 = vmatprep.mubr.bf16.mxu0 0
        %4442 = vmatmul.mubr.bf16.gmra.mrb[0].mxu0 %v838
        %v4443 = vpop.f32.mrb[0].mxu0
        %v4444 = vadd.f32 %v4283, %v4443
        %v4445 = vpop.f32.mrb[0].mxu0
        %v4446 = vpop.f32.mrb[0].mxu0
        %v4447 = vadd.f32 %v4286, %v4446
        %v4448 = vpop.f32.mrb[0].mxu0
        %4449 = vmatprep.mubr.bf16.mxu0 0
        %4450 = vmatmul.mubr.bf16.gmra.mrb[0].mxu0 %v841
        %v4451 = vpop.f32.mrb[0].mxu0
        %v4452 = vadd.f32 %v4291, %v4451
        %v4453 = vpop.f32.mrb[0].mxu0
        %v4454 = vpop.f32.mrb[0].mxu0
        %v4455 = vadd.f32 %v4294, %v4454
        %v4456 = vpop.f32.mrb[0].mxu0
        %4457 = vmatprep.mubr.bf16.mxu0 0
        %4458 = vmatmul.mubr.bf16.gmra.mrb[0].mxu0 %v978
        %v4459 = vpop.f32.mrb[0].mxu0
        %v4460 = vadd.f32 %v4299, %v4459
        %v4461 = vpop.f32.mrb[0].mxu0
        %v4462 = vpop.f32.mrb[0].mxu0
        %v4463 = vadd.f32 %v4302, %v4462
        %v4464 = vpop.f32.mrb[0].mxu0
        %4465 = vmatprep.mubr.bf16.mxu0 0
        %4466 = vmatmul.mubr.bf16.gmra.mrb[0].mxu0 %v3284
        %v4467 = vpop.f32.mrb[0].mxu0
        %v4468 = vadd.f32 %v4307, %v4467
        %v4469 = vpop.f32.mrb[0].mxu0
        %v4470 = vpop.f32.mrb[0].mxu0
        %v4471 = vadd.f32 %v4310, %v4470
        %v4472 = vpop.f32.mrb[0].mxu0
        %4473 = vdwg.mxu0
        %v4474 = vadd.f32 %v2780, %v3994
        %v4475 = vadd.f32 %v2782, %v3996
        %v4476 = vadd.f32 %v3134, %v4348
        %v4477 = vadd.f32 %v2784, %v3998
        %v4478 = vadd.f32 %v2786, %v4000
        %v4479 = vadd.f32 %v3137, %v4351
        %v4480 = vadd.f32 %v2790, %v4004
        %v4481 = vadd.f32 %v2792, %v4006
        %v4482 = vadd.f32 %v3142, %v4356
        %v4483 = vadd.f32 %v2794, %v4008
        %v4484 = vadd.f32 %v2796, %v4010
        %v4485 = vadd.f32 %v3145, %v4359
        %v4486 = vadd.f32 %v2800, %v4014
        %v4487 = vadd.f32 %v2802, %v4016
        %v4488 = vadd.f32 %v3150, %v4364
        %v4489 = vadd.f32 %v2804, %v4018
        %v4490 = vadd.f32 %v2806, %v4020
        %v4491 = vadd.f32 %v3153, %v4367
        %v4492 = vadd.f32 %v2810, %v4024
        %v4493 = vadd.f32 %v2812, %v4026
        %v4494 = vadd.f32 %v3158, %v4372
        %v4495 = vadd.f32 %v2814, %v4028
        %v4496 = vadd.f32 %v2816, %v4030
        %v4497 = vadd.f32 %v3161, %v4375
        %v4498 = vadd.f32 %v2820, %v4034
        %v4499 = vadd.f32 %v2822, %v4036
        %v4500 = vadd.f32 %v3166, %v4380
        %v4501 = vadd.f32 %v2824, %v4038
        %v4502 = vadd.f32 %v2826, %v4040
        %v4503 = vadd.f32 %v3169, %v4383
        %v4504 = vadd.f32 %v2830, %v4044
        %v4505 = vadd.f32 %v2832, %v4046
        %v4506 = vadd.f32 %v3174, %v4388
        %v4507 = vadd.f32 %v2834, %v4048
        %v4508 = vadd.f32 %v2836, %v4050
        %v4509 = vadd.f32 %v3177, %v4391
        %v4510 = vadd.f32 %v2840, %v4054
        %v4511 = vadd.f32 %v2842, %v4056
        %v4512 = vadd.f32 %v3182, %v4396
        %v4513 = vadd.f32 %v2844, %v4058
        %v4514 = vadd.f32 %v2846, %v4060
        %v4515 = vadd.f32 %v3185, %v4399
        %v4516 = vadd.f32 %v2850, %v4064
        %v4517 = vadd.f32 %v2852, %v4066
        %v4518 = vadd.f32 %v3190, %v4404
        %v4519 = vadd.f32 %v2854, %v4068
        %v4520 = vadd.f32 %v2856, %v4070
        %v4521 = vadd.f32 %v3193, %v4407
        %v4522 = vadd.f32 %v2860, %v4074
        %v4523 = vadd.f32 %v2862, %v4076
        %v4524 = vadd.f32 %v3198, %v4412
        %v4525 = vadd.f32 %v2864, %v4078
        %v4526 = vadd.f32 %v2866, %v4080
        %v4527 = vadd.f32 %v3201, %v4415
        %v4528 = vadd.f32 %v2870, %v4084
        %v4529 = vadd.f32 %v2872, %v4086
        %v4530 = vadd.f32 %v3206, %v4420
        %v4531 = vadd.f32 %v2874, %v4088
        %v4532 = vadd.f32 %v2876, %v4090
        %v4533 = vadd.f32 %v3209, %v4423
        %v4534 = vadd.f32 %v2880, %v4094
        %v4535 = vadd.f32 %v2882, %v4096
        %v4536 = vadd.f32 %v3214, %v4428
        %v4537 = vadd.f32 %v2884, %v4098
        %v4538 = vadd.f32 %v2886, %v4100
        %v4539 = vadd.f32 %v3217, %v4431
        %v4540 = vadd.f32 %v2890, %v4104
        %v4541 = vadd.f32 %v2892, %v4106
        %v4542 = vadd.f32 %v3222, %v4436
        %v4543 = vadd.f32 %v2894, %v4108
        %v4544 = vadd.f32 %v2896, %v4110
        %v4545 = vadd.f32 %v3225, %v4439
        %v4546 = vadd.f32 %v2900, %v4114
        %v4547 = vadd.f32 %v2902, %v4116
        %v4548 = vadd.f32 %v3230, %v4444
        %v4549 = vadd.f32 %v2904, %v4118
        %v4550 = vadd.f32 %v2906, %v4120
        %v4551 = vadd.f32 %v3233, %v4447
        %v4552 = vadd.f32 %v2910, %v4124
        %v4553 = vadd.f32 %v2912, %v4126
        %v4554 = vadd.f32 %v3238, %v4452
        %v4555 = vadd.f32 %v2914, %v4128
        %v4556 = vadd.f32 %v2916, %v4130
        %v4557 = vadd.f32 %v3241, %v4455
        %v4558 = vadd.f32 %v2920, %v4134
        %v4559 = vadd.f32 %v2922, %v4136
        %v4560 = vadd.f32 %v3246, %v4460
        %v4561 = vadd.f32 %v2924, %v4138
        %v4562 = vadd.f32 %v2926, %v4140
        %v4563 = vadd.f32 %v3249, %v4463
        %v4564 = vadd.f32 %v2930, %v4144
        %v4565 = vadd.f32 %v2932, %v4146
        %v4566 = vadd.f32 %v3254, %v4468
        %v4567 = vadd.f32 %v2934, %v4148
        %v4568 = vadd.f32 %v2936, %v4150
        %v4569 = vadd.f32 %v3257, %v4471
        %v4570 = vld [vmem:[%s4] sm:$0x7]
        %v4572 = vlaneseq
        %v4573 = vshrl.u32 %v4572, 7
        %v4574 = vsub.s32 0, %v4573
        %v4575 = vrot.slane %v4570, %v4574
        %v4576 = vlaneseq
        %v4577 = vshrl.u32 %v4576, 7
        %v4578 = vsub.s32 1, %v4577
        %v4579 = vrot.slane %v4570, %v4578
        %v4580 = vlaneseq
        %v4581 = vshrl.u32 %v4580, 7
        %v4582 = vsub.s32 2, %v4581
        %v4583 = vrot.slane %v4570, %v4582
        %v4587 = vadd.f32 %v4474, %v4575
        %v4588 = vadd.f32 %v4475, %v4579
        %v4589 = vadd.f32 %v4476, %v4583
        %v4590 = vadd.f32 %v4477, %v4575
        %v4591 = vadd.f32 %v4478, %v4579
        %v4592 = vadd.f32 %v4479, %v4583
        %v4593 = vadd.f32 %v4480, %v4575
        %v4594 = vadd.f32 %v4481, %v4579
        %v4595 = vadd.f32 %v4482, %v4583
        %v4596 = vadd.f32 %v4483, %v4575
        %v4597 = vadd.f32 %v4484, %v4579
        %v4598 = vadd.f32 %v4485, %v4583
        %v4599 = vadd.f32 %v4486, %v4575
        %v4600 = vadd.f32 %v4487, %v4579
        %v4601 = vadd.f32 %v4488, %v4583
        %v4602 = vadd.f32 %v4489, %v4575
        %v4603 = vadd.f32 %v4490, %v4579
        %v4604 = vadd.f32 %v4491, %v4583
        %v4605 = vadd.f32 %v4492, %v4575
        %v4606 = vadd.f32 %v4493, %v4579
        %v4607 = vadd.f32 %v4494, %v4583
        %v4608 = vadd.f32 %v4495, %v4575
        %v4609 = vadd.f32 %v4496, %v4579
        %v4610 = vadd.f32 %v4497, %v4583
        %v4611 = vadd.f32 %v4498, %v4575
        %v4612 = vadd.f32 %v4499, %v4579
        %v4613 = vadd.f32 %v4500, %v4583
        %v4614 = vadd.f32 %v4501, %v4575
        %v4615 = vadd.f32 %v4502, %v4579
        %v4616 = vadd.f32 %v4503, %v4583
        %v4617 = vadd.f32 %v4504, %v4575
        %v4618 = vadd.f32 %v4505, %v4579
        %v4619 = vadd.f32 %v4506, %v4583
        %v4620 = vadd.f32 %v4507, %v4575
        %v4621 = vadd.f32 %v4508, %v4579
        %v4622 = vadd.f32 %v4509, %v4583
        %v4623 = vadd.f32 %v4510, %v4575
        %v4624 = vadd.f32 %v4511, %v4579
        %v4625 = vadd.f32 %v4512, %v4583
        %v4626 = vadd.f32 %v4513, %v4575
        %v4627 = vadd.f32 %v4514, %v4579
        %v4628 = vadd.f32 %v4515, %v4583
        %v4629 = vadd.f32 %v4516, %v4575
        %v4630 = vadd.f32 %v4517, %v4579
        %v4631 = vadd.f32 %v4518, %v4583
        %v4632 = vadd.f32 %v4519, %v4575
        %v4633 = vadd.f32 %v4520, %v4579
        %v4634 = vadd.f32 %v4521, %v4583
        %v4635 = vadd.f32 %v4522, %v4575
        %v4636 = vadd.f32 %v4523, %v4579
        %v4637 = vadd.f32 %v4524, %v4583
        %v4638 = vadd.f32 %v4525, %v4575
        %v4639 = vadd.f32 %v4526, %v4579
        %v4640 = vadd.f32 %v4527, %v4583
        %v4641 = vadd.f32 %v4528, %v4575
        %v4642 = vadd.f32 %v4529, %v4579
        %v4643 = vadd.f32 %v4530, %v4583
        %v4644 = vadd.f32 %v4531, %v4575
        %v4645 = vadd.f32 %v4532, %v4579
        %v4646 = vadd.f32 %v4533, %v4583
        %v4647 = vadd.f32 %v4534, %v4575
        %v4648 = vadd.f32 %v4535, %v4579
        %v4649 = vadd.f32 %v4536, %v4583
        %v4650 = vadd.f32 %v4537, %v4575
        %v4651 = vadd.f32 %v4538, %v4579
        %v4652 = vadd.f32 %v4539, %v4583
        %v4653 = vadd.f32 %v4540, %v4575
        %v4654 = vadd.f32 %v4541, %v4579
        %v4655 = vadd.f32 %v4542, %v4583
        %v4656 = vadd.f32 %v4543, %v4575
        %v4657 = vadd.f32 %v4544, %v4579
        %v4658 = vadd.f32 %v4545, %v4583
        %v4659 = vadd.f32 %v4546, %v4575
        %v4660 = vadd.f32 %v4547, %v4579
        %v4661 = vadd.f32 %v4548, %v4583
        %v4662 = vadd.f32 %v4549, %v4575
        %v4663 = vadd.f32 %v4550, %v4579
        %v4664 = vadd.f32 %v4551, %v4583
        %v4665 = vadd.f32 %v4552, %v4575
        %v4666 = vadd.f32 %v4553, %v4579
        %v4667 = vadd.f32 %v4554, %v4583
        %v4668 = vadd.f32 %v4555, %v4575
        %v4669 = vadd.f32 %v4556, %v4579
        %v4670 = vadd.f32 %v4557, %v4583
        %v4671 = vadd.f32 %v4558, %v4575
        %v4672 = vadd.f32 %v4559, %v4579
        %v4673 = vadd.f32 %v4560, %v4583
        %v4674 = vadd.f32 %v4561, %v4575
        %v4675 = vadd.f32 %v4562, %v4579
        %v4676 = vadd.f32 %v4563, %v4583
        %v4677 = vadd.f32 %v4564, %v4575
        %v4678 = vadd.f32 %v4565, %v4579
        %v4679 = vadd.f32 %v4566, %v4583
        %v4680 = vadd.f32 %v4567, %v4575
        %v4681 = vadd.f32 %v4568, %v4579
        %v4682 = vadd.f32 %v4569, %v4583
        %v4683 = vmax.f32 %v4587, 0.0
        %v4684 = vmax.f32 %v4588, 0.0
        %v4685 = vmax.f32 %v4589, 0.0
        %v4686 = vmax.f32 %v4590, 0.0
        %v4687 = vmax.f32 %v4591, 0.0
        %v4688 = vmax.f32 %v4592, 0.0
        %v4689 = vmax.f32 %v4593, 0.0
        %v4690 = vmax.f32 %v4594, 0.0
        %v4691 = vmax.f32 %v4595, 0.0
        %v4692 = vmax.f32 %v4596, 0.0
        %v4693 = vmax.f32 %v4597, 0.0
        %v4694 = vmax.f32 %v4598, 0.0
        %v4695 = vmax.f32 %v4599, 0.0
        %v4696 = vmax.f32 %v4600, 0.0
        %v4697 = vmax.f32 %v4601, 0.0
        %v4698 = vmax.f32 %v4602, 0.0
        %v4699 = vmax.f32 %v4603, 0.0
        %v4700 = vmax.f32 %v4604, 0.0
        %v4701 = vmax.f32 %v4605, 0.0
        %v4702 = vmax.f32 %v4606, 0.0
        %v4703 = vmax.f32 %v4607, 0.0
        %v4704 = vmax.f32 %v4608, 0.0
        %v4705 = vmax.f32 %v4609, 0.0
        %v4706 = vmax.f32 %v4610, 0.0
        %v4707 = vmax.f32 %v4611, 0.0
        %v4708 = vmax.f32 %v4612, 0.0
        %v4709 = vmax.f32 %v4613, 0.0
        %v4710 = vmax.f32 %v4614, 0.0
        %v4711 = vmax.f32 %v4615, 0.0
        %v4712 = vmax.f32 %v4616, 0.0
        %v4713 = vmax.f32 %v4617, 0.0
        %v4714 = vmax.f32 %v4618, 0.0
        %v4715 = vmax.f32 %v4619, 0.0
        %v4716 = vmax.f32 %v4620, 0.0
        %v4717 = vmax.f32 %v4621, 0.0
        %v4718 = vmax.f32 %v4622, 0.0
        %v4719 = vmax.f32 %v4623, 0.0
        %v4720 = vmax.f32 %v4624, 0.0
        %v4721 = vmax.f32 %v4625, 0.0
        %v4722 = vmax.f32 %v4626, 0.0
        %v4723 = vmax.f32 %v4627, 0.0
        %v4724 = vmax.f32 %v4628, 0.0
        %v4725 = vmax.f32 %v4629, 0.0
        %v4726 = vmax.f32 %v4630, 0.0
        %v4727 = vmax.f32 %v4631, 0.0
        %v4728 = vmax.f32 %v4632, 0.0
        %v4729 = vmax.f32 %v4633, 0.0
        %v4730 = vmax.f32 %v4634, 0.0
        %v4731 = vmax.f32 %v4635, 0.0
        %v4732 = vmax.f32 %v4636, 0.0
        %v4733 = vmax.f32 %v4637, 0.0
        %v4734 = vmax.f32 %v4638, 0.0
        %v4735 = vmax.f32 %v4639, 0.0
        %v4736 = vmax.f32 %v4640, 0.0
        %v4737 = vmax.f32 %v4641, 0.0
        %v4738 = vmax.f32 %v4642, 0.0
        %v4739 = vmax.f32 %v4643, 0.0
        %v4740 = vmax.f32 %v4644, 0.0
        %v4741 = vmax.f32 %v4645, 0.0
        %v4742 = vmax.f32 %v4646, 0.0
        %v4743 = vmax.f32 %v4647, 0.0
        %v4744 = vmax.f32 %v4648, 0.0
        %v4745 = vmax.f32 %v4649, 0.0
        %v4746 = vmax.f32 %v4650, 0.0
        %v4747 = vmax.f32 %v4651, 0.0
        %v4748 = vmax.f32 %v4652, 0.0
        %v4749 = vmax.f32 %v4653, 0.0
        %v4750 = vmax.f32 %v4654, 0.0
        %v4751 = vmax.f32 %v4655, 0.0
        %v4752 = vmax.f32 %v4656, 0.0
        %v4753 = vmax.f32 %v4657, 0.0
        %v4754 = vmax.f32 %v4658, 0.0
        %v4755 = vmax.f32 %v4659, 0.0
        %v4756 = vmax.f32 %v4660, 0.0
        %v4757 = vmax.f32 %v4661, 0.0
        %v4758 = vmax.f32 %v4662, 0.0
        %v4759 = vmax.f32 %v4663, 0.0
        %v4760 = vmax.f32 %v4664, 0.0
        %v4761 = vmax.f32 %v4665, 0.0
        %v4762 = vmax.f32 %v4666, 0.0
        %v4763 = vmax.f32 %v4667, 0.0
        %v4764 = vmax.f32 %v4668, 0.0
        %v4765 = vmax.f32 %v4669, 0.0
        %v4766 = vmax.f32 %v4670, 0.0
        %v4767 = vmax.f32 %v4671, 0.0
        %v4768 = vmax.f32 %v4672, 0.0
        %v4769 = vmax.f32 %v4673, 0.0
        %v4770 = vmax.f32 %v4674, 0.0
        %v4771 = vmax.f32 %v4675, 0.0
        %v4772 = vmax.f32 %v4676, 0.0
        %v4773 = vmax.f32 %v4677, 0.0
        %v4774 = vmax.f32 %v4678, 0.0
        %v4775 = vmax.f32 %v4679, 0.0
        %v4776 = vmax.f32 %v4680, 0.0
        %v4777 = vmax.f32 %v4681, 0.0
        %v4778 = vmax.f32 %v4682, 0.0
        %v4779 = vpack.c.bf16 %v4686, %v4683
        %v4780 = vpack.c.bf16 %v4687, %v4684
        %v4781 = vpack.c.bf16 %v4688, %v4685
        %v4782 = vpack.c.bf16 %v4692, %v4689
        %v4783 = vpack.c.bf16 %v4693, %v4690
        %v4784 = vpack.c.bf16 %v4694, %v4691
        %v4785 = vpack.c.bf16 %v4698, %v4695
        %v4786 = vpack.c.bf16 %v4699, %v4696
        %v4787 = vpack.c.bf16 %v4700, %v4697
        %v4788 = vpack.c.bf16 %v4704, %v4701
        %v4789 = vpack.c.bf16 %v4705, %v4702
        %v4790 = vpack.c.bf16 %v4706, %v4703
        %v4791 = vpack.c.bf16 %v4710, %v4707
        %v4792 = vpack.c.bf16 %v4711, %v4708
        %v4793 = vpack.c.bf16 %v4712, %v4709
        %v4794 = vpack.c.bf16 %v4716, %v4713
        %v4795 = vpack.c.bf16 %v4717, %v4714
        %v4796 = vpack.c.bf16 %v4718, %v4715
        %v4797 = vpack.c.bf16 %v4722, %v4719
        %v4798 = vpack.c.bf16 %v4723, %v4720
        %v4799 = vpack.c.bf16 %v4724, %v4721
        %v4800 = vpack.c.bf16 %v4728, %v4725
        %v4801 = vpack.c.bf16 %v4729, %v4726
        %v4802 = vpack.c.bf16 %v4730, %v4727
        %v4803 = vpack.c.bf16 %v4734, %v4731
        %v4804 = vpack.c.bf16 %v4735, %v4732
        %v4805 = vpack.c.bf16 %v4736, %v4733
        %v4806 = vpack.c.bf16 %v4740, %v4737
        %v4807 = vpack.c.bf16 %v4741, %v4738
        %v4808 = vpack.c.bf16 %v4742, %v4739
        %v4809 = vpack.c.bf16 %v4746, %v4743
        %v4810 = vpack.c.bf16 %v4747, %v4744
        %v4811 = vpack.c.bf16 %v4748, %v4745
        %v4812 = vpack.c.bf16 %v4752, %v4749
        %v4813 = vpack.c.bf16 %v4753, %v4750
        %v4814 = vpack.c.bf16 %v4754, %v4751
        %v4815 = vpack.c.bf16 %v4758, %v4755
        %v4816 = vpack.c.bf16 %v4759, %v4756
        %v4817 = vpack.c.bf16 %v4760, %v4757
        %v4818 = vpack.c.bf16 %v4764, %v4761
        %v4819 = vpack.c.bf16 %v4765, %v4762
        %v4820 = vpack.c.bf16 %v4766, %v4763
        %v4821 = vpack.c.bf16 %v4770, %v4767
        %v4822 = vpack.c.bf16 %v4771, %v4768
        %v4823 = vpack.c.bf16 %v4772, %v4769
        %v4824 = vpack.c.bf16 %v4776, %v4773
        %v4825 = vpack.c.bf16 %v4777, %v4774
        %v4826 = vpack.c.bf16 %v4778, %v4775
        %v4875 = vunpack.c.l.b16 %v4779
        %v4876 = vunpack.c.l.b16 %v4780
        %v4877 = vunpack.c.l.b16 %v4781
        %v4878 = vunpack.c.h.b16 %v4779
        %v4879 = vunpack.c.h.b16 %v4780
        %v4880 = vunpack.c.h.b16 %v4781
        %v4881 = vunpack.c.l.b16 %v4782
        %v4882 = vunpack.c.l.b16 %v4783
        %v4883 = vunpack.c.l.b16 %v4784
        %v4884 = vunpack.c.h.b16 %v4782
        %v4885 = vunpack.c.h.b16 %v4783
        %v4886 = vunpack.c.h.b16 %v4784
        %v4887 = vunpack.c.l.b16 %v4785
        %v4888 = vunpack.c.l.b16 %v4786
        %v4889 = vunpack.c.l.b16 %v4787
        %v4890 = vunpack.c.h.b16 %v4785
        %v4891 = vunpack.c.h.b16 %v4786
        %v4892 = vunpack.c.h.b16 %v4787
        %v4893 = vunpack.c.l.b16 %v4788
        %v4894 = vunpack.c.l.b16 %v4789
        %v4895 = vunpack.c.l.b16 %v4790
        %v4896 = vunpack.c.h.b16 %v4788
        %v4897 = vunpack.c.h.b16 %v4789
        %v4898 = vunpack.c.h.b16 %v4790
        %v4899 = vunpack.c.l.b16 %v4791
        %v4900 = vunpack.c.l.b16 %v4792
        %v4901 = vunpack.c.l.b16 %v4793
        %v4902 = vunpack.c.h.b16 %v4791
        %v4903 = vunpack.c.h.b16 %v4792
        %v4904 = vunpack.c.h.b16 %v4793
        %v4905 = vunpack.c.l.b16 %v4794
        %v4906 = vunpack.c.l.b16 %v4795
        %v4907 = vunpack.c.l.b16 %v4796
        %v4908 = vunpack.c.h.b16 %v4794
        %v4909 = vunpack.c.h.b16 %v4795
        %v4910 = vunpack.c.h.b16 %v4796
        %v4911 = vunpack.c.l.b16 %v4797
        %v4912 = vunpack.c.l.b16 %v4798
        %v4913 = vunpack.c.l.b16 %v4799
        %v4914 = vunpack.c.h.b16 %v4797
        %v4915 = vunpack.c.h.b16 %v4798
        %v4916 = vunpack.c.h.b16 %v4799
        %v4917 = vunpack.c.l.b16 %v4800
        %v4918 = vunpack.c.l.b16 %v4801
        %v4919 = vunpack.c.l.b16 %v4802
        %v4920 = vunpack.c.h.b16 %v4800
        %v4921 = vunpack.c.h.b16 %v4801
        %v4922 = vunpack.c.h.b16 %v4802
        %v4923 = vunpack.c.l.b16 %v4803
        %v4924 = vunpack.c.l.b16 %v4804
        %v4925 = vunpack.c.l.b16 %v4805
        %v4926 = vunpack.c.h.b16 %v4803
        %v4927 = vunpack.c.h.b16 %v4804
        %v4928 = vunpack.c.h.b16 %v4805
        %v4929 = vunpack.c.l.b16 %v4806
        %v4930 = vunpack.c.l.b16 %v4807
        %v4931 = vunpack.c.l.b16 %v4808
        %v4932 = vunpack.c.h.b16 %v4806
        %v4933 = vunpack.c.h.b16 %v4807
        %v4934 = vunpack.c.h.b16 %v4808
        %v4935 = vunpack.c.l.b16 %v4809
        %v4936 = vunpack.c.l.b16 %v4810
        %v4937 = vunpack.c.l.b16 %v4811
        %v4938 = vunpack.c.h.b16 %v4809
        %v4939 = vunpack.c.h.b16 %v4810
        %v4940 = vunpack.c.h.b16 %v4811
        %v4941 = vunpack.c.l.b16 %v4812
        %v4942 = vunpack.c.l.b16 %v4813
        %v4943 = vunpack.c.l.b16 %v4814
        %v4944 = vunpack.c.h.b16 %v4812
        %v4945 = vunpack.c.h.b16 %v4813
        %v4946 = vunpack.c.h.b16 %v4814
        %v4947 = vunpack.c.l.b16 %v4815
        %v4948 = vunpack.c.l.b16 %v4816
        %v4949 = vunpack.c.l.b16 %v4817
        %v4950 = vunpack.c.h.b16 %v4815
        %v4951 = vunpack.c.h.b16 %v4816
        %v4952 = vunpack.c.h.b16 %v4817
        %v4953 = vunpack.c.l.b16 %v4818
        %v4954 = vunpack.c.l.b16 %v4819
        %v4955 = vunpack.c.l.b16 %v4820
        %v4956 = vunpack.c.h.b16 %v4818
        %v4957 = vunpack.c.h.b16 %v4819
        %v4958 = vunpack.c.h.b16 %v4820
        %v4959 = vunpack.c.l.b16 %v4821
        %v4960 = vunpack.c.l.b16 %v4822
        %v4961 = vunpack.c.l.b16 %v4823
        %v4962 = vunpack.c.h.b16 %v4821
        %v4963 = vunpack.c.h.b16 %v4822
        %v4964 = vunpack.c.h.b16 %v4823
        %v4965 = vunpack.c.l.b16 %v4824
        %v4966 = vunpack.c.l.b16 %v4825
        %v4967 = vunpack.c.l.b16 %v4826
        %v4968 = vunpack.c.h.b16 %v4824
        %v4969 = vunpack.c.h.b16 %v4825
        %v4970 = vunpack.c.h.b16 %v4826
        %v4971 = vpack.c.b16 %v4876, %v4875
        %v4972 = vpack.c.b16 %v4877, %v4877
        %v4973 = vpack.c.b16 %v4879, %v4878
        %v4974 = vpack.c.b16 %v4880, %v4880
        %v4975 = vpack.c.b16 %v4882, %v4881
        %v4976 = vpack.c.b16 %v4883, %v4883
        %v4977 = vpack.c.b16 %v4885, %v4884
        %v4978 = vpack.c.b16 %v4886, %v4886
        %v4979 = vpack.c.b16 %v4888, %v4887
        %v4980 = vpack.c.b16 %v4889, %v4889
        %v4981 = vpack.c.b16 %v4891, %v4890
        %v4982 = vpack.c.b16 %v4892, %v4892
        %v4983 = vpack.c.b16 %v4894, %v4893
        %v4984 = vpack.c.b16 %v4895, %v4895
        %v4985 = vpack.c.b16 %v4897, %v4896
        %v4986 = vpack.c.b16 %v4898, %v4898
        %v4987 = vpack.c.b16 %v4900, %v4899
        %v4988 = vpack.c.b16 %v4901, %v4901
        %v4989 = vpack.c.b16 %v4903, %v4902
        %v4990 = vpack.c.b16 %v4904, %v4904
        %v4991 = vpack.c.b16 %v4906, %v4905
        %v4992 = vpack.c.b16 %v4907, %v4907
        %v4993 = vpack.c.b16 %v4909, %v4908
        %v4994 = vpack.c.b16 %v4910, %v4910
        %v4995 = vpack.c.b16 %v4912, %v4911
        %v4996 = vpack.c.b16 %v4913, %v4913
        %v4997 = vpack.c.b16 %v4915, %v4914
        %v4998 = vpack.c.b16 %v4916, %v4916
        %v4999 = vpack.c.b16 %v4918, %v4917
        %v5000 = vpack.c.b16 %v4919, %v4919
        %v5001 = vpack.c.b16 %v4921, %v4920
        %v5002 = vpack.c.b16 %v4922, %v4922
        %v5003 = vpack.c.b16 %v4924, %v4923
        %v5004 = vpack.c.b16 %v4925, %v4925
        %v5005 = vpack.c.b16 %v4927, %v4926
        %v5006 = vpack.c.b16 %v4928, %v4928
        %v5007 = vpack.c.b16 %v4930, %v4929
        %v5008 = vpack.c.b16 %v4931, %v4931
        %v5009 = vpack.c.b16 %v4933, %v4932
        %v5010 = vpack.c.b16 %v4934, %v4934
        %v5011 = vpack.c.b16 %v4936, %v4935
        %v5012 = vpack.c.b16 %v4937, %v4937
        %v5013 = vpack.c.b16 %v4939, %v4938
        %v5014 = vpack.c.b16 %v4940, %v4940
        %v5015 = vpack.c.b16 %v4942, %v4941
        %v5016 = vpack.c.b16 %v4943, %v4943
        %v5017 = vpack.c.b16 %v4945, %v4944
        %v5018 = vpack.c.b16 %v4946, %v4946
        %v5019 = vpack.c.b16 %v4948, %v4947
        %v5020 = vpack.c.b16 %v4949, %v4949
        %v5021 = vpack.c.b16 %v4951, %v4950
        %v5022 = vpack.c.b16 %v4952, %v4952
        %v5023 = vpack.c.b16 %v4954, %v4953
        %v5024 = vpack.c.b16 %v4955, %v4955
        %v5025 = vpack.c.b16 %v4957, %v4956
        %v5026 = vpack.c.b16 %v4958, %v4958
        %v5027 = vpack.c.b16 %v4960, %v4959
        %v5028 = vpack.c.b16 %v4961, %v4961
        %v5029 = vpack.c.b16 %v4963, %v4962
        %v5030 = vpack.c.b16 %v4964, %v4964
        %v5031 = vpack.c.b16 %v4966, %v4965
        %v5032 = vpack.c.b16 %v4967, %v4967
        %v5033 = vpack.c.b16 %v4969, %v4968
        %v5034 = vpack.c.b16 %v4970, %v4970
        %5099 = vst [vmem:[%s334] sm:$0xff] %v4971
        %5100 = vst [vmem:[%s334 + $0x8] sm:$0xf] %v4972
        %5101 = vst [vmem:[%s334 + $0xc] sm:$0xff] %v4973
        %5102 = vst [vmem:[%s334 + $0x14] sm:$0xf] %v4974
        %5103 = vst [vmem:[%s334 + $0x18] sm:$0xff] %v4975
        %5104 = vst [vmem:[%s334 + $0x20] sm:$0xf] %v4976
        %5105 = vst [vmem:[%s334 + $0x24] sm:$0xff] %v4977
        %5106 = vst [vmem:[%s334 + $0x2c] sm:$0xf] %v4978
        %5107 = vst [vmem:[%s334 + $0x30] sm:$0xff] %v4979
        %5108 = vst [vmem:[%s334 + $0x38] sm:$0xf] %v4980
        %5109 = vst [vmem:[%s334 + $0x3c] sm:$0xff] %v4981
        %5110 = vst [vmem:[%s334 + $0x44] sm:$0xf] %v4982
        %5111 = vst [vmem:[%s334 + $0x48] sm:$0xff] %v4983
        %5112 = vst [vmem:[%s334 + $0x50] sm:$0xf] %v4984
        %5113 = vst [vmem:[%s334 + $0x54] sm:$0xff] %v4985
        %5114 = vst [vmem:[%s334 + $0x5c] sm:$0xf] %v4986
        %5115 = vst [vmem:[%s334 + $0x60] sm:$0xff] %v4987
        %5116 = vst [vmem:[%s334 + $0x68] sm:$0xf] %v4988
        %5117 = vst [vmem:[%s334 + $0x6c] sm:$0xff] %v4989
        %5118 = vst [vmem:[%s334 + $0x74] sm:$0xf] %v4990
        %5119 = vst [vmem:[%s334 + $0x78] sm:$0xff] %v4991
        %5120 = vst [vmem:[%s334 + $0x80] sm:$0xf] %v4992
        %5121 = vst [vmem:[%s334 + $0x84] sm:$0xff] %v4993
        %5122 = vst [vmem:[%s334 + $0x8c] sm:$0xf] %v4994
        %5123 = vst [vmem:[%s334 + $0x90] sm:$0xff] %v4995
        %5124 = vst [vmem:[%s334 + $0x98] sm:$0xf] %v4996
        %5125 = vst [vmem:[%s334 + $0x9c] sm:$0xff] %v4997
        %5126 = vst [vmem:[%s334 + $0xa4] sm:$0xf] %v4998
        %5127 = vst [vmem:[%s334 + $0xa8] sm:$0xff] %v4999
        %5128 = vst [vmem:[%s334 + $0xb0] sm:$0xf] %v5000
        %5129 = vst [vmem:[%s334 + $0xb4] sm:$0xff] %v5001
        %5130 = vst [vmem:[%s334 + $0xbc] sm:$0xf] %v5002
        %5131 = vst [vmem:[%s334 + $0xc0] sm:$0xff] %v5003
        %5132 = vst [vmem:[%s334 + $0xc8] sm:$0xf] %v5004
        %5133 = vst [vmem:[%s334 + $0xcc] sm:$0xff] %v5005
        %5134 = vst [vmem:[%s334 + $0xd4] sm:$0xf] %v5006
        %5135 = vst [vmem:[%s334 + $0xd8] sm:$0xff] %v5007
        %5136 = vst [vmem:[%s334 + $0xe0] sm:$0xf] %v5008
        %5137 = vst [vmem:[%s334 + $0xe4] sm:$0xff] %v5009
        %5138 = vst [vmem:[%s334 + $0xec] sm:$0xf] %v5010
        %5139 = vst [vmem:[%s334 + $0xf0] sm:$0xff] %v5011
        %5140 = vst [vmem:[%s334 + $0xf8] sm:$0xf] %v5012
        %5141 = vst [vmem:[%s334 + $0xfc] sm:$0xff] %v5013
        %5142 = vst [vmem:[%s334 + $0x104] sm:$0xf] %v5014
        %5143 = vst [vmem:[%s334 + $0x108] sm:$0xff] %v5015
        %5144 = vst [vmem:[%s334 + $0x110] sm:$0xf] %v5016
        %5145 = vst [vmem:[%s334 + $0x114] sm:$0xff] %v5017
        %5146 = vst [vmem:[%s334 + $0x11c] sm:$0xf] %v5018
        %5147 = vst [vmem:[%s334 + $0x120] sm:$0xff] %v5019
        %5148 = vst [vmem:[%s334 + $0x128] sm:$0xf] %v5020
        %5149 = vst [vmem:[%s334 + $0x12c] sm:$0xff] %v5021
        %5150 = vst [vmem:[%s334 + $0x134] sm:$0xf] %v5022
        %5151 = vst [vmem:[%s334 + $0x138] sm:$0xff] %v5023
        %5152 = vst [vmem:[%s334 + $0x140] sm:$0xf] %v5024
        %5153 = vst [vmem:[%s334 + $0x144] sm:$0xff] %v5025
        %5154 = vst [vmem:[%s334 + $0x14c] sm:$0xf] %v5026
        %5155 = vst [vmem:[%s334 + $0x150] sm:$0xff] %v5027
        %5156 = vst [vmem:[%s334 + $0x158] sm:$0xf] %v5028
        %5157 = vst [vmem:[%s334 + $0x15c] sm:$0xff] %v5029
        %5158 = vst [vmem:[%s334 + $0x164] sm:$0xf] %v5030
        %5159 = vst [vmem:[%s334 + $0x168] sm:$0xff] %v5031
        %5160 = vst [vmem:[%s334 + $0x170] sm:$0xf] %v5032
        %5161 = vst [vmem:[%s334 + $0x174] sm:$0xff] %v5033
        %5162 = vst [vmem:[%s334 + $0x17c] sm:$0xf] %v5034
        %s5163 = sand.u32 %s177, 1
        %s5164 = scalar_lea.sflag [#allocation3], %s5163
        %s5165 = sand.u32 %s177, 1
        %s5166 = smul.addr %s5165, 384
        %s5167 = scalar_lea.vmem [#allocation2], %s5166
        // Predicated region
        $region41: #{tpu_custom_call.1} parent=39 // pred_check
          %p5168 = pneg %p187
        $region42: #{tpu_custom_call.1} parent=39 // pred_check_branch
          %5170 = sbr.rel (%p5168) target = $region44
        $region43: #{tpu_custom_call.1} parent=39 // pred_region
          %s5171 = smul.u32 16, %s24
          %s5173 = ssub.s32 6144, 6144
          %5174 = vsyncadd %s5164, %s5173
          %s5175 = smul.addr %s5171, 6
          %s5176 = smul.addr %s23, 96
          %s5177 = sadd.s32 %s5175, %s5176
          %s5178 = smul.addr %s5177, 64
          %s5179 = scalar_lea.hbm %s5, %s5178
          %s5180 = sshll.u32 %s5167, 4
          %s5181 = int_to_ptr.vmem [resolvable:$true] %s5180
          %5186 = dma.vmem_to_hbm [thread:$0]  %s5181, 6144, %s5179, %s5164, 192, 192, 12
        $region44: #{tpu_custom_call.1} parent=39 // pred_fallthru
          _
      $region40: #{tpu_custom_call.1} parent=5 // pred_fallthru
        _
      %p5187 = scmp.le.s32.totalorder 2, %s14
      // Predicated region
      $region45: #{tpu_custom_call.1} parent=5 // pred_check
        %p5188 = pneg %p5187
      $region46: #{tpu_custom_call.1} parent=5 // pred_check_branch
        %5190 = sbr.rel (%p5188) target = $region48
      $region47: #{tpu_custom_call.1} parent=5 // pred_region
        %s5191 = ssub.s32 %s14, 2
        // Predicated region
        $region49: #{tpu_custom_call.1} parent=47 // pred_check
          %p5192 = pneg %p193
        $region50: #{tpu_custom_call.1} parent=47 // pred_check_branch
          %5194 = sbr.rel (%p5192) target = $region52
        $region51: #{tpu_custom_call.1} parent=47 // pred_region
          %s5195 = sand.u32 %s178, 1
          %s5196 = scalar_lea.sflag [#allocation3], %s5195
          %s5197 = sand.u32 %s178, 1
          %s5198 = smul.addr %s5197, 384
          %s5199 = scalar_lea.vmem [#allocation2], %s5198
          %5200 = dma.done %s5196, 6144
        $region52: #{tpu_custom_call.1} parent=47 // pred_fallthru
          _
      $region48: #{tpu_custom_call.1} parent=5 // pred_fallthru
        _
    $region6: #{tpu_custom_call.1} parent=1 // loop_footer
      %s18 = sadd.s32 1, %s14
    $region7: #{tpu_custom_call.1} parent=1 // loop_footer_branch
      %13 = sbr.rel target = $region3
    $region8: #{tpu_custom_call.1} parent=1 // loop_exit
      _
    %5201 = vsyncpa [#allocation3], 1
    %s5202 = scalar_lea.sflag [#allocation3], 1
    %5203 = vsyncpa %s5202, 1

</llo_original>
